<compile_context>
chip_gen: v5e
topology: v5e:2x2
jax: 0.10.0
libtpu: 0.0.40
codegen_flags: <defaults>
</compile_context>

<pallas_src>
import functools
import math

import jax
import jax.numpy as jnp
from jax import lax
from jax.experimental import pallas as pl
from jax.experimental.pallas import tpu as pltpu


# ----------------------------------------------------------------------------
# helpers
# ----------------------------------------------------------------------------
def _round_up(x, m):
    return ((x + m - 1) // m) * m


def _pad2d(x, shape):
    ph = shape[0] - x.shape[0]
    pw = shape[1] - x.shape[1]
    if ph == 0 and pw == 0:
        return x
    return jnp.pad(x, ((0, ph), (0, pw)))


# ----------------------------------------------------------------------------
# fused matmul + bias + activation Pallas kernel
# ----------------------------------------------------------------------------
def _mm_kernel(x_ref, w_ref, b_ref, o_ref, *, activation):
    # bf16 operands -> MXU, f32 accumulate; bias + ReLU in f32 on the VPU.
    y = jnp.dot(x_ref[...], w_ref[...], preferred_element_type=jnp.float32)
    y = y + b_ref[...]
    if activation == "relu":
        y = jnp.maximum(y, 0.0)
    o_ref[...] = y.astype(o_ref.dtype)


def linear_padded(x, w, b, *, activation="relu", out_dtype=jnp.float32,
                  block_m=512):
    """act(x @ w + b) as one fused MXU kernel.

    x: (M, K) bf16 activation (K already matches w's K).
    w: (K, N_pad) bf16, pre-padded so N_pad % 128 == 0 (lane-dense output).
    b: (1, N_pad) f32.
    Returns (M, N_pad) in out_dtype.  Single block unless M > block_m, in
    which case M is tiled on a "parallel" grid axis.
    """
    M, K = x.shape
    Kw, Np = w.shape
    assert K == Kw, (K, Kw)
    assert Np % 128 == 0, Np

    if M <= block_m:
        tm, mp, xp = M, M, x                       # one block, no M padding
    else:
        tm = block_m                               # multiple of 16 (bf16 vreg)
        mp = _round_up(M, tm)
        xp = jnp.pad(x, ((0, mp - M), (0, 0))) if mp != M else x

    grid = (mp // tm,)
    out_bytes = jnp.dtype(out_dtype).itemsize
    cost = pl.CostEstimate(
        flops=2 * mp * K * Np,
        transcendentals=0,
        bytes_accessed=mp * K * 2 + K * Np * 2 + Np * 4 + mp * Np * out_bytes)

    out = pl.pallas_call(
        functools.partial(_mm_kernel, activation=activation),
        out_shape=jax.ShapeDtypeStruct((mp, Np), out_dtype),
        grid=grid,
        in_specs=[pl.BlockSpec((tm, K), lambda i: (i, 0)),
                  pl.BlockSpec((K, Np), lambda i: (0, 0)),
                  pl.BlockSpec((1, Np), lambda i: (0, 0))],
        out_specs=pl.BlockSpec((tm, Np), lambda i: (i, 0)),
        compiler_params=pltpu.CompilerParams(
            dimension_semantics=("parallel",)),
        cost_estimate=cost,
    )(xp, w, b)
    return out if mp == M else out[:M]


# ----------------------------------------------------------------------------
# Conv2d (+ReLU) = im2col glue + fused Pallas matmul, lane-padded OC output
# ----------------------------------------------------------------------------
def conv2d_block(x, w_pad, b_pad, k, stride, *, layout):
    """VALID conv + ReLU.  x: NCHW or NHWC bf16; w_pad: (C*k*k, OC_pad) bf16
    with rows ordered (C, kh, kw) == PyTorch OIHW flatten (zero rows for any
    padded input channels).  Returns NHWC bf16 with OC padded to 128."""
    if layout == "NCHW":
        B, C, H, W = x.shape
        dn = ("NCHW", "OIHW", "NHWC")
    else:
        B, H, W, C = x.shape
        dn = ("NHWC", "OIHW", "NHWC")
    oh = (H - k) // stride + 1
    ow = (W - k) // stride + 1
    patches = lax.conv_general_dilated_patches(
        x, filter_shape=(k, k), window_strides=(stride, stride),
        padding="VALID", dimension_numbers=dn)         # (B, oh, ow, C*k*k)
    col = patches.reshape(B * oh * ow, C * k * k)
    y = linear_padded(col, w_pad, b_pad, activation="relu",
                      out_dtype=jnp.bfloat16)          # (B*oh*ow, OC_pad)
    return y.reshape(B, oh, ow, w_pad.shape[1])


# ----------------------------------------------------------------------------
# SmallImpalaCNN forward
# ----------------------------------------------------------------------------
def small_impala_cnn_forward(cfg, params, x):
    """cfg: static python ints (closure); params: prepared (padded, bf16) arrays."""
    if x.shape[1] != cfg["in_channels"]:               # NHWC input -> NCHW, as in PyTorch
        x = jnp.transpose(x, (0, 3, 1, 2))
    B = x.shape[0]
    x = x.astype(jnp.bfloat16)                         # bf16 MXU inputs end-to-end
    h = conv2d_block(x, params["conv1_w"], params["conv1_b"],
                     cfg["k1"], cfg["s1"], layout="NCHW")   # (B, oh1, ow1, 128)
    h = conv2d_block(h, params["conv2_w"], params["conv2_b"],
                     cfg["k2"], cfg["s2"], layout="NHWC")   # (B, oh2, ow2, 128)
    h = h.reshape(B, -1)                               # padded-channel NHWC flatten
    out = linear_padded(h, params["fc_w"], params["fc_b"],
                        activation="relu", out_dtype=jnp.float32)
    hid = cfg["hidden_dim"]
    return out if out.shape[1] == hid else out[:, :hid]


# ----------------------------------------------------------------------------
# Config & parameters (synthetic xavier_uniform(relu gain) init, zero bias)
# ----------------------------------------------------------------------------
def make_config(obs_shape, channel_scale=1, hidden_dim=256):
    C, H, W = obs_shape
    k1, s1 = (8, 4) if H > 9 else (4, 2)
    k2, s2 = (4, 2) if W > 9 else (2, 1)
    c1, c2 = 16 * channel_scale, 32 * channel_scale
    oh1, ow1 = (H - k1) // s1 + 1, (W - k1) // s1 + 1
    oh2, ow2 = (oh1 - k2) // s2 + 1, (ow1 - k2) // s2 + 1
    return dict(in_channels=C, k1=k1, s1=s1, k2=k2, s2=s2, c1=c1, c2=c2,
                oh2=oh2, ow2=ow2, feat=c2 * oh2 * ow2, hidden_dim=hidden_dim)


def _xavier_uniform_relu(key, shape, fan_in, fan_out):
    gain = math.sqrt(2.0)                              # nn.init.calculate_gain('relu')
    bound = gain * math.sqrt(6.0 / (fan_in + fan_out))
    return jax.random.uniform(key, shape, jnp.float32, -bound, bound)


def init_params(key, cfg):
    """PyTorch-layout parameters.  # TODO(synk): no checkpoint load; synthetic init."""
    C, c1, c2 = cfg["in_channels"], cfg["c1"], cfg["c2"]
    k1, k2 = cfg["k1"], cfg["k2"]
    feat, hid = cfg["feat"], cfg["hidden_dim"]
    kc1, kc2, kfc = jax.random.split(key, 3)
    return dict(
        conv1_w=_xavier_uniform_relu(kc1, (c1, C, k1, k1), C * k1 * k1, c1 * k1 * k1),
        conv1_b=jnp.zeros((c1,), jnp.float32),
        conv2_w=_xavier_uniform_relu(kc2, (c2, c1, k2, k2), c1 * k2 * k2, c2 * k2 * k2),
        conv2_b=jnp.zeros((c2,), jnp.float32),
        fc_w=_xavier_uniform_relu(kfc, (feat, hid), feat, hid),   # (in, out)
        fc_b=jnp.zeros((hid,), jnp.float32),
    )


def prepare_params(raw, cfg):
    """One-time layout prep (runs outside the hot path):
       * conv weights -> (C*KH*KW, OC_pad) bf16 matmul layout, OC padded to 128;
       * conv2 / fc rows zero-padded so the lane-padded channel dim of the
         previous layer's output can be carried end-to-end (no per-call slices);
       * fc rows permuted from PyTorch's NCHW flatten order to the padded NHWC
         flatten the kernel path produces;
       * biases padded to (1, N_pad) f32."""
    c1, c2 = cfg["c1"], cfg["c2"]
    oh2, ow2, hid = cfg["oh2"], cfg["ow2"], cfg["hidden_dim"]
    c1p, c2p, hidp = _round_up(c1, 128), _round_up(c2, 128), _round_up(hid, 128)

    # conv1: (OC, C, k, k) -> (C*k*k, OC) -> pad OC -> bf16
    w1 = raw["conv1_w"].reshape(c1, -1).T
    w1 = _pad2d(w1, (w1.shape[0], c1p)).astype(jnp.bfloat16)
    b1 = _pad2d(raw["conv1_b"].reshape(1, c1), (1, c1p)).astype(jnp.float32)

    # conv2: pad in-channels c1 -> c1p with zero rows (matches padded NHWC act)
    w2 = jnp.pad(raw["conv2_w"], ((0, 0), (0, c1p - c1), (0, 0), (0, 0)))
    w2 = w2.reshape(c2, -1).T                                  # (c1p*k2*k2, c2)
    w2 = _pad2d(w2, (w2.shape[0], c2p)).astype(jnp.bfloat16)
    b2 = _pad2d(raw["conv2_b"].reshape(1, c2), (1, c2p)).astype(jnp.float32)

    # fc: PyTorch NCHW-flatten rows -> padded NHWC-flatten rows (oh2, ow2, c2p)
    wf = raw["fc_w"].reshape(c2, oh2, ow2, hid).transpose(1, 2, 0, 3)
    wf = jnp.pad(wf, ((0, 0), (0, 0), (0, c2p - c2), (0, 0)))
    wf = _pad2d(wf.reshape(oh2 * ow2 * c2p, hid), (oh2 * ow2 * c2p, hidp))
    wf = wf.astype(jnp.bfloat16)
    bf = _pad2d(raw["fc_b"].reshape(1, hid), (1, hidp)).astype(jnp.float32)

    return dict(conv1_w=w1, conv1_b=b1, conv2_w=w2, conv2_b=b2,
                fc_w=wf, fc_b=bf)


# ----------------------------------------------------------------------------
# Pure-JAX reference (for in-script correctness check)
# ----------------------------------------------------------------------------
def reference_forward(cfg, raw, x):
    if x.shape[1] != cfg["in_channels"]:
        x = jnp.transpose(x, (0, 3, 1, 2))
    dn = ("NCHW", "OIHW", "NCHW")
    h = lax.conv_general_dilated(x, raw["conv1_w"], (cfg["s1"],) * 2, "VALID",
                                 dimension_numbers=dn,
                                 precision=lax.Precision.HIGHEST)
    h = jax.nn.relu(h + raw["conv1_b"][None, :, None, None])
    h = lax.conv_general_dilated(h, raw["conv2_w"], (cfg["s2"],) * 2, "VALID",
                                 dimension_numbers=dn,
                                 precision=lax.Precision.HIGHEST)
    h = jax.nn.relu(h + raw["conv2_b"][None, :, None, None])
    h = h.reshape(h.shape[0], -1)                      # PyTorch NCHW flatten
    return jax.nn.relu(jnp.dot(h, raw["fc_w"], precision=lax.Precision.HIGHEST)
                       + raw["fc_b"])


# ----------------------------------------------------------------------------
if __name__ == "__main__":
    key = jax.random.PRNGKey(0)
    pkey, xkey = jax.random.split(key)

    B = 2
    obs_shape = (3, 64, 64)            # H, W > 9 -> kernel/stride 8/4 then 4/2
    cfg = make_config(obs_shape, channel_scale=1, hidden_dim=256)
    raw = init_params(pkey, cfg)
    params = prepare_params(raw, cfg)

    x = jax.random.normal(xkey, (B, *obs_shape), jnp.float32)

    fwd = jax.jit(functools.partial(small_impala_cnn_forward, cfg))
    out = fwd(params, x)
    jax.block_until_ready(out)

    ref = reference_forward(cfg, raw, x)
    assert out.shape == (B, cfg["hidden_dim"]), out.shape
    err = float(jnp.max(jnp.abs(out - ref)))
    assert err < 5e-2, f"mismatch vs reference: max abs err {err}"
    print("KERNEL_OK")
</pallas_src>

<mosaic_0001>
module attributes {stable_mosaic.version = 11 : i64} {
  func.func @_mm_kernel(%arg0: i32, %arg1: memref<450x192xbf16, #tpu.memory_space<vmem>>, %arg2: memref<192x128xbf16, #tpu.memory_space<vmem>>, %arg3: memref<1x128xf32, #tpu.memory_space<vmem>>, %arg4: memref<450x128xbf16, #tpu.memory_space<vmem>>) attributes {dimension_semantics = [#tpu.dimension_semantics<parallel>], iteration_bounds = array<i64: 1>, scalar_prefetch = 0 : i64, scratch_operands = 0 : i64, tpu.core_type = #tpu.core_type<tc>, window_params = [{transform_indices = @transform_0, window_bounds = array<i64: 450, 192>}, {pipeline_mode = #tpu.pipeline_mode<synchronous>, transform_indices = @transform_1, window_bounds = array<i64: 192, 128>}, {pipeline_mode = #tpu.pipeline_mode<synchronous>, transform_indices = @transform_2, window_bounds = array<i64: 1, 128>}, {transform_indices = @transform_3, window_bounds = array<i64: 450, 128>}]} {
    %c0 = arith.constant 0 : index
    %c0_0 = arith.constant 0 : index
    %0 = vector.load %arg1[%c0, %c0_0] : memref<450x192xbf16, #tpu.memory_space<vmem>>, vector<450x192xbf16>
    %c0_1 = arith.constant 0 : index
    %c0_2 = arith.constant 0 : index
    %1 = vector.load %arg2[%c0_1, %c0_2] : memref<192x128xbf16, #tpu.memory_space<vmem>>, vector<192x128xbf16>
    %cst = arith.constant dense<0.000000e+00> : vector<450x128xf32>
    %2 = tpu.matmul %0, %1, %cst {dimension_numbers = #tpu.dot_dimension_numbers<[1], [0], [0], [1], [0, 0, 1, 1], [], []>} : vector<450x192xbf16>, vector<192x128xbf16>, vector<450x128xf32> -> vector<450x128xf32>
    %c0_3 = arith.constant 0 : index
    %c0_4 = arith.constant 0 : index
    %3 = vector.load %arg3[%c0_3, %c0_4] : memref<1x128xf32, #tpu.memory_space<vmem>>, vector<1x128xf32>
    %4 = vector.broadcast %3 : vector<1x128xf32> to vector<450x128xf32>
    %5 = arith.addf %2, %4 : vector<450x128xf32>
    %cst_5 = arith.constant 0.000000e+00 : f32
    %6 = vector.broadcast %cst_5 : f32 to vector<450x128xf32>
    %7 = arith.maximumf %5, %6 : vector<450x128xf32>
    %8 = arith.truncf %7 : vector<450x128xf32> to vector<450x128xbf16>
    %c0_6 = arith.constant 0 : index
    %c0_7 = arith.constant 0 : index
    %9 = vector.load %arg4[%c0_6, %c0_7] : memref<450x128xbf16, #tpu.memory_space<vmem>>, vector<450x128xbf16>
    tpu.vector_store %arg4[%c0_6, %c0_7], %8 {strides = array<i32>} : memref<450x128xbf16, #tpu.memory_space<vmem>>, vector<450x128xbf16>,
    return
  }
  func.func @transform_0(%arg0: i32) -> (i32, i32) {
    %c0_i32 = arith.constant 0 : i32
    %c0_i32_0 = arith.constant 0 : i32
    return %arg0, %c0_i32 : i32, i32
  }
  func.func @transform_1(%arg0: i32) -> (i32, i32) {
    %c0_i32 = arith.constant 0 : i32
    %c0_i32_0 = arith.constant 0 : i32
    %c0_i32_1 = arith.constant 0 : i32
    return %c0_i32, %c0_i32_0 : i32, i32
  }
  func.func @transform_2(%arg0: i32) -> (i32, i32) {
    %c0_i32 = arith.constant 0 : i32
    %c0_i32_0 = arith.constant 0 : i32
    %c0_i32_1 = arith.constant 0 : i32
    return %c0_i32, %c0_i32_0 : i32, i32
  }
  func.func @transform_3(%arg0: i32) -> (i32, i32) {
    %c0_i32 = arith.constant 0 : i32
    %c0_i32_0 = arith.constant 0 : i32
    return %arg0, %c0_i32 : i32, i32
  }
}

module attributes {stable_mosaic.version = 11 : i64} {
  func.func @_mm_kernel(%arg0: i32, %arg1: memref<72x2048xbf16, #tpu.memory_space<vmem>>, %arg2: memref<2048x128xbf16, #tpu.memory_space<vmem>>, %arg3: memref<1x128xf32, #tpu.memory_space<vmem>>, %arg4: memref<72x128xbf16, #tpu.memory_space<vmem>>) attributes {dimension_semantics = [#tpu.dimension_semantics<parallel>], iteration_bounds = array<i64: 1>, scalar_prefetch = 0 : i64, scratch_operands = 0 : i64, tpu.core_type = #tpu.core_type<tc>, window_params = [{transform_indices = @transform_0, window_bounds = array<i64: 72, 2048>}, {pipeline_mode = #tpu.pipeline_mode<synchronous>, transform_indices = @transform_1, window_bounds = array<i64: 2048, 128>}, {pipeline_mode = #tpu.pipeline_mode<synchronous>, transform_indices = @transform_2, window_bounds = array<i64: 1, 128>}, {transform_indices = @transform_3, window_bounds = array<i64: 72, 128>}]} {
    %c0 = arith.constant 0 : index
    %c0_0 = arith.constant 0 : index
    %0 = vector.load %arg1[%c0, %c0_0] : memref<72x2048xbf16, #tpu.memory_space<vmem>>, vector<72x2048xbf16>
    %c0_1 = arith.constant 0 : index
    %c0_2 = arith.constant 0 : index
    %1 = vector.load %arg2[%c0_1, %c0_2] : memref<2048x128xbf16, #tpu.memory_space<vmem>>, vector<2048x128xbf16>
    %cst = arith.constant dense<0.000000e+00> : vector<72x128xf32>
    %2 = tpu.matmul %0, %1, %cst {dimension_numbers = #tpu.dot_dimension_numbers<[1], [0], [0], [1], [0, 0, 1, 1], [], []>} : vector<72x2048xbf16>, vector<2048x128xbf16>, vector<72x128xf32> -> vector<72x128xf32>
    %c0_3 = arith.constant 0 : index
    %c0_4 = arith.constant 0 : index
    %3 = vector.load %arg3[%c0_3, %c0_4] : memref<1x128xf32, #tpu.memory_space<vmem>>, vector<1x128xf32>
    %4 = vector.broadcast %3 : vector<1x128xf32> to vector<72x128xf32>
    %5 = arith.addf %2, %4 : vector<72x128xf32>
    %cst_5 = arith.constant 0.000000e+00 : f32
    %6 = vector.broadcast %cst_5 : f32 to vector<72x128xf32>
    %7 = arith.maximumf %5, %6 : vector<72x128xf32>
    %8 = arith.truncf %7 : vector<72x128xf32> to vector<72x128xbf16>
    %c0_6 = arith.constant 0 : index
    %c0_7 = arith.constant 0 : index
    %9 = vector.load %arg4[%c0_6, %c0_7] : memref<72x128xbf16, #tpu.memory_space<vmem>>, vector<72x128xbf16>
    tpu.vector_store %arg4[%c0_6, %c0_7], %8 {strides = array<i32>} : memref<72x128xbf16, #tpu.memory_space<vmem>>, vector<72x128xbf16>,
    return
  }
  func.func @transform_0(%arg0: i32) -> (i32, i32) {
    %c0_i32 = arith.constant 0 : i32
    %c0_i32_0 = arith.constant 0 : i32
    return %arg0, %c0_i32 : i32, i32
  }
  func.func @transform_1(%arg0: i32) -> (i32, i32) {
    %c0_i32 = arith.constant 0 : i32
    %c0_i32_0 = arith.constant 0 : i32
    %c0_i32_1 = arith.constant 0 : i32
    return %c0_i32, %c0_i32_0 : i32, i32
  }
  func.func @transform_2(%arg0: i32) -> (i32, i32) {
    %c0_i32 = arith.constant 0 : i32
    %c0_i32_0 = arith.constant 0 : i32
    %c0_i32_1 = arith.constant 0 : i32
    return %c0_i32, %c0_i32_0 : i32, i32
  }
  func.func @transform_3(%arg0: i32) -> (i32, i32) {
    %c0_i32 = arith.constant 0 : i32
    %c0_i32_0 = arith.constant 0 : i32
    return %arg0, %c0_i32 : i32, i32
  }
}

module attributes {stable_mosaic.version = 11 : i64} {
  func.func @_mm_kernel(%arg0: i32, %arg1: memref<2x4608xbf16, #tpu.memory_space<vmem>>, %arg2: memref<4608x256xbf16, #tpu.memory_space<vmem>>, %arg3: memref<1x256xf32, #tpu.memory_space<vmem>>, %arg4: memref<2x256xf32, #tpu.memory_space<vmem>>) attributes {dimension_semantics = [#tpu.dimension_semantics<parallel>], iteration_bounds = array<i64: 1>, scalar_prefetch = 0 : i64, scratch_operands = 0 : i64, tpu.core_type = #tpu.core_type<tc>, window_params = [{transform_indices = @transform_0, window_bounds = array<i64: 2, 4608>}, {pipeline_mode = #tpu.pipeline_mode<synchronous>, transform_indices = @transform_1, window_bounds = array<i64: 4608, 256>}, {pipeline_mode = #tpu.pipeline_mode<synchronous>, transform_indices = @transform_2, window_bounds = array<i64: 1, 256>}, {transform_indices = @transform_3, window_bounds = array<i64: 2, 256>}]} {
    %c0 = arith.constant 0 : index
    %c0_0 = arith.constant 0 : index
    %0 = vector.load %arg1[%c0, %c0_0] : memref<2x4608xbf16, #tpu.memory_space<vmem>>, vector<2x4608xbf16>
    %c0_1 = arith.constant 0 : index
    %c0_2 = arith.constant 0 : index
    %1 = vector.load %arg2[%c0_1, %c0_2] : memref<4608x256xbf16, #tpu.memory_space<vmem>>, vector<4608x256xbf16>
    %cst = arith.constant dense<0.000000e+00> : vector<2x256xf32>
    %2 = tpu.matmul %0, %1, %cst {dimension_numbers = #tpu.dot_dimension_numbers<[1], [0], [0], [1], [0, 0, 1, 1], [], []>} : vector<2x4608xbf16>, vector<4608x256xbf16>, vector<2x256xf32> -> vector<2x256xf32>
    %c0_3 = arith.constant 0 : index
    %c0_4 = arith.constant 0 : index
    %3 = vector.load %arg3[%c0_3, %c0_4] : memref<1x256xf32, #tpu.memory_space<vmem>>, vector<1x256xf32>
    %4 = vector.broadcast %3 : vector<1x256xf32> to vector<2x256xf32>
    %5 = arith.addf %2, %4 : vector<2x256xf32>
    %cst_5 = arith.constant 0.000000e+00 : f32
    %6 = vector.broadcast %cst_5 : f32 to vector<2x256xf32>
    %7 = arith.maximumf %5, %6 : vector<2x256xf32>
    %c0_6 = arith.constant 0 : index
    %c0_7 = arith.constant 0 : index
    %8 = vector.load %arg4[%c0_6, %c0_7] : memref<2x256xf32, #tpu.memory_space<vmem>>, vector<2x256xf32>
    tpu.vector_store %arg4[%c0_6, %c0_7], %7 {strides = array<i32>} : memref<2x256xf32, #tpu.memory_space<vmem>>, vector<2x256xf32>,
    return
  }
  func.func @transform_0(%arg0: i32) -> (i32, i32) {
    %c0_i32 = arith.constant 0 : i32
    %c0_i32_0 = arith.constant 0 : i32
    return %arg0, %c0_i32 : i32, i32
  }
  func.func @transform_1(%arg0: i32) -> (i32, i32) {
    %c0_i32 = arith.constant 0 : i32
    %c0_i32_0 = arith.constant 0 : i32
    %c0_i32_1 = arith.constant 0 : i32
    return %c0_i32, %c0_i32_0 : i32, i32
  }
  func.func @transform_2(%arg0: i32) -> (i32, i32) {
    %c0_i32 = arith.constant 0 : i32
    %c0_i32_0 = arith.constant 0 : i32
    %c0_i32_1 = arith.constant 0 : i32
    return %c0_i32, %c0_i32_0 : i32, i32
  }
  func.func @transform_3(%arg0: i32) -> (i32, i32) {
    %c0_i32 = arith.constant 0 : i32
    %c0_i32_0 = arith.constant 0 : i32
    return %arg0, %c0_i32 : i32, i32
  }
}

</mosaic_0001>

<llo_original>
// kernel: small_impala_cnn_forward.3
$region0: #{small_impala_cnn_forward.3}
  #allocation0 [shape = 'u32[]', space=smem, size = 0x4, offset = 0x4, fixed_abs, tag = 'smem constant byte address 0x4 - core index']
  #allocation1 [shape = 'u32[72,128]{1,0:T(1,128)}', space=vmem, size = 0x9000, scoped, tag = 'internal scratch']
  %s0 = inlined_call_operand.vmem [shape: bf16[450,192], index: 0, kind: input, shape index: {}]
  %s1 = inlined_call_operand.vmem [shape: bf16[192,128], index: 1, kind: input, shape index: {}]
  %s2 = inlined_call_operand.vmem [shape: f32[1,128], index: 2, kind: input, shape index: {}]
  %s3 = inlined_call_operand.vmem [shape: bf16[450,128], index: 3, kind: output, shape index: {}]
  %s4 = sld [smem:[#allocation0]]
  $region22: #{small_impala_cnn_forward.3} parent=0
    _
  %s6 = ssub.s32 1, %s4
  %s7 = scalar_select 0, %s6, %s4
  // Predicated region
  $region2: #{small_impala_cnn_forward.3} parent=0 // pred_check
    _
  $region3: #{small_impala_cnn_forward.3} parent=0 // pred_check_branch
    %9 = sbr.rel (0) target = $region5
  $region4: #{small_impala_cnn_forward.3} parent=0 // pred_region
    _
  $region5: #{small_impala_cnn_forward.3} parent=0 // pred_fallthru
    _
  // Predicated region
  $region6: #{small_impala_cnn_forward.3} parent=0 // pred_check
    _
  $region7: #{small_impala_cnn_forward.3} parent=0 // pred_check_branch
    %11 = sbr.rel (0) target = $region9
  $region8: #{small_impala_cnn_forward.3} parent=0 // pred_region
    _
  $region9: #{small_impala_cnn_forward.3} parent=0 // pred_fallthru
    _
  // Predicated region
  $region10: #{small_impala_cnn_forward.3} parent=0 // pred_check
    _
  $region11: #{small_impala_cnn_forward.3} parent=0 // pred_check_branch
    %13 = sbr.rel (0) target = $region13
  $region12: #{small_impala_cnn_forward.3} parent=0 // pred_region
    _
  $region13: #{small_impala_cnn_forward.3} parent=0 // pred_fallthru
    _
  %v15 = vld [vmem:[%s0] sm:$0xff]
  %v16 = vld [vmem:[%s0 + $0x8] sm:$0xff]
  %v17 = vld [vmem:[%s0 + $0x10] sm:$0xff]
  %v18 = vld [vmem:[%s0 + $0x18] sm:$0xff]
  %v19 = vld [vmem:[%s0 + $0x20] sm:$0xff]
  %v20 = vld [vmem:[%s0 + $0x28] sm:$0xff]
  %v21 = vld [vmem:[%s0 + $0x30] sm:$0xff]
  %v22 = vld [vmem:[%s0 + $0x38] sm:$0xff]
  %v23 = vld [vmem:[%s0 + $0x40] sm:$0xff]
  %v24 = vld [vmem:[%s0 + $0x48] sm:$0xff]
  %v25 = vld [vmem:[%s0 + $0x50] sm:$0xff]
  %v26 = vld [vmem:[%s0 + $0x58] sm:$0xff]
  %v27 = vld [vmem:[%s0 + $0x60] sm:$0xff]
  %v28 = vld [vmem:[%s0 + $0x68] sm:$0xff]
  %v29 = vld [vmem:[%s0 + $0x70] sm:$0xff]
  %v30 = vld [vmem:[%s0 + $0x78] sm:$0xff]
  %v31 = vld [vmem:[%s0 + $0x80] sm:$0xff]
  %v32 = vld [vmem:[%s0 + $0x88] sm:$0xff]
  %v33 = vld [vmem:[%s0 + $0x90] sm:$0xff]
  %v34 = vld [vmem:[%s0 + $0x98] sm:$0xff]
  %v35 = vld [vmem:[%s0 + $0xa0] sm:$0xff]
  %v36 = vld [vmem:[%s0 + $0xa8] sm:$0xff]
  %v37 = vld [vmem:[%s0 + $0xb0] sm:$0xff]
  %v38 = vld [vmem:[%s0 + $0xb8] sm:$0xff]
  %v39 = vld [vmem:[%s0 + $0xc0] sm:$0xff]
  %v40 = vld [vmem:[%s0 + $0xc8] sm:$0xff]
  %v41 = vld [vmem:[%s0 + $0xd0] sm:$0xff]
  %v42 = vld [vmem:[%s0 + $0xd8] sm:$0xff]
  %v43 = vld [vmem:[%s0 + $0xe0] sm:$0xff]
  %v44 = vld [vmem:[%s0 + $0xe8] sm:$0xff]
  %v45 = vld [vmem:[%s0 + $0xf0] sm:$0xff]
  %v46 = vld [vmem:[%s0 + $0xf8] sm:$0xff]
  %v47 = vld [vmem:[%s0 + $0x100] sm:$0xff]
  %v48 = vld [vmem:[%s0 + $0x108] sm:$0xff]
  %v49 = vld [vmem:[%s0 + $0x110] sm:$0xff]
  %v50 = vld [vmem:[%s0 + $0x118] sm:$0xff]
  %v51 = vld [vmem:[%s0 + $0x120] sm:$0xff]
  %v52 = vld [vmem:[%s0 + $0x128] sm:$0xff]
  %v53 = vld [vmem:[%s0 + $0x130] sm:$0xff]
  %v54 = vld [vmem:[%s0 + $0x138] sm:$0xff]
  %v55 = vld [vmem:[%s0 + $0x140] sm:$0xff]
  %v56 = vld [vmem:[%s0 + $0x148] sm:$0xff]
  %v57 = vld [vmem:[%s0 + $0x150] sm:$0xff]
  %v58 = vld [vmem:[%s0 + $0x158] sm:$0xff]
  %v59 = vld [vmem:[%s0 + $0x160] sm:$0xff]
  %v60 = vld [vmem:[%s0 + $0x168] sm:$0xff]
  %v61 = vld [vmem:[%s0 + $0x170] sm:$0xff]
  %v62 = vld [vmem:[%s0 + $0x178] sm:$0xff]
  %v63 = vld [vmem:[%s0 + $0x180] sm:$0xff]
  %v64 = vld [vmem:[%s0 + $0x188] sm:$0xff]
  %v65 = vld [vmem:[%s0 + $0x190] sm:$0xff]
  %v66 = vld [vmem:[%s0 + $0x198] sm:$0xff]
  %v67 = vld [vmem:[%s0 + $0x1a0] sm:$0xff]
  %v68 = vld [vmem:[%s0 + $0x1a8] sm:$0xff]
  %v69 = vld [vmem:[%s0 + $0x1b0] sm:$0xff]
  %v70 = vld [vmem:[%s0 + $0x1b8] sm:$0xff]
  %v71 = vld [vmem:[%s0 + $0x1c0] sm:$0x11]
  %v72 = vld [vmem:[%s1] sm:$0xf]
  %v73 = vld [vmem:[%s1 + $0x4] sm:$0xf]
  %v74 = vld [vmem:[%s1 + $0x8] sm:$0xf]
  %v75 = vld [vmem:[%s1 + $0xc] sm:$0xf]
  %v76 = vld [vmem:[%s1 + $0x10] sm:$0xf]
  %v77 = vld [vmem:[%s1 + $0x14] sm:$0xf]
  %v78 = vld [vmem:[%s1 + $0x18] sm:$0xf]
  %v79 = vld [vmem:[%s1 + $0x1c] sm:$0xf]
  %v80 = vld [vmem:[%s1 + $0x20] sm:$0xf]
  %v81 = vld [vmem:[%s1 + $0x24] sm:$0xf]
  %v82 = vld [vmem:[%s1 + $0x28] sm:$0xf]
  %v83 = vld [vmem:[%s1 + $0x2c] sm:$0xf]
  %v84 = vld [vmem:[%s1 + $0x30] sm:$0xf]
  %v85 = vld [vmem:[%s1 + $0x34] sm:$0xf]
  %v86 = vld [vmem:[%s1 + $0x38] sm:$0xf]
  %v87 = vld [vmem:[%s1 + $0x3c] sm:$0xf]
  %v88 = vld [vmem:[%s1 + $0x40] sm:$0xf]
  %v89 = vld [vmem:[%s1 + $0x44] sm:$0xf]
  %v90 = vld [vmem:[%s1 + $0x48] sm:$0xf]
  %v91 = vld [vmem:[%s1 + $0x4c] sm:$0xf]
  %v92 = vld [vmem:[%s1 + $0x50] sm:$0xf]
  %v93 = vld [vmem:[%s1 + $0x54] sm:$0xf]
  %v94 = vld [vmem:[%s1 + $0x58] sm:$0xf]
  %v95 = vld [vmem:[%s1 + $0x5c] sm:$0xf]
  %v96 = vld [vmem:[%s2] sm:$0x1]
  %v98 = vperm.slane %v96, 0
  %v157 = vunpack.c.l.b16 %v15
  %v158 = vunpack.c.h.b16 %v15
  %v159 = vunpack.c.l.b16 %v16
  %v160 = vunpack.c.h.b16 %v16
  %v161 = vunpack.c.l.b16 %v17
  %v162 = vunpack.c.h.b16 %v17
  %v163 = vunpack.c.l.b16 %v18
  %v164 = vunpack.c.h.b16 %v18
  %v165 = vunpack.c.l.b16 %v19
  %v166 = vunpack.c.h.b16 %v19
  %v167 = vunpack.c.l.b16 %v20
  %v168 = vunpack.c.h.b16 %v20
  %v169 = vunpack.c.l.b16 %v21
  %v170 = vunpack.c.h.b16 %v21
  %v171 = vunpack.c.l.b16 %v22
  %v172 = vunpack.c.h.b16 %v22
  %v173 = vunpack.c.l.b16 %v23
  %v174 = vunpack.c.h.b16 %v23
  %v175 = vunpack.c.l.b16 %v24
  %v176 = vunpack.c.h.b16 %v24
  %v177 = vunpack.c.l.b16 %v25
  %v178 = vunpack.c.h.b16 %v25
  %v179 = vunpack.c.l.b16 %v26
  %v180 = vunpack.c.h.b16 %v26
  %v181 = vunpack.c.l.b16 %v27
  %v182 = vunpack.c.h.b16 %v27
  %v183 = vunpack.c.l.b16 %v28
  %v184 = vunpack.c.h.b16 %v28
  %v185 = vunpack.c.l.b16 %v29
  %v186 = vunpack.c.h.b16 %v29
  %v187 = vunpack.c.l.b16 %v30
  %v188 = vunpack.c.h.b16 %v30
  %v189 = vunpack.c.l.b16 %v31
  %v190 = vunpack.c.h.b16 %v31
  %v191 = vunpack.c.l.b16 %v32
  %v192 = vunpack.c.h.b16 %v32
  %v193 = vunpack.c.l.b16 %v33
  %v194 = vunpack.c.h.b16 %v33
  %v195 = vunpack.c.l.b16 %v34
  %v196 = vunpack.c.h.b16 %v34
  %v197 = vunpack.c.l.b16 %v35
  %v198 = vunpack.c.h.b16 %v35
  %v199 = vunpack.c.l.b16 %v36
  %v200 = vunpack.c.h.b16 %v36
  %v201 = vunpack.c.l.b16 %v37
  %v202 = vunpack.c.h.b16 %v37
  %v203 = vunpack.c.l.b16 %v38
  %v204 = vunpack.c.h.b16 %v38
  %v205 = vunpack.c.l.b16 %v39
  %v206 = vunpack.c.h.b16 %v39
  %v207 = vunpack.c.l.b16 %v40
  %v208 = vunpack.c.h.b16 %v40
  %v209 = vunpack.c.l.b16 %v41
  %v210 = vunpack.c.h.b16 %v41
  %v211 = vunpack.c.l.b16 %v42
  %v212 = vunpack.c.h.b16 %v42
  %v213 = vunpack.c.l.b16 %v43
  %v214 = vunpack.c.h.b16 %v43
  %v215 = vunpack.c.l.b16 %v44
  %v216 = vunpack.c.h.b16 %v44
  %v217 = vunpack.c.l.b16 %v45
  %v218 = vunpack.c.h.b16 %v45
  %v219 = vunpack.c.l.b16 %v46
  %v220 = vunpack.c.h.b16 %v46
  %v221 = vunpack.c.l.b16 %v47
  %v222 = vunpack.c.h.b16 %v47
  %v223 = vunpack.c.l.b16 %v48
  %v224 = vunpack.c.h.b16 %v48
  %v225 = vunpack.c.l.b16 %v49
  %v226 = vunpack.c.h.b16 %v49
  %v227 = vunpack.c.l.b16 %v50
  %v228 = vunpack.c.h.b16 %v50
  %v229 = vunpack.c.l.b16 %v51
  %v230 = vunpack.c.h.b16 %v51
  %v231 = vunpack.c.l.b16 %v52
  %v232 = vunpack.c.h.b16 %v52
  %v233 = vunpack.c.l.b16 %v53
  %v234 = vunpack.c.h.b16 %v53
  %v235 = vunpack.c.l.b16 %v54
  %v236 = vunpack.c.h.b16 %v54
  %v237 = vunpack.c.l.b16 %v55
  %v238 = vunpack.c.h.b16 %v55
  %v239 = vunpack.c.l.b16 %v56
  %v240 = vunpack.c.h.b16 %v56
  %v241 = vunpack.c.l.b16 %v57
  %v242 = vunpack.c.h.b16 %v57
  %v243 = vunpack.c.l.b16 %v58
  %v244 = vunpack.c.h.b16 %v58
  %v245 = vunpack.c.l.b16 %v59
  %v246 = vunpack.c.h.b16 %v59
  %v247 = vunpack.c.l.b16 %v60
  %v248 = vunpack.c.h.b16 %v60
  %v249 = vunpack.c.l.b16 %v61
  %v250 = vunpack.c.h.b16 %v61
  %v251 = vunpack.c.l.b16 %v62
  %v252 = vunpack.c.h.b16 %v62
  %v253 = vunpack.c.l.b16 %v63
  %v254 = vunpack.c.h.b16 %v63
  %v255 = vunpack.c.l.b16 %v64
  %v256 = vunpack.c.h.b16 %v64
  %v257 = vunpack.c.l.b16 %v65
  %v258 = vunpack.c.h.b16 %v65
  %v259 = vunpack.c.l.b16 %v66
  %v260 = vunpack.c.h.b16 %v66
  %v261 = vunpack.c.l.b16 %v67
  %v262 = vunpack.c.h.b16 %v67
  %v263 = vunpack.c.l.b16 %v68
  %v264 = vunpack.c.h.b16 %v68
  %v265 = vunpack.c.l.b16 %v69
  %v266 = vunpack.c.h.b16 %v69
  %v267 = vunpack.c.l.b16 %v70
  %v268 = vunpack.c.h.b16 %v70
  %v269 = vunpack.c.l.b16 %v71
  %v270 = vunpack.c.h.b16 %v71
  %v271 = vpack.c.b16 %v159, %v157
  %v272 = vpack.c.b16 %v160, %v158
  %v273 = vpack.c.b16 %v163, %v161
  %v274 = vpack.c.b16 %v164, %v162
  %v275 = vpack.c.b16 %v167, %v165
  %v276 = vpack.c.b16 %v168, %v166
  %v277 = vpack.c.b16 %v171, %v169
  %v278 = vpack.c.b16 %v172, %v170
  %v279 = vpack.c.b16 %v175, %v173
  %v280 = vpack.c.b16 %v176, %v174
  %v281 = vpack.c.b16 %v179, %v177
  %v282 = vpack.c.b16 %v180, %v178
  %v283 = vpack.c.b16 %v183, %v181
  %v284 = vpack.c.b16 %v184, %v182
  %v285 = vpack.c.b16 %v187, %v185
  %v286 = vpack.c.b16 %v188, %v186
  %v287 = vpack.c.b16 %v191, %v189
  %v288 = vpack.c.b16 %v192, %v190
  %v289 = vpack.c.b16 %v195, %v193
  %v290 = vpack.c.b16 %v196, %v194
  %v291 = vpack.c.b16 %v199, %v197
  %v292 = vpack.c.b16 %v200, %v198
  %v293 = vpack.c.b16 %v203, %v201
  %v294 = vpack.c.b16 %v204, %v202
  %v295 = vpack.c.b16 %v207, %v205
  %v296 = vpack.c.b16 %v208, %v206
  %v297 = vpack.c.b16 %v211, %v209
  %v298 = vpack.c.b16 %v212, %v210
  %v299 = vpack.c.b16 %v215, %v213
  %v300 = vpack.c.b16 %v216, %v214
  %v301 = vpack.c.b16 %v219, %v217
  %v302 = vpack.c.b16 %v220, %v218
  %v303 = vpack.c.b16 %v223, %v221
  %v304 = vpack.c.b16 %v224, %v222
  %v305 = vpack.c.b16 %v227, %v225
  %v306 = vpack.c.b16 %v228, %v226
  %v307 = vpack.c.b16 %v231, %v229
  %v308 = vpack.c.b16 %v232, %v230
  %v309 = vpack.c.b16 %v235, %v233
  %v310 = vpack.c.b16 %v236, %v234
  %v311 = vpack.c.b16 %v239, %v237
  %v312 = vpack.c.b16 %v240, %v238
  %v313 = vpack.c.b16 %v243, %v241
  %v314 = vpack.c.b16 %v244, %v242
  %v315 = vpack.c.b16 %v247, %v245
  %v316 = vpack.c.b16 %v248, %v246
  %v317 = vpack.c.b16 %v251, %v249
  %v318 = vpack.c.b16 %v252, %v250
  %v319 = vpack.c.b16 %v255, %v253
  %v320 = vpack.c.b16 %v256, %v254
  %v321 = vpack.c.b16 %v259, %v257
  %v322 = vpack.c.b16 %v260, %v258
  %v323 = vpack.c.b16 %v263, %v261
  %v324 = vpack.c.b16 %v264, %v262
  %v325 = vpack.c.b16 %v267, %v265
  %v326 = vpack.c.b16 %v268, %v266
  %v327 = vpack.c.b16 %v269, %v269
  %v328 = vpack.c.b16 %v270, %v270
  %v382 = vunpack.c.l.b16 %v72
  %v383 = vunpack.c.l.b16 %v73
  %v384 = vunpack.c.l.b16 %v74
  %v385 = vunpack.c.l.b16 %v75
  %v386 = vunpack.c.l.b16 %v76
  %v387 = vunpack.c.l.b16 %v77
  %v388 = vunpack.c.l.b16 %v78
  %v389 = vunpack.c.l.b16 %v79
  %v390 = vunpack.c.l.b16 %v80
  %v391 = vunpack.c.l.b16 %v81
  %v392 = vunpack.c.l.b16 %v82
  %v393 = vunpack.c.l.b16 %v83
  %v394 = vunpack.c.l.b16 %v84
  %v395 = vunpack.c.l.b16 %v85
  %v396 = vunpack.c.l.b16 %v86
  %v397 = vunpack.c.l.b16 %v87
  %v398 = vunpack.c.l.b16 %v88
  %v399 = vunpack.c.l.b16 %v89
  %v400 = vunpack.c.l.b16 %v90
  %v401 = vunpack.c.l.b16 %v91
  %v402 = vunpack.c.l.b16 %v92
  %v403 = vunpack.c.l.b16 %v93
  %v404 = vunpack.c.l.b16 %v94
  %v405 = vunpack.c.l.b16 %v95
  %v406 = vpack.c.b16 %v383, %v382
  %v407 = vpack.c.b16 %v385, %v384
  %v408 = vpack.c.b16 %v387, %v386
  %v409 = vpack.c.b16 %v389, %v388
  %v410 = vpack.c.b16 %v391, %v390
  %v411 = vpack.c.b16 %v393, %v392
  %v412 = vpack.c.b16 %v395, %v394
  %v413 = vpack.c.b16 %v397, %v396
  %v414 = vpack.c.b16 %v399, %v398
  %v415 = vpack.c.b16 %v401, %v400
  %v416 = vpack.c.b16 %v403, %v402
  %v417 = vpack.c.b16 %v405, %v404
  %vm430 = vcmask 523264
  %v432 = vsel %vm430, %v272, 0
  %v435 = vsel %vm430, %v274, 0
  %v438 = vsel %vm430, %v276, 0
  %v441 = vsel %vm430, %v278, 0
  %v444 = vsel %vm430, %v280, 0
  %v447 = vsel %vm430, %v282, 0
  %v450 = vsel %vm430, %v284, 0
  %v453 = vsel %vm430, %v286, 0
  %v456 = vsel %vm430, %v288, 0
  %v459 = vsel %vm430, %v290, 0
  %v462 = vsel %vm430, %v292, 0
  %v465 = vsel %vm430, %v294, 0
  %v468 = vsel %vm430, %v296, 0
  %v471 = vsel %vm430, %v298, 0
  %v474 = vsel %vm430, %v300, 0
  %v477 = vsel %vm430, %v302, 0
  %v480 = vsel %vm430, %v304, 0
  %v483 = vsel %vm430, %v306, 0
  %v486 = vsel %vm430, %v308, 0
  %v489 = vsel %vm430, %v310, 0
  %v492 = vsel %vm430, %v312, 0
  %v495 = vsel %vm430, %v314, 0
  %v498 = vsel %vm430, %v316, 0
  %v501 = vsel %vm430, %v318, 0
  %v504 = vsel %vm430, %v320, 0
  %v507 = vsel %vm430, %v322, 0
  %v510 = vsel %vm430, %v324, 0
  %v513 = vsel %vm430, %v326, 0
  %v516 = vsel %vm430, %v328, 0
  %518 = vmatpush.bf16.msra.mxu0 %v413
  %519 = vmatpush.bf16.msra.mxu0 %v412
  %520 = vmatpush.bf16.msra.mxu0 %v411
  %521 = vmatpush.bf16.msra.mxu0 %v410
  %522 = vmatpush.bf16.msra.mxu0 %v409
  %523 = vmatpush.bf16.msra.mxu0 %v408
  %524 = vmatpush.bf16.msra.mxu0 %v407
  %525 = vmatpush.bf16.msra.mxu0 %v406
  %526 = vmatmul.bf16.gmra.mxu0 %v271
  %v527 = vpop.f32.mrf.mxu0
  %v528 = vadd.f32 %v98, %v527
  %v529 = vpop.f32.mrf.mxu0
  %v530 = vadd.f32 %v98, %v529
  %531 = vmatmul.bf16.gmra.mxu0 %v273
  %v532 = vpop.f32.mrf.mxu0
  %v533 = vadd.f32 %v98, %v532
  %v534 = vpop.f32.mrf.mxu0
  %v535 = vadd.f32 %v98, %v534
  %536 = vmatmul.bf16.gmra.mxu0 %v275
  %v537 = vpop.f32.mrf.mxu0
  %v538 = vadd.f32 %v98, %v537
  %v539 = vpop.f32.mrf.mxu0
  %v540 = vadd.f32 %v98, %v539
  %541 = vmatmul.bf16.gmra.mxu0 %v277
  %v542 = vpop.f32.mrf.mxu0
  %v543 = vadd.f32 %v98, %v542
  %v544 = vpop.f32.mrf.mxu0
  %v545 = vadd.f32 %v98, %v544
  %546 = vmatmul.bf16.gmra.mxu0 %v279
  %v547 = vpop.f32.mrf.mxu0
  %v548 = vadd.f32 %v98, %v547
  %v549 = vpop.f32.mrf.mxu0
  %v550 = vadd.f32 %v98, %v549
  %551 = vmatmul.bf16.gmra.mxu0 %v281
  %v552 = vpop.f32.mrf.mxu0
  %v553 = vadd.f32 %v98, %v552
  %v554 = vpop.f32.mrf.mxu0
  %v555 = vadd.f32 %v98, %v554
  %556 = vmatmul.bf16.gmra.mxu0 %v283
  %v557 = vpop.f32.mrf.mxu0
  %v558 = vadd.f32 %v98, %v557
  %v559 = vpop.f32.mrf.mxu0
  %v560 = vadd.f32 %v98, %v559
  %561 = vmatmul.bf16.gmra.mxu0 %v285
  %v562 = vpop.f32.mrf.mxu0
  %v563 = vadd.f32 %v98, %v562
  %v564 = vpop.f32.mrf.mxu0
  %v565 = vadd.f32 %v98, %v564
  %566 = vmatmul.bf16.gmra.mxu0 %v287
  %v567 = vpop.f32.mrf.mxu0
  %v568 = vadd.f32 %v98, %v567
  %v569 = vpop.f32.mrf.mxu0
  %v570 = vadd.f32 %v98, %v569
  %571 = vmatmul.bf16.gmra.mxu0 %v289
  %v572 = vpop.f32.mrf.mxu0
  %v573 = vadd.f32 %v98, %v572
  %v574 = vpop.f32.mrf.mxu0
  %v575 = vadd.f32 %v98, %v574
  %576 = vmatmul.bf16.gmra.mxu0 %v291
  %v577 = vpop.f32.mrf.mxu0
  %v578 = vadd.f32 %v98, %v577
  %v579 = vpop.f32.mrf.mxu0
  %v580 = vadd.f32 %v98, %v579
  %581 = vmatmul.bf16.gmra.mxu0 %v293
  %v582 = vpop.f32.mrf.mxu0
  %v583 = vadd.f32 %v98, %v582
  %v584 = vpop.f32.mrf.mxu0
  %v585 = vadd.f32 %v98, %v584
  %586 = vmatmul.bf16.gmra.mxu0 %v295
  %v587 = vpop.f32.mrf.mxu0
  %v588 = vadd.f32 %v98, %v587
  %v589 = vpop.f32.mrf.mxu0
  %v590 = vadd.f32 %v98, %v589
  %591 = vmatmul.bf16.gmra.mxu0 %v297
  %v592 = vpop.f32.mrf.mxu0
  %v593 = vadd.f32 %v98, %v592
  %v594 = vpop.f32.mrf.mxu0
  %v595 = vadd.f32 %v98, %v594
  %596 = vmatmul.bf16.gmra.mxu0 %v299
  %v597 = vpop.f32.mrf.mxu0
  %v598 = vadd.f32 %v98, %v597
  %v599 = vpop.f32.mrf.mxu0
  %v600 = vadd.f32 %v98, %v599
  %601 = vmatmul.bf16.gmra.mxu0 %v301
  %v602 = vpop.f32.mrf.mxu0
  %v603 = vadd.f32 %v98, %v602
  %v604 = vpop.f32.mrf.mxu0
  %v605 = vadd.f32 %v98, %v604
  %606 = vmatmul.bf16.gmra.mxu0 %v303
  %v607 = vpop.f32.mrf.mxu0
  %v608 = vadd.f32 %v98, %v607
  %v609 = vpop.f32.mrf.mxu0
  %v610 = vadd.f32 %v98, %v609
  %611 = vmatmul.bf16.gmra.mxu0 %v305
  %v612 = vpop.f32.mrf.mxu0
  %v613 = vadd.f32 %v98, %v612
  %v614 = vpop.f32.mrf.mxu0
  %v615 = vadd.f32 %v98, %v614
  %616 = vmatmul.bf16.gmra.mxu0 %v307
  %v617 = vpop.f32.mrf.mxu0
  %v618 = vadd.f32 %v98, %v617
  %v619 = vpop.f32.mrf.mxu0
  %v620 = vadd.f32 %v98, %v619
  %621 = vmatmul.bf16.gmra.mxu0 %v309
  %v622 = vpop.f32.mrf.mxu0
  %v623 = vadd.f32 %v98, %v622
  %v624 = vpop.f32.mrf.mxu0
  %v625 = vadd.f32 %v98, %v624
  %626 = vmatmul.bf16.gmra.mxu0 %v311
  %v627 = vpop.f32.mrf.mxu0
  %v628 = vadd.f32 %v98, %v627
  %v629 = vpop.f32.mrf.mxu0
  %v630 = vadd.f32 %v98, %v629
  %631 = vmatmul.bf16.gmra.mxu0 %v313
  %v632 = vpop.f32.mrf.mxu0
  %v633 = vadd.f32 %v98, %v632
  %v634 = vpop.f32.mrf.mxu0
  %v635 = vadd.f32 %v98, %v634
  %636 = vmatmul.bf16.gmra.mxu0 %v315
  %v637 = vpop.f32.mrf.mxu0
  %v638 = vadd.f32 %v98, %v637
  %v639 = vpop.f32.mrf.mxu0
  %v640 = vadd.f32 %v98, %v639
  %641 = vmatmul.bf16.gmra.mxu0 %v317
  %v642 = vpop.f32.mrf.mxu0
  %v643 = vadd.f32 %v98, %v642
  %v644 = vpop.f32.mrf.mxu0
  %v645 = vadd.f32 %v98, %v644
  %646 = vmatmul.bf16.gmra.mxu0 %v319
  %v647 = vpop.f32.mrf.mxu0
  %v648 = vadd.f32 %v98, %v647
  %v649 = vpop.f32.mrf.mxu0
  %v650 = vadd.f32 %v98, %v649
  %651 = vmatmul.bf16.gmra.mxu0 %v321
  %v652 = vpop.f32.mrf.mxu0
  %v653 = vadd.f32 %v98, %v652
  %v654 = vpop.f32.mrf.mxu0
  %v655 = vadd.f32 %v98, %v654
  %656 = vmatmul.bf16.gmra.mxu0 %v323
  %v657 = vpop.f32.mrf.mxu0
  %v658 = vadd.f32 %v98, %v657
  %v659 = vpop.f32.mrf.mxu0
  %v660 = vadd.f32 %v98, %v659
  %661 = vmatmul.bf16.gmra.mxu0 %v325
  %v662 = vpop.f32.mrf.mxu0
  %v663 = vadd.f32 %v98, %v662
  %v664 = vpop.f32.mrf.mxu0
  %v665 = vadd.f32 %v98, %v664
  %666 = vmatmul.bf16.gmra.mxu0 %v327
  %v667 = vpop.f32.mrf.mxu0
  %v668 = vadd.f32 %v98, %v667
  %v669 = vpop.f32.mrf.mxu0
  %670 = vdwg.mxu0
  %671 = vmatpush.bf16.msra.mxu0 0
  %672 = vmatpush.bf16.msra.mxu0 0
  %673 = vmatpush.bf16.msra.mxu0 0
  %674 = vmatpush.bf16.msra.mxu0 0
  %675 = vmatpush.bf16.msra.mxu0 %v417
  %676 = vmatpush.bf16.msra.mxu0 %v416
  %677 = vmatpush.bf16.msra.mxu0 %v415
  %678 = vmatpush.bf16.msra.mxu0 %v414
  %679 = vmatmul.bf16.gmra.mxu0 %v432
  %v680 = vpop.f32.mrf.mxu0
  %v681 = vadd.f32 %v528, %v680
  %v682 = vpop.f32.mrf.mxu0
  %v683 = vadd.f32 %v530, %v682
  %684 = vmatmul.bf16.gmra.mxu0 %v435
  %v685 = vpop.f32.mrf.mxu0
  %v686 = vadd.f32 %v533, %v685
  %v687 = vpop.f32.mrf.mxu0
  %v688 = vadd.f32 %v535, %v687
  %689 = vmatmul.bf16.gmra.mxu0 %v438
  %v690 = vpop.f32.mrf.mxu0
  %v691 = vadd.f32 %v538, %v690
  %v692 = vpop.f32.mrf.mxu0
  %v693 = vadd.f32 %v540, %v692
  %694 = vmatmul.bf16.gmra.mxu0 %v441
  %v695 = vpop.f32.mrf.mxu0
  %v696 = vadd.f32 %v543, %v695
  %v697 = vpop.f32.mrf.mxu0
  %v698 = vadd.f32 %v545, %v697
  %699 = vmatmul.bf16.gmra.mxu0 %v444
  %v700 = vpop.f32.mrf.mxu0
  %v701 = vadd.f32 %v548, %v700
  %v702 = vpop.f32.mrf.mxu0
  %v703 = vadd.f32 %v550, %v702
  %704 = vmatmul.bf16.gmra.mxu0 %v447
  %v705 = vpop.f32.mrf.mxu0
  %v706 = vadd.f32 %v553, %v705
  %v707 = vpop.f32.mrf.mxu0
  %v708 = vadd.f32 %v555, %v707
  %709 = vmatmul.bf16.gmra.mxu0 %v450
  %v710 = vpop.f32.mrf.mxu0
  %v711 = vadd.f32 %v558, %v710
  %v712 = vpop.f32.mrf.mxu0
  %v713 = vadd.f32 %v560, %v712
  %714 = vmatmul.bf16.gmra.mxu0 %v453
  %v715 = vpop.f32.mrf.mxu0
  %v716 = vadd.f32 %v563, %v715
  %v717 = vpop.f32.mrf.mxu0
  %v718 = vadd.f32 %v565, %v717
  %719 = vmatmul.bf16.gmra.mxu0 %v456
  %v720 = vpop.f32.mrf.mxu0
  %v721 = vadd.f32 %v568, %v720
  %v722 = vpop.f32.mrf.mxu0
  %v723 = vadd.f32 %v570, %v722
  %724 = vmatmul.bf16.gmra.mxu0 %v459
  %v725 = vpop.f32.mrf.mxu0
  %v726 = vadd.f32 %v573, %v725
  %v727 = vpop.f32.mrf.mxu0
  %v728 = vadd.f32 %v575, %v727
  %729 = vmatmul.bf16.gmra.mxu0 %v462
  %v730 = vpop.f32.mrf.mxu0
  %v731 = vadd.f32 %v578, %v730
  %v732 = vpop.f32.mrf.mxu0
  %v733 = vadd.f32 %v580, %v732
  %734 = vmatmul.bf16.gmra.mxu0 %v465
  %v735 = vpop.f32.mrf.mxu0
  %v736 = vadd.f32 %v583, %v735
  %v737 = vpop.f32.mrf.mxu0
  %v738 = vadd.f32 %v585, %v737
  %739 = vmatmul.bf16.gmra.mxu0 %v468
  %v740 = vpop.f32.mrf.mxu0
  %v741 = vadd.f32 %v588, %v740
  %v742 = vpop.f32.mrf.mxu0
  %v743 = vadd.f32 %v590, %v742
  %744 = vmatmul.bf16.gmra.mxu0 %v471
  %v745 = vpop.f32.mrf.mxu0
  %v746 = vadd.f32 %v593, %v745
  %v747 = vpop.f32.mrf.mxu0
  %v748 = vadd.f32 %v595, %v747
  %749 = vmatmul.bf16.gmra.mxu0 %v474
  %v750 = vpop.f32.mrf.mxu0
  %v751 = vadd.f32 %v598, %v750
  %v752 = vpop.f32.mrf.mxu0
  %v753 = vadd.f32 %v600, %v752
  %754 = vmatmul.bf16.gmra.mxu0 %v477
  %v755 = vpop.f32.mrf.mxu0
  %v756 = vadd.f32 %v603, %v755
  %v757 = vpop.f32.mrf.mxu0
  %v758 = vadd.f32 %v605, %v757
  %759 = vmatmul.bf16.gmra.mxu0 %v480
  %v760 = vpop.f32.mrf.mxu0
  %v761 = vadd.f32 %v608, %v760
  %v762 = vpop.f32.mrf.mxu0
  %v763 = vadd.f32 %v610, %v762
  %764 = vmatmul.bf16.gmra.mxu0 %v483
  %v765 = vpop.f32.mrf.mxu0
  %v766 = vadd.f32 %v613, %v765
  %v767 = vpop.f32.mrf.mxu0
  %v768 = vadd.f32 %v615, %v767
  %769 = vmatmul.bf16.gmra.mxu0 %v486
  %v770 = vpop.f32.mrf.mxu0
  %v771 = vadd.f32 %v618, %v770
  %v772 = vpop.f32.mrf.mxu0
  %v773 = vadd.f32 %v620, %v772
  %774 = vmatmul.bf16.gmra.mxu0 %v489
  %v775 = vpop.f32.mrf.mxu0
  %v776 = vadd.f32 %v623, %v775
  %v777 = vpop.f32.mrf.mxu0
  %v778 = vadd.f32 %v625, %v777
  %779 = vmatmul.bf16.gmra.mxu0 %v492
  %v780 = vpop.f32.mrf.mxu0
  %v781 = vadd.f32 %v628, %v780
  %v782 = vpop.f32.mrf.mxu0
  %v783 = vadd.f32 %v630, %v782
  %784 = vmatmul.bf16.gmra.mxu0 %v495
  %v785 = vpop.f32.mrf.mxu0
  %v786 = vadd.f32 %v633, %v785
  %v787 = vpop.f32.mrf.mxu0
  %v788 = vadd.f32 %v635, %v787
  %789 = vmatmul.bf16.gmra.mxu0 %v498
  %v790 = vpop.f32.mrf.mxu0
  %v791 = vadd.f32 %v638, %v790
  %v792 = vpop.f32.mrf.mxu0
  %v793 = vadd.f32 %v640, %v792
  %794 = vmatmul.bf16.gmra.mxu0 %v501
  %v795 = vpop.f32.mrf.mxu0
  %v796 = vadd.f32 %v643, %v795
  %v797 = vpop.f32.mrf.mxu0
  %v798 = vadd.f32 %v645, %v797
  %799 = vmatmul.bf16.gmra.mxu0 %v504
  %v800 = vpop.f32.mrf.mxu0
  %v801 = vadd.f32 %v648, %v800
  %v802 = vpop.f32.mrf.mxu0
  %v803 = vadd.f32 %v650, %v802
  %804 = vmatmul.bf16.gmra.mxu0 %v507
  %v805 = vpop.f32.mrf.mxu0
  %v806 = vadd.f32 %v653, %v805
  %v807 = vpop.f32.mrf.mxu0
  %v808 = vadd.f32 %v655, %v807
  %809 = vmatmul.bf16.gmra.mxu0 %v510
  %v810 = vpop.f32.mrf.mxu0
  %v811 = vadd.f32 %v658, %v810
  %v812 = vpop.f32.mrf.mxu0
  %v813 = vadd.f32 %v660, %v812
  %814 = vmatmul.bf16.gmra.mxu0 %v513
  %v815 = vpop.f32.mrf.mxu0
  %v816 = vadd.f32 %v663, %v815
  %v817 = vpop.f32.mrf.mxu0
  %v818 = vadd.f32 %v665, %v817
  %819 = vmatmul.bf16.gmra.mxu0 %v516
  %v820 = vpop.f32.mrf.mxu0
  %v821 = vadd.f32 %v668, %v820
  %v822 = vpop.f32.mrf.mxu0
  %823 = vdwg.mxu0
  %v824 = vmax.f32 %v681, 0.0
  %v825 = vmax.f32 %v683, 0.0
  %v826 = vmax.f32 %v686, 0.0
  %v827 = vmax.f32 %v688, 0.0
  %v828 = vmax.f32 %v691, 0.0
  %v829 = vmax.f32 %v693, 0.0
  %v830 = vmax.f32 %v696, 0.0
  %v831 = vmax.f32 %v698, 0.0
  %v832 = vmax.f32 %v701, 0.0
  %v833 = vmax.f32 %v703, 0.0
  %v834 = vmax.f32 %v706, 0.0
  %v835 = vmax.f32 %v708, 0.0
  %v836 = vmax.f32 %v711, 0.0
  %v837 = vmax.f32 %v713, 0.0
  %v838 = vmax.f32 %v716, 0.0
  %v839 = vmax.f32 %v718, 0.0
  %v840 = vmax.f32 %v721, 0.0
  %v841 = vmax.f32 %v723, 0.0
  %v842 = vmax.f32 %v726, 0.0
  %v843 = vmax.f32 %v728, 0.0
  %v844 = vmax.f32 %v731, 0.0
  %v845 = vmax.f32 %v733, 0.0
  %v846 = vmax.f32 %v736, 0.0
  %v847 = vmax.f32 %v738, 0.0
  %v848 = vmax.f32 %v741, 0.0
  %v849 = vmax.f32 %v743, 0.0
  %v850 = vmax.f32 %v746, 0.0
  %v851 = vmax.f32 %v748, 0.0
  %v852 = vmax.f32 %v751, 0.0
  %v853 = vmax.f32 %v753, 0.0
  %v854 = vmax.f32 %v756, 0.0
  %v855 = vmax.f32 %v758, 0.0
  %v856 = vmax.f32 %v761, 0.0
  %v857 = vmax.f32 %v763, 0.0
  %v858 = vmax.f32 %v766, 0.0
  %v859 = vmax.f32 %v768, 0.0
  %v860 = vmax.f32 %v771, 0.0
  %v861 = vmax.f32 %v773, 0.0
  %v862 = vmax.f32 %v776, 0.0
  %v863 = vmax.f32 %v778, 0.0
  %v864 = vmax.f32 %v781, 0.0
  %v865 = vmax.f32 %v783, 0.0
  %v866 = vmax.f32 %v786, 0.0
  %v867 = vmax.f32 %v788, 0.0
  %v868 = vmax.f32 %v791, 0.0
  %v869 = vmax.f32 %v793, 0.0
  %v870 = vmax.f32 %v796, 0.0
  %v871 = vmax.f32 %v798, 0.0
  %v872 = vmax.f32 %v801, 0.0
  %v873 = vmax.f32 %v803, 0.0
  %v874 = vmax.f32 %v806, 0.0
  %v875 = vmax.f32 %v808, 0.0
  %v876 = vmax.f32 %v811, 0.0
  %v877 = vmax.f32 %v813, 0.0
  %v878 = vmax.f32 %v816, 0.0
  %v879 = vmax.f32 %v818, 0.0
  %v880 = vmax.f32 %v821, 0.0
  %v881 = vpack.c.bf16 %v824, %v824
  %v882 = vpack.c.bf16 %v825, %v825
  %v883 = vpack.c.bf16 %v826, %v826
  %v884 = vpack.c.bf16 %v827, %v827
  %v885 = vpack.c.bf16 %v828, %v828
  %v886 = vpack.c.bf16 %v829, %v829
  %v887 = vpack.c.bf16 %v830, %v830
  %v888 = vpack.c.bf16 %v831, %v831
  %v889 = vpack.c.bf16 %v832, %v832
  %v890 = vpack.c.bf16 %v833, %v833
  %v891 = vpack.c.bf16 %v834, %v834
  %v892 = vpack.c.bf16 %v835, %v835
  %v893 = vpack.c.bf16 %v836, %v836
  %v894 = vpack.c.bf16 %v837, %v837
  %v895 = vpack.c.bf16 %v838, %v838
  %v896 = vpack.c.bf16 %v839, %v839
  %v897 = vpack.c.bf16 %v840, %v840
  %v898 = vpack.c.bf16 %v841, %v841
  %v899 = vpack.c.bf16 %v842, %v842
  %v900 = vpack.c.bf16 %v843, %v843
  %v901 = vpack.c.bf16 %v844, %v844
  %v902 = vpack.c.bf16 %v845, %v845
  %v903 = vpack.c.bf16 %v846, %v846
  %v904 = vpack.c.bf16 %v847, %v847
  %v905 = vpack.c.bf16 %v848, %v848
  %v906 = vpack.c.bf16 %v849, %v849
  %v907 = vpack.c.bf16 %v850, %v850
  %v908 = vpack.c.bf16 %v851, %v851
  %v909 = vpack.c.bf16 %v852, %v852
  %v910 = vpack.c.bf16 %v853, %v853
  %v911 = vpack.c.bf16 %v854, %v854
  %v912 = vpack.c.bf16 %v855, %v855
  %v913 = vpack.c.bf16 %v856, %v856
  %v914 = vpack.c.bf16 %v857, %v857
  %v915 = vpack.c.bf16 %v858, %v858
  %v916 = vpack.c.bf16 %v859, %v859
  %v917 = vpack.c.bf16 %v860, %v860
  %v918 = vpack.c.bf16 %v861, %v861
  %v919 = vpack.c.bf16 %v862, %v862
  %v920 = vpack.c.bf16 %v863, %v863
  %v921 = vpack.c.bf16 %v864, %v864
  %v922 = vpack.c.bf16 %v865, %v865
  %v923 = vpack.c.bf16 %v866, %v866
  %v924 = vpack.c.bf16 %v867, %v867
  %v925 = vpack.c.bf16 %v868, %v868
  %v926 = vpack.c.bf16 %v869, %v869
  %v927 = vpack.c.bf16 %v870, %v870
  %v928 = vpack.c.bf16 %v871, %v871
  %v929 = vpack.c.bf16 %v872, %v872
  %v930 = vpack.c.bf16 %v873, %v873
  %v931 = vpack.c.bf16 %v874, %v874
  %v932 = vpack.c.bf16 %v875, %v875
  %v933 = vpack.c.bf16 %v876, %v876
  %v934 = vpack.c.bf16 %v877, %v877
  %v935 = vpack.c.bf16 %v878, %v878
  %v936 = vpack.c.bf16 %v879, %v879
  %v937 = vpack.c.bf16 %v880, %v880
  %938 = vst [vmem:[%s3] sm:$0xf] %v881
  %939 = vst [vmem:[%s3 + $0x4] sm:$0xf] %v882
  %940 = vst [vmem:[%s3 + $0x8] sm:$0xf] %v883
  %941 = vst [vmem:[%s3 + $0xc] sm:$0xf] %v884
  %942 = vst [vmem:[%s3 + $0x10] sm:$0xf] %v885
  %943 = vst [vmem:[%s3 + $0x14] sm:$0xf] %v886
  %944 = vst [vmem:[%s3 + $0x18] sm:$0xf] %v887
  %945 = vst [vmem:[%s3 + $0x1c] sm:$0xf] %v888
  %946 = vst [vmem:[%s3 + $0x20] sm:$0xf] %v889
  %947 = vst [vmem:[%s3 + $0x24] sm:$0xf] %v890
  %948 = vst [vmem:[%s3 + $0x28] sm:$0xf] %v891
  %949 = vst [vmem:[%s3 + $0x2c] sm:$0xf] %v892
  %950 = vst [vmem:[%s3 + $0x30] sm:$0xf] %v893
  %951 = vst [vmem:[%s3 + $0x34] sm:$0xf] %v894
  %952 = vst [vmem:[%s3 + $0x38] sm:$0xf] %v895
  %953 = vst [vmem:[%s3 + $0x3c] sm:$0xf] %v896
  %954 = vst [vmem:[%s3 + $0x40] sm:$0xf] %v897
  %955 = vst [vmem:[%s3 + $0x44] sm:$0xf] %v898
  %956 = vst [vmem:[%s3 + $0x48] sm:$0xf] %v899
  %957 = vst [vmem:[%s3 + $0x4c] sm:$0xf] %v900
  %958 = vst [vmem:[%s3 + $0x50] sm:$0xf] %v901
  %959 = vst [vmem:[%s3 + $0x54] sm:$0xf] %v902
  %960 = vst [vmem:[%s3 + $0x58] sm:$0xf] %v903
  %961 = vst [vmem:[%s3 + $0x5c] sm:$0xf] %v904
  %962 = vst [vmem:[%s3 + $0x60] sm:$0xf] %v905
  %963 = vst [vmem:[%s3 + $0x64] sm:$0xf] %v906
  %964 = vst [vmem:[%s3 + $0x68] sm:$0xf] %v907
  %965 = vst [vmem:[%s3 + $0x6c] sm:$0xf] %v908
  %966 = vst [vmem:[%s3 + $0x70] sm:$0xf] %v909
  %967 = vst [vmem:[%s3 + $0x74] sm:$0xf] %v910
  %968 = vst [vmem:[%s3 + $0x78] sm:$0xf] %v911
  %969 = vst [vmem:[%s3 + $0x7c] sm:$0xf] %v912
  %970 = vst [vmem:[%s3 + $0x80] sm:$0xf] %v913
  %971 = vst [vmem:[%s3 + $0x84] sm:$0xf] %v914
  %972 = vst [vmem:[%s3 + $0x88] sm:$0xf] %v915
  %973 = vst [vmem:[%s3 + $0x8c] sm:$0xf] %v916
  %974 = vst [vmem:[%s3 + $0x90] sm:$0xf] %v917
  %975 = vst [vmem:[%s3 + $0x94] sm:$0xf] %v918
  %976 = vst [vmem:[%s3 + $0x98] sm:$0xf] %v919
  %977 = vst [vmem:[%s3 + $0x9c] sm:$0xf] %v920
  %978 = vst [vmem:[%s3 + $0xa0] sm:$0xf] %v921
  %979 = vst [vmem:[%s3 + $0xa4] sm:$0xf] %v922
  %980 = vst [vmem:[%s3 + $0xa8] sm:$0xf] %v923
  %981 = vst [vmem:[%s3 + $0xac] sm:$0xf] %v924
  %982 = vst [vmem:[%s3 + $0xb0] sm:$0xf] %v925
  %983 = vst [vmem:[%s3 + $0xb4] sm:$0xf] %v926
  %984 = vst [vmem:[%s3 + $0xb8] sm:$0xf] %v927
  %985 = vst [vmem:[%s3 + $0xbc] sm:$0xf] %v928
  %986 = vst [vmem:[%s3 + $0xc0] sm:$0xf] %v929
  %987 = vst [vmem:[%s3 + $0xc4] sm:$0xf] %v930
  %988 = vst [vmem:[%s3 + $0xc8] sm:$0xf] %v931
  %989 = vst [vmem:[%s3 + $0xcc] sm:$0xf] %v932
  %990 = vst [vmem:[%s3 + $0xd0] sm:$0xf] %v933
  %991 = vst [vmem:[%s3 + $0xd4] sm:$0xf] %v934
  %992 = vst [vmem:[%s3 + $0xd8] sm:$0xf] %v935
  %993 = vst [vmem:[%s3 + $0xdc] sm:$0xf] %v936
  %994 = vst [vmem:[%s3 + $0xe0] sm:$0x1] %v937
  // Predicated region
  $region14: #{small_impala_cnn_forward.3} parent=0 // pred_check
    _
  $region15: #{small_impala_cnn_forward.3} parent=0 // pred_check_branch
    %996 = sbr.rel (0) target = $region17
  $region16: #{small_impala_cnn_forward.3} parent=0 // pred_region
    _
  $region17: #{small_impala_cnn_forward.3} parent=0 // pred_fallthru
    _
  // Predicated region
  $region18: #{small_impala_cnn_forward.3} parent=0 // pred_check
    _
  $region19: #{small_impala_cnn_forward.3} parent=0 // pred_check_branch
    %998 = sbr.rel (0) target = $region21
  $region20: #{small_impala_cnn_forward.3} parent=0 // pred_region
    _
  $region21: #{small_impala_cnn_forward.3} parent=0 // pred_fallthru
    _

// kernel: small_impala_cnn_forward.4
$region0: #{small_impala_cnn_forward.4}
  #allocation0 [shape = 'u32[]', space=smem, size = 0x4, offset = 0x4, fixed_abs, tag = 'smem constant byte address 0x4 - core index']
  #allocation1 [shape = 'u32[72,128]{1,0:T(1,128)}', space=vmem, size = 0x9000, scoped, tag = 'internal scratch']
  %s0 = inlined_call_operand.vmem [shape: bf16[72,2048], index: 0, kind: input, shape index: {}]
  %s1 = inlined_call_operand.vmem [shape: bf16[2048,128], index: 1, kind: input, shape index: {}]
  %s2 = inlined_call_operand.vmem [shape: f32[1,128], index: 2, kind: input, shape index: {}]
  %s3 = inlined_call_operand.vmem [shape: bf16[72,128], index: 3, kind: output, shape index: {}]
  %s4 = sld [smem:[#allocation0]]
  $region22: #{small_impala_cnn_forward.4} parent=0
    _
  %s6 = ssub.s32 1, %s4
  %s7 = scalar_select 0, %s6, %s4
  // Predicated region
  $region2: #{small_impala_cnn_forward.4} parent=0 // pred_check
    _
  $region3: #{small_impala_cnn_forward.4} parent=0 // pred_check_branch
    %9 = sbr.rel (0) target = $region5
  $region4: #{small_impala_cnn_forward.4} parent=0 // pred_region
    _
  $region5: #{small_impala_cnn_forward.4} parent=0 // pred_fallthru
    _
  // Predicated region
  $region6: #{small_impala_cnn_forward.4} parent=0 // pred_check
    _
  $region7: #{small_impala_cnn_forward.4} parent=0 // pred_check_branch
    %11 = sbr.rel (0) target = $region9
  $region8: #{small_impala_cnn_forward.4} parent=0 // pred_region
    _
  $region9: #{small_impala_cnn_forward.4} parent=0 // pred_fallthru
    _
  // Predicated region
  $region10: #{small_impala_cnn_forward.4} parent=0 // pred_check
    _
  $region11: #{small_impala_cnn_forward.4} parent=0 // pred_check_branch
    %13 = sbr.rel (0) target = $region13
  $region12: #{small_impala_cnn_forward.4} parent=0 // pred_region
    _
  $region13: #{small_impala_cnn_forward.4} parent=0 // pred_fallthru
    _
  %v14 = vld [vmem:[%s0] sm:$0xff]
  %v15 = vld [vmem:[%s0 + $0x8] sm:$0xff]
  %v16 = vld [vmem:[%s0 + $0x10] sm:$0xff]
  %v17 = vld [vmem:[%s0 + $0x18] sm:$0xff]
  %v18 = vld [vmem:[%s0 + $0x20] sm:$0xff]
  %v19 = vld [vmem:[%s0 + $0x28] sm:$0xff]
  %v20 = vld [vmem:[%s0 + $0x30] sm:$0xff]
  %v21 = vld [vmem:[%s0 + $0x38] sm:$0xff]
  %v22 = vld [vmem:[%s0 + $0x40] sm:$0xff]
  %v23 = vld [vmem:[%s0 + $0x48] sm:$0xff]
  %v24 = vld [vmem:[%s0 + $0x50] sm:$0xff]
  %v25 = vld [vmem:[%s0 + $0x58] sm:$0xff]
  %v26 = vld [vmem:[%s0 + $0x60] sm:$0xff]
  %v27 = vld [vmem:[%s0 + $0x68] sm:$0xff]
  %v28 = vld [vmem:[%s0 + $0x70] sm:$0xff]
  %v29 = vld [vmem:[%s0 + $0x78] sm:$0xff]
  %v30 = vld [vmem:[%s0 + $0x80] sm:$0xff]
  %v31 = vld [vmem:[%s0 + $0x88] sm:$0xff]
  %v32 = vld [vmem:[%s0 + $0x90] sm:$0xff]
  %v33 = vld [vmem:[%s0 + $0x98] sm:$0xff]
  %v34 = vld [vmem:[%s0 + $0xa0] sm:$0xff]
  %v35 = vld [vmem:[%s0 + $0xa8] sm:$0xff]
  %v36 = vld [vmem:[%s0 + $0xb0] sm:$0xff]
  %v37 = vld [vmem:[%s0 + $0xb8] sm:$0xff]
  %v38 = vld [vmem:[%s0 + $0xc0] sm:$0xff]
  %v39 = vld [vmem:[%s0 + $0xc8] sm:$0xff]
  %v40 = vld [vmem:[%s0 + $0xd0] sm:$0xff]
  %v41 = vld [vmem:[%s0 + $0xd8] sm:$0xff]
  %v42 = vld [vmem:[%s0 + $0xe0] sm:$0xff]
  %v43 = vld [vmem:[%s0 + $0xe8] sm:$0xff]
  %v44 = vld [vmem:[%s0 + $0xf0] sm:$0xff]
  %v45 = vld [vmem:[%s0 + $0xf8] sm:$0xff]
  %v46 = vld [vmem:[%s0 + $0x100] sm:$0xff]
  %v47 = vld [vmem:[%s0 + $0x108] sm:$0xff]
  %v48 = vld [vmem:[%s0 + $0x110] sm:$0xff]
  %v49 = vld [vmem:[%s0 + $0x118] sm:$0xff]
  %v50 = vld [vmem:[%s0 + $0x120] sm:$0xff]
  %v51 = vld [vmem:[%s0 + $0x128] sm:$0xff]
  %v52 = vld [vmem:[%s0 + $0x130] sm:$0xff]
  %v53 = vld [vmem:[%s0 + $0x138] sm:$0xff]
  %v54 = vld [vmem:[%s0 + $0x140] sm:$0xff]
  %v55 = vld [vmem:[%s0 + $0x148] sm:$0xff]
  %v56 = vld [vmem:[%s0 + $0x150] sm:$0xff]
  %v57 = vld [vmem:[%s0 + $0x158] sm:$0xff]
  %v58 = vld [vmem:[%s0 + $0x160] sm:$0xff]
  %v59 = vld [vmem:[%s0 + $0x168] sm:$0xff]
  %v60 = vld [vmem:[%s0 + $0x170] sm:$0xff]
  %v61 = vld [vmem:[%s0 + $0x178] sm:$0xff]
  %v62 = vld [vmem:[%s0 + $0x180] sm:$0xff]
  %v63 = vld [vmem:[%s0 + $0x188] sm:$0xff]
  %v64 = vld [vmem:[%s0 + $0x190] sm:$0xff]
  %v65 = vld [vmem:[%s0 + $0x198] sm:$0xff]
  %v66 = vld [vmem:[%s0 + $0x1a0] sm:$0xff]
  %v67 = vld [vmem:[%s0 + $0x1a8] sm:$0xff]
  %v68 = vld [vmem:[%s0 + $0x1b0] sm:$0xff]
  %v69 = vld [vmem:[%s0 + $0x1b8] sm:$0xff]
  %v70 = vld [vmem:[%s0 + $0x1c0] sm:$0xff]
  %v71 = vld [vmem:[%s0 + $0x1c8] sm:$0xff]
  %v72 = vld [vmem:[%s0 + $0x1d0] sm:$0xff]
  %v73 = vld [vmem:[%s0 + $0x1d8] sm:$0xff]
  %v74 = vld [vmem:[%s0 + $0x1e0] sm:$0xff]
  %v75 = vld [vmem:[%s0 + $0x1e8] sm:$0xff]
  %v76 = vld [vmem:[%s0 + $0x1f0] sm:$0xff]
  %v77 = vld [vmem:[%s0 + $0x1f8] sm:$0xff]
  %v78 = vld [vmem:[%s0 + $0x200] sm:$0xff]
  %v79 = vld [vmem:[%s0 + $0x208] sm:$0xff]
  %v80 = vld [vmem:[%s0 + $0x210] sm:$0xff]
  %v81 = vld [vmem:[%s0 + $0x218] sm:$0xff]
  %v82 = vld [vmem:[%s0 + $0x220] sm:$0xff]
  %v83 = vld [vmem:[%s0 + $0x228] sm:$0xff]
  %v84 = vld [vmem:[%s0 + $0x230] sm:$0xff]
  %v85 = vld [vmem:[%s0 + $0x238] sm:$0xff]
  %v86 = vld [vmem:[%s1] sm:$0xf]
  %v87 = vld [vmem:[%s1 + $0x4] sm:$0xf]
  %v88 = vld [vmem:[%s1 + $0x8] sm:$0xf]
  %v89 = vld [vmem:[%s1 + $0xc] sm:$0xf]
  %v90 = vld [vmem:[%s1 + $0x10] sm:$0xf]
  %v91 = vld [vmem:[%s1 + $0x14] sm:$0xf]
  %v92 = vld [vmem:[%s1 + $0x18] sm:$0xf]
  %v93 = vld [vmem:[%s1 + $0x1c] sm:$0xf]
  %v94 = vld [vmem:[%s1 + $0x20] sm:$0xf]
  %v95 = vld [vmem:[%s1 + $0x24] sm:$0xf]
  %v96 = vld [vmem:[%s1 + $0x28] sm:$0xf]
  %v97 = vld [vmem:[%s1 + $0x2c] sm:$0xf]
  %v98 = vld [vmem:[%s1 + $0x30] sm:$0xf]
  %v99 = vld [vmem:[%s1 + $0x34] sm:$0xf]
  %v100 = vld [vmem:[%s1 + $0x38] sm:$0xf]
  %v101 = vld [vmem:[%s1 + $0x3c] sm:$0xf]
  %v102 = vld [vmem:[%s1 + $0x40] sm:$0xf]
  %v103 = vld [vmem:[%s1 + $0x44] sm:$0xf]
  %v104 = vld [vmem:[%s1 + $0x48] sm:$0xf]
  %v105 = vld [vmem:[%s1 + $0x4c] sm:$0xf]
  %v106 = vld [vmem:[%s1 + $0x50] sm:$0xf]
  %v107 = vld [vmem:[%s1 + $0x54] sm:$0xf]
  %v108 = vld [vmem:[%s1 + $0x58] sm:$0xf]
  %v109 = vld [vmem:[%s1 + $0x5c] sm:$0xf]
  %v110 = vld [vmem:[%s1 + $0x60] sm:$0xf]
  %v111 = vld [vmem:[%s1 + $0x64] sm:$0xf]
  %v112 = vld [vmem:[%s1 + $0x68] sm:$0xf]
  %v113 = vld [vmem:[%s1 + $0x6c] sm:$0xf]
  %v114 = vld [vmem:[%s1 + $0x70] sm:$0xf]
  %v115 = vld [vmem:[%s1 + $0x74] sm:$0xf]
  %v116 = vld [vmem:[%s1 + $0x78] sm:$0xf]
  %v117 = vld [vmem:[%s1 + $0x7c] sm:$0xf]
  %v118 = vld [vmem:[%s1 + $0x80] sm:$0xf]
  %v119 = vld [vmem:[%s1 + $0x84] sm:$0xf]
  %v120 = vld [vmem:[%s1 + $0x88] sm:$0xf]
  %v121 = vld [vmem:[%s1 + $0x8c] sm:$0xf]
  %v122 = vld [vmem:[%s1 + $0x90] sm:$0xf]
  %v123 = vld [vmem:[%s1 + $0x94] sm:$0xf]
  %v124 = vld [vmem:[%s1 + $0x98] sm:$0xf]
  %v125 = vld [vmem:[%s1 + $0x9c] sm:$0xf]
  %v126 = vld [vmem:[%s1 + $0xa0] sm:$0xf]
  %v127 = vld [vmem:[%s1 + $0xa4] sm:$0xf]
  %v128 = vld [vmem:[%s1 + $0xa8] sm:$0xf]
  %v129 = vld [vmem:[%s1 + $0xac] sm:$0xf]
  %v130 = vld [vmem:[%s1 + $0xb0] sm:$0xf]
  %v131 = vld [vmem:[%s1 + $0xb4] sm:$0xf]
  %v132 = vld [vmem:[%s1 + $0xb8] sm:$0xf]
  %v133 = vld [vmem:[%s1 + $0xbc] sm:$0xf]
  %v134 = vld [vmem:[%s1 + $0xc0] sm:$0xf]
  %v135 = vld [vmem:[%s1 + $0xc4] sm:$0xf]
  %v136 = vld [vmem:[%s1 + $0xc8] sm:$0xf]
  %v137 = vld [vmem:[%s1 + $0xcc] sm:$0xf]
  %v138 = vld [vmem:[%s1 + $0xd0] sm:$0xf]
  %v139 = vld [vmem:[%s1 + $0xd4] sm:$0xf]
  %v140 = vld [vmem:[%s1 + $0xd8] sm:$0xf]
  %v141 = vld [vmem:[%s1 + $0xdc] sm:$0xf]
  %v142 = vld [vmem:[%s1 + $0xe0] sm:$0xf]
  %v143 = vld [vmem:[%s1 + $0xe4] sm:$0xf]
  %v144 = vld [vmem:[%s1 + $0xe8] sm:$0xf]
  %v145 = vld [vmem:[%s1 + $0xec] sm:$0xf]
  %v146 = vld [vmem:[%s1 + $0xf0] sm:$0xf]
  %v147 = vld [vmem:[%s1 + $0xf4] sm:$0xf]
  %v148 = vld [vmem:[%s1 + $0xf8] sm:$0xf]
  %v149 = vld [vmem:[%s1 + $0xfc] sm:$0xf]
  %v150 = vld [vmem:[%s1 + $0x100] sm:$0xf]
  %v151 = vld [vmem:[%s1 + $0x104] sm:$0xf]
  %v152 = vld [vmem:[%s1 + $0x108] sm:$0xf]
  %v153 = vld [vmem:[%s1 + $0x10c] sm:$0xf]
  %v154 = vld [vmem:[%s1 + $0x110] sm:$0xf]
  %v155 = vld [vmem:[%s1 + $0x114] sm:$0xf]
  %v156 = vld [vmem:[%s1 + $0x118] sm:$0xf]
  %v157 = vld [vmem:[%s1 + $0x11c] sm:$0xf]
  %v158 = vld [vmem:[%s1 + $0x120] sm:$0xf]
  %v159 = vld [vmem:[%s1 + $0x124] sm:$0xf]
  %v160 = vld [vmem:[%s1 + $0x128] sm:$0xf]
  %v161 = vld [vmem:[%s1 + $0x12c] sm:$0xf]
  %v162 = vld [vmem:[%s1 + $0x130] sm:$0xf]
  %v163 = vld [vmem:[%s1 + $0x134] sm:$0xf]
  %v164 = vld [vmem:[%s1 + $0x138] sm:$0xf]
  %v165 = vld [vmem:[%s1 + $0x13c] sm:$0xf]
  %v166 = vld [vmem:[%s1 + $0x140] sm:$0xf]
  %v167 = vld [vmem:[%s1 + $0x144] sm:$0xf]
  %v168 = vld [vmem:[%s1 + $0x148] sm:$0xf]
  %v169 = vld [vmem:[%s1 + $0x14c] sm:$0xf]
  %v170 = vld [vmem:[%s1 + $0x150] sm:$0xf]
  %v171 = vld [vmem:[%s1 + $0x154] sm:$0xf]
  %v172 = vld [vmem:[%s1 + $0x158] sm:$0xf]
  %v173 = vld [vmem:[%s1 + $0x15c] sm:$0xf]
  %v174 = vld [vmem:[%s1 + $0x160] sm:$0xf]
  %v175 = vld [vmem:[%s1 + $0x164] sm:$0xf]
  %v176 = vld [vmem:[%s1 + $0x168] sm:$0xf]
  %v177 = vld [vmem:[%s1 + $0x16c] sm:$0xf]
  %v178 = vld [vmem:[%s1 + $0x170] sm:$0xf]
  %v179 = vld [vmem:[%s1 + $0x174] sm:$0xf]
  %v180 = vld [vmem:[%s1 + $0x178] sm:$0xf]
  %v181 = vld [vmem:[%s1 + $0x17c] sm:$0xf]
  %v182 = vld [vmem:[%s1 + $0x180] sm:$0xf]
  %v183 = vld [vmem:[%s1 + $0x184] sm:$0xf]
  %v184 = vld [vmem:[%s1 + $0x188] sm:$0xf]
  %v185 = vld [vmem:[%s1 + $0x18c] sm:$0xf]
  %v186 = vld [vmem:[%s1 + $0x190] sm:$0xf]
  %v187 = vld [vmem:[%s1 + $0x194] sm:$0xf]
  %v188 = vld [vmem:[%s1 + $0x198] sm:$0xf]
  %v189 = vld [vmem:[%s1 + $0x19c] sm:$0xf]
  %v190 = vld [vmem:[%s1 + $0x1a0] sm:$0xf]
  %v191 = vld [vmem:[%s1 + $0x1a4] sm:$0xf]
  %v192 = vld [vmem:[%s1 + $0x1a8] sm:$0xf]
  %v193 = vld [vmem:[%s1 + $0x1ac] sm:$0xf]
  %v194 = vld [vmem:[%s1 + $0x1b0] sm:$0xf]
  %v195 = vld [vmem:[%s1 + $0x1b4] sm:$0xf]
  %v196 = vld [vmem:[%s1 + $0x1b8] sm:$0xf]
  %v197 = vld [vmem:[%s1 + $0x1bc] sm:$0xf]
  %v198 = vld [vmem:[%s1 + $0x1c0] sm:$0xf]
  %v199 = vld [vmem:[%s1 + $0x1c4] sm:$0xf]
  %v200 = vld [vmem:[%s1 + $0x1c8] sm:$0xf]
  %v201 = vld [vmem:[%s1 + $0x1cc] sm:$0xf]
  %v202 = vld [vmem:[%s1 + $0x1d0] sm:$0xf]
  %v203 = vld [vmem:[%s1 + $0x1d4] sm:$0xf]
  %v204 = vld [vmem:[%s1 + $0x1d8] sm:$0xf]
  %v205 = vld [vmem:[%s1 + $0x1dc] sm:$0xf]
  %v206 = vld [vmem:[%s1 + $0x1e0] sm:$0xf]
  %v207 = vld [vmem:[%s1 + $0x1e4] sm:$0xf]
  %v208 = vld [vmem:[%s1 + $0x1e8] sm:$0xf]
  %v209 = vld [vmem:[%s1 + $0x1ec] sm:$0xf]
  %v210 = vld [vmem:[%s1 + $0x1f0] sm:$0xf]
  %v211 = vld [vmem:[%s1 + $0x1f4] sm:$0xf]
  %v212 = vld [vmem:[%s1 + $0x1f8] sm:$0xf]
  %v213 = vld [vmem:[%s1 + $0x1fc] sm:$0xf]
  %v214 = vld [vmem:[%s1 + $0x200] sm:$0xf]
  %v215 = vld [vmem:[%s1 + $0x204] sm:$0xf]
  %v216 = vld [vmem:[%s1 + $0x208] sm:$0xf]
  %v217 = vld [vmem:[%s1 + $0x20c] sm:$0xf]
  %v218 = vld [vmem:[%s1 + $0x210] sm:$0xf]
  %v219 = vld [vmem:[%s1 + $0x214] sm:$0xf]
  %v220 = vld [vmem:[%s1 + $0x218] sm:$0xf]
  %v221 = vld [vmem:[%s1 + $0x21c] sm:$0xf]
  %v222 = vld [vmem:[%s1 + $0x220] sm:$0xf]
  %v223 = vld [vmem:[%s1 + $0x224] sm:$0xf]
  %v224 = vld [vmem:[%s1 + $0x228] sm:$0xf]
  %v225 = vld [vmem:[%s1 + $0x22c] sm:$0xf]
  %v226 = vld [vmem:[%s1 + $0x230] sm:$0xf]
  %v227 = vld [vmem:[%s1 + $0x234] sm:$0xf]
  %v228 = vld [vmem:[%s1 + $0x238] sm:$0xf]
  %v229 = vld [vmem:[%s1 + $0x23c] sm:$0xf]
  %v230 = vld [vmem:[%s1 + $0x240] sm:$0xf]
  %v231 = vld [vmem:[%s1 + $0x244] sm:$0xf]
  %v232 = vld [vmem:[%s1 + $0x248] sm:$0xf]
  %v233 = vld [vmem:[%s1 + $0x24c] sm:$0xf]
  %v234 = vld [vmem:[%s1 + $0x250] sm:$0xf]
  %v235 = vld [vmem:[%s1 + $0x254] sm:$0xf]
  %v236 = vld [vmem:[%s1 + $0x258] sm:$0xf]
  %v237 = vld [vmem:[%s1 + $0x25c] sm:$0xf]
  %v238 = vld [vmem:[%s1 + $0x260] sm:$0xf]
  %v239 = vld [vmem:[%s1 + $0x264] sm:$0xf]
  %v240 = vld [vmem:[%s1 + $0x268] sm:$0xf]
  %v241 = vld [vmem:[%s1 + $0x26c] sm:$0xf]
  %v242 = vld [vmem:[%s1 + $0x270] sm:$0xf]
  %v243 = vld [vmem:[%s1 + $0x274] sm:$0xf]
  %v244 = vld [vmem:[%s1 + $0x278] sm:$0xf]
  %v245 = vld [vmem:[%s1 + $0x27c] sm:$0xf]
  %v246 = vld [vmem:[%s1 + $0x280] sm:$0xf]
  %v247 = vld [vmem:[%s1 + $0x284] sm:$0xf]
  %v248 = vld [vmem:[%s1 + $0x288] sm:$0xf]
  %v249 = vld [vmem:[%s1 + $0x28c] sm:$0xf]
  %v250 = vld [vmem:[%s1 + $0x290] sm:$0xf]
  %v251 = vld [vmem:[%s1 + $0x294] sm:$0xf]
  %v252 = vld [vmem:[%s1 + $0x298] sm:$0xf]
  %v253 = vld [vmem:[%s1 + $0x29c] sm:$0xf]
  %v254 = vld [vmem:[%s1 + $0x2a0] sm:$0xf]
  %v255 = vld [vmem:[%s1 + $0x2a4] sm:$0xf]
  %v256 = vld [vmem:[%s1 + $0x2a8] sm:$0xf]
  %v257 = vld [vmem:[%s1 + $0x2ac] sm:$0xf]
  %v258 = vld [vmem:[%s1 + $0x2b0] sm:$0xf]
  %v259 = vld [vmem:[%s1 + $0x2b4] sm:$0xf]
  %v260 = vld [vmem:[%s1 + $0x2b8] sm:$0xf]
  %v261 = vld [vmem:[%s1 + $0x2bc] sm:$0xf]
  %v262 = vld [vmem:[%s1 + $0x2c0] sm:$0xf]
  %v263 = vld [vmem:[%s1 + $0x2c4] sm:$0xf]
  %v264 = vld [vmem:[%s1 + $0x2c8] sm:$0xf]
  %v265 = vld [vmem:[%s1 + $0x2cc] sm:$0xf]
  %v266 = vld [vmem:[%s1 + $0x2d0] sm:$0xf]
  %v267 = vld [vmem:[%s1 + $0x2d4] sm:$0xf]
  %v268 = vld [vmem:[%s1 + $0x2d8] sm:$0xf]
  %v269 = vld [vmem:[%s1 + $0x2dc] sm:$0xf]
  %v270 = vld [vmem:[%s1 + $0x2e0] sm:$0xf]
  %v271 = vld [vmem:[%s1 + $0x2e4] sm:$0xf]
  %v272 = vld [vmem:[%s1 + $0x2e8] sm:$0xf]
  %v273 = vld [vmem:[%s1 + $0x2ec] sm:$0xf]
  %v274 = vld [vmem:[%s1 + $0x2f0] sm:$0xf]
  %v275 = vld [vmem:[%s1 + $0x2f4] sm:$0xf]
  %v276 = vld [vmem:[%s1 + $0x2f8] sm:$0xf]
  %v277 = vld [vmem:[%s1 + $0x2fc] sm:$0xf]
  %v278 = vld [vmem:[%s1 + $0x300] sm:$0xf]
  %v279 = vld [vmem:[%s1 + $0x304] sm:$0xf]
  %v280 = vld [vmem:[%s1 + $0x308] sm:$0xf]
  %v281 = vld [vmem:[%s1 + $0x30c] sm:$0xf]
  %v282 = vld [vmem:[%s1 + $0x310] sm:$0xf]
  %v283 = vld [vmem:[%s1 + $0x314] sm:$0xf]
  %v284 = vld [vmem:[%s1 + $0x318] sm:$0xf]
  %v285 = vld [vmem:[%s1 + $0x31c] sm:$0xf]
  %v286 = vld [vmem:[%s1 + $0x320] sm:$0xf]
  %v287 = vld [vmem:[%s1 + $0x324] sm:$0xf]
  %v288 = vld [vmem:[%s1 + $0x328] sm:$0xf]
  %v289 = vld [vmem:[%s1 + $0x32c] sm:$0xf]
  %v290 = vld [vmem:[%s1 + $0x330] sm:$0xf]
  %v291 = vld [vmem:[%s1 + $0x334] sm:$0xf]
  %v292 = vld [vmem:[%s1 + $0x338] sm:$0xf]
  %v293 = vld [vmem:[%s1 + $0x33c] sm:$0xf]
  %v294 = vld [vmem:[%s1 + $0x340] sm:$0xf]
  %v295 = vld [vmem:[%s1 + $0x344] sm:$0xf]
  %v296 = vld [vmem:[%s1 + $0x348] sm:$0xf]
  %v297 = vld [vmem:[%s1 + $0x34c] sm:$0xf]
  %v298 = vld [vmem:[%s1 + $0x350] sm:$0xf]
  %v299 = vld [vmem:[%s1 + $0x354] sm:$0xf]
  %v300 = vld [vmem:[%s1 + $0x358] sm:$0xf]
  %v301 = vld [vmem:[%s1 + $0x35c] sm:$0xf]
  %v302 = vld [vmem:[%s1 + $0x360] sm:$0xf]
  %v303 = vld [vmem:[%s1 + $0x364] sm:$0xf]
  %v304 = vld [vmem:[%s1 + $0x368] sm:$0xf]
  %v305 = vld [vmem:[%s1 + $0x36c] sm:$0xf]
  %v306 = vld [vmem:[%s1 + $0x370] sm:$0xf]
  %v307 = vld [vmem:[%s1 + $0x374] sm:$0xf]
  %v308 = vld [vmem:[%s1 + $0x378] sm:$0xf]
  %v309 = vld [vmem:[%s1 + $0x37c] sm:$0xf]
  %v310 = vld [vmem:[%s1 + $0x380] sm:$0xf]
  %v311 = vld [vmem:[%s1 + $0x384] sm:$0xf]
  %v312 = vld [vmem:[%s1 + $0x388] sm:$0xf]
  %v313 = vld [vmem:[%s1 + $0x38c] sm:$0xf]
  %v314 = vld [vmem:[%s1 + $0x390] sm:$0xf]
  %v315 = vld [vmem:[%s1 + $0x394] sm:$0xf]
  %v316 = vld [vmem:[%s1 + $0x398] sm:$0xf]
  %v317 = vld [vmem:[%s1 + $0x39c] sm:$0xf]
  %v318 = vld [vmem:[%s1 + $0x3a0] sm:$0xf]
  %v319 = vld [vmem:[%s1 + $0x3a4] sm:$0xf]
  %v320 = vld [vmem:[%s1 + $0x3a8] sm:$0xf]
  %v321 = vld [vmem:[%s1 + $0x3ac] sm:$0xf]
  %v322 = vld [vmem:[%s1 + $0x3b0] sm:$0xf]
  %v323 = vld [vmem:[%s1 + $0x3b4] sm:$0xf]
  %v324 = vld [vmem:[%s1 + $0x3b8] sm:$0xf]
  %v325 = vld [vmem:[%s1 + $0x3bc] sm:$0xf]
  %v326 = vld [vmem:[%s1 + $0x3c0] sm:$0xf]
  %v327 = vld [vmem:[%s1 + $0x3c4] sm:$0xf]
  %v328 = vld [vmem:[%s1 + $0x3c8] sm:$0xf]
  %v329 = vld [vmem:[%s1 + $0x3cc] sm:$0xf]
  %v330 = vld [vmem:[%s1 + $0x3d0] sm:$0xf]
  %v331 = vld [vmem:[%s1 + $0x3d4] sm:$0xf]
  %v332 = vld [vmem:[%s1 + $0x3d8] sm:$0xf]
  %v333 = vld [vmem:[%s1 + $0x3dc] sm:$0xf]
  %v334 = vld [vmem:[%s1 + $0x3e0] sm:$0xf]
  %v335 = vld [vmem:[%s1 + $0x3e4] sm:$0xf]
  %v336 = vld [vmem:[%s1 + $0x3e8] sm:$0xf]
  %v337 = vld [vmem:[%s1 + $0x3ec] sm:$0xf]
  %v338 = vld [vmem:[%s1 + $0x3f0] sm:$0xf]
  %v339 = vld [vmem:[%s1 + $0x3f4] sm:$0xf]
  %v340 = vld [vmem:[%s1 + $0x3f8] sm:$0xf]
  %v341 = vld [vmem:[%s1 + $0x3fc] sm:$0xf]
  %v342 = vld [vmem:[%s2] sm:$0x1]
  %v344 = vperm.slane %v342, 0
  %v418 = vunpack.c.l.b16 %v14
  %v419 = vunpack.c.h.b16 %v14
  %v420 = vunpack.c.l.b16 %v15
  %v421 = vunpack.c.h.b16 %v15
  %v422 = vunpack.c.l.b16 %v16
  %v423 = vunpack.c.h.b16 %v16
  %v424 = vunpack.c.l.b16 %v17
  %v425 = vunpack.c.h.b16 %v17
  %v426 = vunpack.c.l.b16 %v18
  %v427 = vunpack.c.h.b16 %v18
  %v428 = vunpack.c.l.b16 %v19
  %v429 = vunpack.c.h.b16 %v19
  %v430 = vunpack.c.l.b16 %v20
  %v431 = vunpack.c.h.b16 %v20
  %v432 = vunpack.c.l.b16 %v21
  %v433 = vunpack.c.h.b16 %v21
  %v434 = vunpack.c.l.b16 %v22
  %v435 = vunpack.c.h.b16 %v22
  %v436 = vunpack.c.l.b16 %v23
  %v437 = vunpack.c.h.b16 %v23
  %v438 = vunpack.c.l.b16 %v24
  %v439 = vunpack.c.h.b16 %v24
  %v440 = vunpack.c.l.b16 %v25
  %v441 = vunpack.c.h.b16 %v25
  %v442 = vunpack.c.l.b16 %v26
  %v443 = vunpack.c.h.b16 %v26
  %v444 = vunpack.c.l.b16 %v27
  %v445 = vunpack.c.h.b16 %v27
  %v446 = vunpack.c.l.b16 %v28
  %v447 = vunpack.c.h.b16 %v28
  %v448 = vunpack.c.l.b16 %v29
  %v449 = vunpack.c.h.b16 %v29
  %v450 = vunpack.c.l.b16 %v30
  %v451 = vunpack.c.h.b16 %v30
  %v452 = vunpack.c.l.b16 %v31
  %v453 = vunpack.c.h.b16 %v31
  %v454 = vunpack.c.l.b16 %v32
  %v455 = vunpack.c.h.b16 %v32
  %v456 = vunpack.c.l.b16 %v33
  %v457 = vunpack.c.h.b16 %v33
  %v458 = vunpack.c.l.b16 %v34
  %v459 = vunpack.c.h.b16 %v34
  %v460 = vunpack.c.l.b16 %v35
  %v461 = vunpack.c.h.b16 %v35
  %v462 = vunpack.c.l.b16 %v36
  %v463 = vunpack.c.h.b16 %v36
  %v464 = vunpack.c.l.b16 %v37
  %v465 = vunpack.c.h.b16 %v37
  %v466 = vunpack.c.l.b16 %v38
  %v467 = vunpack.c.h.b16 %v38
  %v468 = vunpack.c.l.b16 %v39
  %v469 = vunpack.c.h.b16 %v39
  %v470 = vunpack.c.l.b16 %v40
  %v471 = vunpack.c.h.b16 %v40
  %v472 = vunpack.c.l.b16 %v41
  %v473 = vunpack.c.h.b16 %v41
  %v474 = vunpack.c.l.b16 %v42
  %v475 = vunpack.c.h.b16 %v42
  %v476 = vunpack.c.l.b16 %v43
  %v477 = vunpack.c.h.b16 %v43
  %v478 = vunpack.c.l.b16 %v44
  %v479 = vunpack.c.h.b16 %v44
  %v480 = vunpack.c.l.b16 %v45
  %v481 = vunpack.c.h.b16 %v45
  %v482 = vunpack.c.l.b16 %v46
  %v483 = vunpack.c.h.b16 %v46
  %v484 = vunpack.c.l.b16 %v47
  %v485 = vunpack.c.h.b16 %v47
  %v486 = vunpack.c.l.b16 %v48
  %v487 = vunpack.c.h.b16 %v48
  %v488 = vunpack.c.l.b16 %v49
  %v489 = vunpack.c.h.b16 %v49
  %v490 = vunpack.c.l.b16 %v50
  %v491 = vunpack.c.h.b16 %v50
  %v492 = vunpack.c.l.b16 %v51
  %v493 = vunpack.c.h.b16 %v51
  %v494 = vunpack.c.l.b16 %v52
  %v495 = vunpack.c.h.b16 %v52
  %v496 = vunpack.c.l.b16 %v53
  %v497 = vunpack.c.h.b16 %v53
  %v498 = vunpack.c.l.b16 %v54
  %v499 = vunpack.c.h.b16 %v54
  %v500 = vunpack.c.l.b16 %v55
  %v501 = vunpack.c.h.b16 %v55
  %v502 = vunpack.c.l.b16 %v56
  %v503 = vunpack.c.h.b16 %v56
  %v504 = vunpack.c.l.b16 %v57
  %v505 = vunpack.c.h.b16 %v57
  %v506 = vunpack.c.l.b16 %v58
  %v507 = vunpack.c.h.b16 %v58
  %v508 = vunpack.c.l.b16 %v59
  %v509 = vunpack.c.h.b16 %v59
  %v510 = vunpack.c.l.b16 %v60
  %v511 = vunpack.c.h.b16 %v60
  %v512 = vunpack.c.l.b16 %v61
  %v513 = vunpack.c.h.b16 %v61
  %v514 = vunpack.c.l.b16 %v62
  %v515 = vunpack.c.h.b16 %v62
  %v516 = vunpack.c.l.b16 %v63
  %v517 = vunpack.c.h.b16 %v63
  %v518 = vunpack.c.l.b16 %v64
  %v519 = vunpack.c.h.b16 %v64
  %v520 = vunpack.c.l.b16 %v65
  %v521 = vunpack.c.h.b16 %v65
  %v522 = vunpack.c.l.b16 %v66
  %v523 = vunpack.c.h.b16 %v66
  %v524 = vunpack.c.l.b16 %v67
  %v525 = vunpack.c.h.b16 %v67
  %v526 = vunpack.c.l.b16 %v68
  %v527 = vunpack.c.h.b16 %v68
  %v528 = vunpack.c.l.b16 %v69
  %v529 = vunpack.c.h.b16 %v69
  %v530 = vunpack.c.l.b16 %v70
  %v531 = vunpack.c.h.b16 %v70
  %v532 = vunpack.c.l.b16 %v71
  %v533 = vunpack.c.h.b16 %v71
  %v534 = vunpack.c.l.b16 %v72
  %v535 = vunpack.c.h.b16 %v72
  %v536 = vunpack.c.l.b16 %v73
  %v537 = vunpack.c.h.b16 %v73
  %v538 = vunpack.c.l.b16 %v74
  %v539 = vunpack.c.h.b16 %v74
  %v540 = vunpack.c.l.b16 %v75
  %v541 = vunpack.c.h.b16 %v75
  %v542 = vunpack.c.l.b16 %v76
  %v543 = vunpack.c.h.b16 %v76
  %v544 = vunpack.c.l.b16 %v77
  %v545 = vunpack.c.h.b16 %v77
  %v546 = vunpack.c.l.b16 %v78
  %v547 = vunpack.c.h.b16 %v78
  %v548 = vunpack.c.l.b16 %v79
  %v549 = vunpack.c.h.b16 %v79
  %v550 = vunpack.c.l.b16 %v80
  %v551 = vunpack.c.h.b16 %v80
  %v552 = vunpack.c.l.b16 %v81
  %v553 = vunpack.c.h.b16 %v81
  %v554 = vunpack.c.l.b16 %v82
  %v555 = vunpack.c.h.b16 %v82
  %v556 = vunpack.c.l.b16 %v83
  %v557 = vunpack.c.h.b16 %v83
  %v558 = vunpack.c.l.b16 %v84
  %v559 = vunpack.c.h.b16 %v84
  %v560 = vunpack.c.l.b16 %v85
  %v561 = vunpack.c.h.b16 %v85
  %v562 = vpack.c.b16 %v434, %v418
  %v563 = vpack.c.b16 %v435, %v419
  %v564 = vpack.c.b16 %v436, %v420
  %v565 = vpack.c.b16 %v437, %v421
  %v566 = vpack.c.b16 %v438, %v422
  %v567 = vpack.c.b16 %v439, %v423
  %v568 = vpack.c.b16 %v440, %v424
  %v569 = vpack.c.b16 %v441, %v425
  %v570 = vpack.c.b16 %v442, %v426
  %v571 = vpack.c.b16 %v443, %v427
  %v572 = vpack.c.b16 %v444, %v428
  %v573 = vpack.c.b16 %v445, %v429
  %v574 = vpack.c.b16 %v446, %v430
  %v575 = vpack.c.b16 %v447, %v431
  %v576 = vpack.c.b16 %v448, %v432
  %v577 = vpack.c.b16 %v449, %v433
  %v578 = vpack.c.b16 %v466, %v450
  %v579 = vpack.c.b16 %v467, %v451
  %v580 = vpack.c.b16 %v468, %v452
  %v581 = vpack.c.b16 %v469, %v453
  %v582 = vpack.c.b16 %v470, %v454
  %v583 = vpack.c.b16 %v471, %v455
  %v584 = vpack.c.b16 %v472, %v456
  %v585 = vpack.c.b16 %v473, %v457
  %v586 = vpack.c.b16 %v474, %v458
  %v587 = vpack.c.b16 %v475, %v459
  %v588 = vpack.c.b16 %v476, %v460
  %v589 = vpack.c.b16 %v477, %v461
  %v590 = vpack.c.b16 %v478, %v462
  %v591 = vpack.c.b16 %v479, %v463
  %v592 = vpack.c.b16 %v480, %v464
  %v593 = vpack.c.b16 %v481, %v465
  %v594 = vpack.c.b16 %v498, %v482
  %v595 = vpack.c.b16 %v499, %v483
  %v596 = vpack.c.b16 %v500, %v484
  %v597 = vpack.c.b16 %v501, %v485
  %v598 = vpack.c.b16 %v502, %v486
  %v599 = vpack.c.b16 %v503, %v487
  %v600 = vpack.c.b16 %v504, %v488
  %v601 = vpack.c.b16 %v505, %v489
  %v602 = vpack.c.b16 %v506, %v490
  %v603 = vpack.c.b16 %v507, %v491
  %v604 = vpack.c.b16 %v508, %v492
  %v605 = vpack.c.b16 %v509, %v493
  %v606 = vpack.c.b16 %v510, %v494
  %v607 = vpack.c.b16 %v511, %v495
  %v608 = vpack.c.b16 %v512, %v496
  %v609 = vpack.c.b16 %v513, %v497
  %v610 = vpack.c.b16 %v530, %v514
  %v611 = vpack.c.b16 %v531, %v515
  %v612 = vpack.c.b16 %v532, %v516
  %v613 = vpack.c.b16 %v533, %v517
  %v614 = vpack.c.b16 %v534, %v518
  %v615 = vpack.c.b16 %v535, %v519
  %v616 = vpack.c.b16 %v536, %v520
  %v617 = vpack.c.b16 %v537, %v521
  %v618 = vpack.c.b16 %v538, %v522
  %v619 = vpack.c.b16 %v539, %v523
  %v620 = vpack.c.b16 %v540, %v524
  %v621 = vpack.c.b16 %v541, %v525
  %v622 = vpack.c.b16 %v542, %v526
  %v623 = vpack.c.b16 %v543, %v527
  %v624 = vpack.c.b16 %v544, %v528
  %v625 = vpack.c.b16 %v545, %v529
  %v626 = vpack.c.b16 %v546, %v546
  %v627 = vpack.c.b16 %v547, %v547
  %v628 = vpack.c.b16 %v548, %v548
  %v629 = vpack.c.b16 %v549, %v549
  %v630 = vpack.c.b16 %v550, %v550
  %v631 = vpack.c.b16 %v551, %v551
  %v632 = vpack.c.b16 %v552, %v552
  %v633 = vpack.c.b16 %v553, %v553
  %v634 = vpack.c.b16 %v554, %v554
  %v635 = vpack.c.b16 %v555, %v555
  %v636 = vpack.c.b16 %v556, %v556
  %v637 = vpack.c.b16 %v557, %v557
  %v638 = vpack.c.b16 %v558, %v558
  %v639 = vpack.c.b16 %v559, %v559
  %v640 = vpack.c.b16 %v560, %v560
  %v641 = vpack.c.b16 %v561, %v561
  %v978 = vunpack.c.l.b16 %v86
  %v979 = vunpack.c.l.b16 %v87
  %v980 = vunpack.c.l.b16 %v88
  %v981 = vunpack.c.l.b16 %v89
  %v982 = vunpack.c.l.b16 %v90
  %v983 = vunpack.c.l.b16 %v91
  %v984 = vunpack.c.l.b16 %v92
  %v985 = vunpack.c.l.b16 %v93
  %v986 = vunpack.c.l.b16 %v94
  %v987 = vunpack.c.l.b16 %v95
  %v988 = vunpack.c.l.b16 %v96
  %v989 = vunpack.c.l.b16 %v97
  %v990 = vunpack.c.l.b16 %v98
  %v991 = vunpack.c.l.b16 %v99
  %v992 = vunpack.c.l.b16 %v100
  %v993 = vunpack.c.l.b16 %v101
  %v994 = vunpack.c.l.b16 %v102
  %v995 = vunpack.c.l.b16 %v103
  %v996 = vunpack.c.l.b16 %v104
  %v997 = vunpack.c.l.b16 %v105
  %v998 = vunpack.c.l.b16 %v106
  %v999 = vunpack.c.l.b16 %v107
  %v1000 = vunpack.c.l.b16 %v108
  %v1001 = vunpack.c.l.b16 %v109
  %v1002 = vunpack.c.l.b16 %v110
  %v1003 = vunpack.c.l.b16 %v111
  %v1004 = vunpack.c.l.b16 %v112
  %v1005 = vunpack.c.l.b16 %v113
  %v1006 = vunpack.c.l.b16 %v114
  %v1007 = vunpack.c.l.b16 %v115
  %v1008 = vunpack.c.l.b16 %v116
  %v1009 = vunpack.c.l.b16 %v117
  %v1010 = vunpack.c.l.b16 %v118
  %v1011 = vunpack.c.l.b16 %v119
  %v1012 = vunpack.c.l.b16 %v120
  %v1013 = vunpack.c.l.b16 %v121
  %v1014 = vunpack.c.l.b16 %v122
  %v1015 = vunpack.c.l.b16 %v123
  %v1016 = vunpack.c.l.b16 %v124
  %v1017 = vunpack.c.l.b16 %v125
  %v1018 = vunpack.c.l.b16 %v126
  %v1019 = vunpack.c.l.b16 %v127
  %v1020 = vunpack.c.l.b16 %v128
  %v1021 = vunpack.c.l.b16 %v129
  %v1022 = vunpack.c.l.b16 %v130
  %v1023 = vunpack.c.l.b16 %v131
  %v1024 = vunpack.c.l.b16 %v132
  %v1025 = vunpack.c.l.b16 %v133
  %v1026 = vunpack.c.l.b16 %v134
  %v1027 = vunpack.c.l.b16 %v135
  %v1028 = vunpack.c.l.b16 %v136
  %v1029 = vunpack.c.l.b16 %v137
  %v1030 = vunpack.c.l.b16 %v138
  %v1031 = vunpack.c.l.b16 %v139
  %v1032 = vunpack.c.l.b16 %v140
  %v1033 = vunpack.c.l.b16 %v141
  %v1034 = vunpack.c.l.b16 %v142
  %v1035 = vunpack.c.l.b16 %v143
  %v1036 = vunpack.c.l.b16 %v144
  %v1037 = vunpack.c.l.b16 %v145
  %v1038 = vunpack.c.l.b16 %v146
  %v1039 = vunpack.c.l.b16 %v147
  %v1040 = vunpack.c.l.b16 %v148
  %v1041 = vunpack.c.l.b16 %v149
  %v1042 = vunpack.c.l.b16 %v150
  %v1043 = vunpack.c.l.b16 %v151
  %v1044 = vunpack.c.l.b16 %v152
  %v1045 = vunpack.c.l.b16 %v153
  %v1046 = vunpack.c.l.b16 %v154
  %v1047 = vunpack.c.l.b16 %v155
  %v1048 = vunpack.c.l.b16 %v156
  %v1049 = vunpack.c.l.b16 %v157
  %v1050 = vunpack.c.l.b16 %v158
  %v1051 = vunpack.c.l.b16 %v159
  %v1052 = vunpack.c.l.b16 %v160
  %v1053 = vunpack.c.l.b16 %v161
  %v1054 = vunpack.c.l.b16 %v162
  %v1055 = vunpack.c.l.b16 %v163
  %v1056 = vunpack.c.l.b16 %v164
  %v1057 = vunpack.c.l.b16 %v165
  %v1058 = vunpack.c.l.b16 %v166
  %v1059 = vunpack.c.l.b16 %v167
  %v1060 = vunpack.c.l.b16 %v168
  %v1061 = vunpack.c.l.b16 %v169
  %v1062 = vunpack.c.l.b16 %v170
  %v1063 = vunpack.c.l.b16 %v171
  %v1064 = vunpack.c.l.b16 %v172
  %v1065 = vunpack.c.l.b16 %v173
  %v1066 = vunpack.c.l.b16 %v174
  %v1067 = vunpack.c.l.b16 %v175
  %v1068 = vunpack.c.l.b16 %v176
  %v1069 = vunpack.c.l.b16 %v177
  %v1070 = vunpack.c.l.b16 %v178
  %v1071 = vunpack.c.l.b16 %v179
  %v1072 = vunpack.c.l.b16 %v180
  %v1073 = vunpack.c.l.b16 %v181
  %v1074 = vunpack.c.l.b16 %v182
  %v1075 = vunpack.c.l.b16 %v183
  %v1076 = vunpack.c.l.b16 %v184
  %v1077 = vunpack.c.l.b16 %v185
  %v1078 = vunpack.c.l.b16 %v186
  %v1079 = vunpack.c.l.b16 %v187
  %v1080 = vunpack.c.l.b16 %v188
  %v1081 = vunpack.c.l.b16 %v189
  %v1082 = vunpack.c.l.b16 %v190
  %v1083 = vunpack.c.l.b16 %v191
  %v1084 = vunpack.c.l.b16 %v192
  %v1085 = vunpack.c.l.b16 %v193
  %v1086 = vunpack.c.l.b16 %v194
  %v1087 = vunpack.c.l.b16 %v195
  %v1088 = vunpack.c.l.b16 %v196
  %v1089 = vunpack.c.l.b16 %v197
  %v1090 = vunpack.c.l.b16 %v198
  %v1091 = vunpack.c.l.b16 %v199
  %v1092 = vunpack.c.l.b16 %v200
  %v1093 = vunpack.c.l.b16 %v201
  %v1094 = vunpack.c.l.b16 %v202
  %v1095 = vunpack.c.l.b16 %v203
  %v1096 = vunpack.c.l.b16 %v204
  %v1097 = vunpack.c.l.b16 %v205
  %v1098 = vunpack.c.l.b16 %v206
  %v1099 = vunpack.c.l.b16 %v207
  %v1100 = vunpack.c.l.b16 %v208
  %v1101 = vunpack.c.l.b16 %v209
  %v1102 = vunpack.c.l.b16 %v210
  %v1103 = vunpack.c.l.b16 %v211
  %v1104 = vunpack.c.l.b16 %v212
  %v1105 = vunpack.c.l.b16 %v213
  %v1106 = vunpack.c.l.b16 %v214
  %v1107 = vunpack.c.l.b16 %v215
  %v1108 = vunpack.c.l.b16 %v216
  %v1109 = vunpack.c.l.b16 %v217
  %v1110 = vunpack.c.l.b16 %v218
  %v1111 = vunpack.c.l.b16 %v219
  %v1112 = vunpack.c.l.b16 %v220
  %v1113 = vunpack.c.l.b16 %v221
  %v1114 = vunpack.c.l.b16 %v222
  %v1115 = vunpack.c.l.b16 %v223
  %v1116 = vunpack.c.l.b16 %v224
  %v1117 = vunpack.c.l.b16 %v225
  %v1118 = vunpack.c.l.b16 %v226
  %v1119 = vunpack.c.l.b16 %v227
  %v1120 = vunpack.c.l.b16 %v228
  %v1121 = vunpack.c.l.b16 %v229
  %v1122 = vunpack.c.l.b16 %v230
  %v1123 = vunpack.c.l.b16 %v231
  %v1124 = vunpack.c.l.b16 %v232
  %v1125 = vunpack.c.l.b16 %v233
  %v1126 = vunpack.c.l.b16 %v234
  %v1127 = vunpack.c.l.b16 %v235
  %v1128 = vunpack.c.l.b16 %v236
  %v1129 = vunpack.c.l.b16 %v237
  %v1130 = vunpack.c.l.b16 %v238
  %v1131 = vunpack.c.l.b16 %v239
  %v1132 = vunpack.c.l.b16 %v240
  %v1133 = vunpack.c.l.b16 %v241
  %v1134 = vunpack.c.l.b16 %v242
  %v1135 = vunpack.c.l.b16 %v243
  %v1136 = vunpack.c.l.b16 %v244
  %v1137 = vunpack.c.l.b16 %v245
  %v1138 = vunpack.c.l.b16 %v246
  %v1139 = vunpack.c.l.b16 %v247
  %v1140 = vunpack.c.l.b16 %v248
  %v1141 = vunpack.c.l.b16 %v249
  %v1142 = vunpack.c.l.b16 %v250
  %v1143 = vunpack.c.l.b16 %v251
  %v1144 = vunpack.c.l.b16 %v252
  %v1145 = vunpack.c.l.b16 %v253
  %v1146 = vunpack.c.l.b16 %v254
  %v1147 = vunpack.c.l.b16 %v255
  %v1148 = vunpack.c.l.b16 %v256
  %v1149 = vunpack.c.l.b16 %v257
  %v1150 = vunpack.c.l.b16 %v258
  %v1151 = vunpack.c.l.b16 %v259
  %v1152 = vunpack.c.l.b16 %v260
  %v1153 = vunpack.c.l.b16 %v261
  %v1154 = vunpack.c.l.b16 %v262
  %v1155 = vunpack.c.l.b16 %v263
  %v1156 = vunpack.c.l.b16 %v264
  %v1157 = vunpack.c.l.b16 %v265
  %v1158 = vunpack.c.l.b16 %v266
  %v1159 = vunpack.c.l.b16 %v267
  %v1160 = vunpack.c.l.b16 %v268
  %v1161 = vunpack.c.l.b16 %v269
  %v1162 = vunpack.c.l.b16 %v270
  %v1163 = vunpack.c.l.b16 %v271
  %v1164 = vunpack.c.l.b16 %v272
  %v1165 = vunpack.c.l.b16 %v273
  %v1166 = vunpack.c.l.b16 %v274
  %v1167 = vunpack.c.l.b16 %v275
  %v1168 = vunpack.c.l.b16 %v276
  %v1169 = vunpack.c.l.b16 %v277
  %v1170 = vunpack.c.l.b16 %v278
  %v1171 = vunpack.c.l.b16 %v279
  %v1172 = vunpack.c.l.b16 %v280
  %v1173 = vunpack.c.l.b16 %v281
  %v1174 = vunpack.c.l.b16 %v282
  %v1175 = vunpack.c.l.b16 %v283
  %v1176 = vunpack.c.l.b16 %v284
  %v1177 = vunpack.c.l.b16 %v285
  %v1178 = vunpack.c.l.b16 %v286
  %v1179 = vunpack.c.l.b16 %v287
  %v1180 = vunpack.c.l.b16 %v288
  %v1181 = vunpack.c.l.b16 %v289
  %v1182 = vunpack.c.l.b16 %v290
  %v1183 = vunpack.c.l.b16 %v291
  %v1184 = vunpack.c.l.b16 %v292
  %v1185 = vunpack.c.l.b16 %v293
  %v1186 = vunpack.c.l.b16 %v294
  %v1187 = vunpack.c.l.b16 %v295
  %v1188 = vunpack.c.l.b16 %v296
  %v1189 = vunpack.c.l.b16 %v297
  %v1190 = vunpack.c.l.b16 %v298
  %v1191 = vunpack.c.l.b16 %v299
  %v1192 = vunpack.c.l.b16 %v300
  %v1193 = vunpack.c.l.b16 %v301
  %v1194 = vunpack.c.l.b16 %v302
  %v1195 = vunpack.c.l.b16 %v303
  %v1196 = vunpack.c.l.b16 %v304
  %v1197 = vunpack.c.l.b16 %v305
  %v1198 = vunpack.c.l.b16 %v306
  %v1199 = vunpack.c.l.b16 %v307
  %v1200 = vunpack.c.l.b16 %v308
  %v1201 = vunpack.c.l.b16 %v309
  %v1202 = vunpack.c.l.b16 %v310
  %v1203 = vunpack.c.l.b16 %v311
  %v1204 = vunpack.c.l.b16 %v312
  %v1205 = vunpack.c.l.b16 %v313
  %v1206 = vunpack.c.l.b16 %v314
  %v1207 = vunpack.c.l.b16 %v315
  %v1208 = vunpack.c.l.b16 %v316
  %v1209 = vunpack.c.l.b16 %v317
  %v1210 = vunpack.c.l.b16 %v318
  %v1211 = vunpack.c.l.b16 %v319
  %v1212 = vunpack.c.l.b16 %v320
  %v1213 = vunpack.c.l.b16 %v321
  %v1214 = vunpack.c.l.b16 %v322
  %v1215 = vunpack.c.l.b16 %v323
  %v1216 = vunpack.c.l.b16 %v324
  %v1217 = vunpack.c.l.b16 %v325
  %v1218 = vunpack.c.l.b16 %v326
  %v1219 = vunpack.c.l.b16 %v327
  %v1220 = vunpack.c.l.b16 %v328
  %v1221 = vunpack.c.l.b16 %v329
  %v1222 = vunpack.c.l.b16 %v330
  %v1223 = vunpack.c.l.b16 %v331
  %v1224 = vunpack.c.l.b16 %v332
  %v1225 = vunpack.c.l.b16 %v333
  %v1226 = vunpack.c.l.b16 %v334
  %v1227 = vunpack.c.l.b16 %v335
  %v1228 = vunpack.c.l.b16 %v336
  %v1229 = vunpack.c.l.b16 %v337
  %v1230 = vunpack.c.l.b16 %v338
  %v1231 = vunpack.c.l.b16 %v339
  %v1232 = vunpack.c.l.b16 %v340
  %v1233 = vunpack.c.l.b16 %v341
  %v1234 = vpack.c.b16 %v979, %v978
  %v1235 = vpack.c.b16 %v981, %v980
  %v1236 = vpack.c.b16 %v983, %v982
  %v1237 = vpack.c.b16 %v985, %v984
  %v1238 = vpack.c.b16 %v987, %v986
  %v1239 = vpack.c.b16 %v989, %v988
  %v1240 = vpack.c.b16 %v991, %v990
  %v1241 = vpack.c.b16 %v993, %v992
  %v1242 = vpack.c.b16 %v995, %v994
  %v1243 = vpack.c.b16 %v997, %v996
  %v1244 = vpack.c.b16 %v999, %v998
  %v1245 = vpack.c.b16 %v1001, %v1000
  %v1246 = vpack.c.b16 %v1003, %v1002
  %v1247 = vpack.c.b16 %v1005, %v1004
  %v1248 = vpack.c.b16 %v1007, %v1006
  %v1249 = vpack.c.b16 %v1009, %v1008
  %v1250 = vpack.c.b16 %v1011, %v1010
  %v1251 = vpack.c.b16 %v1013, %v1012
  %v1252 = vpack.c.b16 %v1015, %v1014
  %v1253 = vpack.c.b16 %v1017, %v1016
  %v1254 = vpack.c.b16 %v1019, %v1018
  %v1255 = vpack.c.b16 %v1021, %v1020
  %v1256 = vpack.c.b16 %v1023, %v1022
  %v1257 = vpack.c.b16 %v1025, %v1024
  %v1258 = vpack.c.b16 %v1027, %v1026
  %v1259 = vpack.c.b16 %v1029, %v1028
  %v1260 = vpack.c.b16 %v1031, %v1030
  %v1261 = vpack.c.b16 %v1033, %v1032
  %v1262 = vpack.c.b16 %v1035, %v1034
  %v1263 = vpack.c.b16 %v1037, %v1036
  %v1264 = vpack.c.b16 %v1039, %v1038
  %v1265 = vpack.c.b16 %v1041, %v1040
  %v1266 = vpack.c.b16 %v1043, %v1042
  %v1267 = vpack.c.b16 %v1045, %v1044
  %v1268 = vpack.c.b16 %v1047, %v1046
  %v1269 = vpack.c.b16 %v1049, %v1048
  %v1270 = vpack.c.b16 %v1051, %v1050
  %v1271 = vpack.c.b16 %v1053, %v1052
  %v1272 = vpack.c.b16 %v1055, %v1054
  %v1273 = vpack.c.b16 %v1057, %v1056
  %v1274 = vpack.c.b16 %v1059, %v1058
  %v1275 = vpack.c.b16 %v1061, %v1060
  %v1276 = vpack.c.b16 %v1063, %v1062
  %v1277 = vpack.c.b16 %v1065, %v1064
  %v1278 = vpack.c.b16 %v1067, %v1066
  %v1279 = vpack.c.b16 %v1069, %v1068
  %v1280 = vpack.c.b16 %v1071, %v1070
  %v1281 = vpack.c.b16 %v1073, %v1072
  %v1282 = vpack.c.b16 %v1075, %v1074
  %v1283 = vpack.c.b16 %v1077, %v1076
  %v1284 = vpack.c.b16 %v1079, %v1078
  %v1285 = vpack.c.b16 %v1081, %v1080
  %v1286 = vpack.c.b16 %v1083, %v1082
  %v1287 = vpack.c.b16 %v1085, %v1084
  %v1288 = vpack.c.b16 %v1087, %v1086
  %v1289 = vpack.c.b16 %v1089, %v1088
  %v1290 = vpack.c.b16 %v1091, %v1090
  %v1291 = vpack.c.b16 %v1093, %v1092
  %v1292 = vpack.c.b16 %v1095, %v1094
  %v1293 = vpack.c.b16 %v1097, %v1096
  %v1294 = vpack.c.b16 %v1099, %v1098
  %v1295 = vpack.c.b16 %v1101, %v1100
  %v1296 = vpack.c.b16 %v1103, %v1102
  %v1297 = vpack.c.b16 %v1105, %v1104
  %v1298 = vpack.c.b16 %v1107, %v1106
  %v1299 = vpack.c.b16 %v1109, %v1108
  %v1300 = vpack.c.b16 %v1111, %v1110
  %v1301 = vpack.c.b16 %v1113, %v1112
  %v1302 = vpack.c.b16 %v1115, %v1114
  %v1303 = vpack.c.b16 %v1117, %v1116
  %v1304 = vpack.c.b16 %v1119, %v1118
  %v1305 = vpack.c.b16 %v1121, %v1120
  %v1306 = vpack.c.b16 %v1123, %v1122
  %v1307 = vpack.c.b16 %v1125, %v1124
  %v1308 = vpack.c.b16 %v1127, %v1126
  %v1309 = vpack.c.b16 %v1129, %v1128
  %v1310 = vpack.c.b16 %v1131, %v1130
  %v1311 = vpack.c.b16 %v1133, %v1132
  %v1312 = vpack.c.b16 %v1135, %v1134
  %v1313 = vpack.c.b16 %v1137, %v1136
  %v1314 = vpack.c.b16 %v1139, %v1138
  %v1315 = vpack.c.b16 %v1141, %v1140
  %v1316 = vpack.c.b16 %v1143, %v1142
  %v1317 = vpack.c.b16 %v1145, %v1144
  %v1318 = vpack.c.b16 %v1147, %v1146
  %v1319 = vpack.c.b16 %v1149, %v1148
  %v1320 = vpack.c.b16 %v1151, %v1150
  %v1321 = vpack.c.b16 %v1153, %v1152
  %v1322 = vpack.c.b16 %v1155, %v1154
  %v1323 = vpack.c.b16 %v1157, %v1156
  %v1324 = vpack.c.b16 %v1159, %v1158
  %v1325 = vpack.c.b16 %v1161, %v1160
  %v1326 = vpack.c.b16 %v1163, %v1162
  %v1327 = vpack.c.b16 %v1165, %v1164
  %v1328 = vpack.c.b16 %v1167, %v1166
  %v1329 = vpack.c.b16 %v1169, %v1168
  %v1330 = vpack.c.b16 %v1171, %v1170
  %v1331 = vpack.c.b16 %v1173, %v1172
  %v1332 = vpack.c.b16 %v1175, %v1174
  %v1333 = vpack.c.b16 %v1177, %v1176
  %v1334 = vpack.c.b16 %v1179, %v1178
  %v1335 = vpack.c.b16 %v1181, %v1180
  %v1336 = vpack.c.b16 %v1183, %v1182
  %v1337 = vpack.c.b16 %v1185, %v1184
  %v1338 = vpack.c.b16 %v1187, %v1186
  %v1339 = vpack.c.b16 %v1189, %v1188
  %v1340 = vpack.c.b16 %v1191, %v1190
  %v1341 = vpack.c.b16 %v1193, %v1192
  %v1342 = vpack.c.b16 %v1195, %v1194
  %v1343 = vpack.c.b16 %v1197, %v1196
  %v1344 = vpack.c.b16 %v1199, %v1198
  %v1345 = vpack.c.b16 %v1201, %v1200
  %v1346 = vpack.c.b16 %v1203, %v1202
  %v1347 = vpack.c.b16 %v1205, %v1204
  %v1348 = vpack.c.b16 %v1207, %v1206
  %v1349 = vpack.c.b16 %v1209, %v1208
  %v1350 = vpack.c.b16 %v1211, %v1210
  %v1351 = vpack.c.b16 %v1213, %v1212
  %v1352 = vpack.c.b16 %v1215, %v1214
  %v1353 = vpack.c.b16 %v1217, %v1216
  %v1354 = vpack.c.b16 %v1219, %v1218
  %v1355 = vpack.c.b16 %v1221, %v1220
  %v1356 = vpack.c.b16 %v1223, %v1222
  %v1357 = vpack.c.b16 %v1225, %v1224
  %v1358 = vpack.c.b16 %v1227, %v1226
  %v1359 = vpack.c.b16 %v1229, %v1228
  %v1360 = vpack.c.b16 %v1231, %v1230
  %v1361 = vpack.c.b16 %v1233, %v1232
  %1490 = vmatpush.bf16.msra.mxu0 %v1241
  %1491 = vmatpush.bf16.msra.mxu0 %v1240
  %1492 = vmatpush.bf16.msra.mxu0 %v1239
  %1493 = vmatpush.bf16.msra.mxu0 %v1238
  %1494 = vmatpush.bf16.msra.mxu0 %v1237
  %1495 = vmatpush.bf16.msra.mxu0 %v1236
  %1496 = vmatpush.bf16.msra.mxu0 %v1235
  %1497 = vmatpush.bf16.msra.mxu0 %v1234
  %1498 = vmatmul.bf16.gmra.mxu0 %v562
  %v1499 = vpop.f32.mrf.mxu0
  %v1500 = vadd.f32 %v344, %v1499
  %v1501 = vpop.f32.mrf.mxu0
  %v1502 = vadd.f32 %v344, %v1501
  %1503 = vmatmul.bf16.gmra.mxu0 %v578
  %v1504 = vpop.f32.mrf.mxu0
  %v1505 = vadd.f32 %v344, %v1504
  %v1506 = vpop.f32.mrf.mxu0
  %v1507 = vadd.f32 %v344, %v1506
  %1508 = vmatmul.bf16.gmra.mxu0 %v594
  %v1509 = vpop.f32.mrf.mxu0
  %v1510 = vadd.f32 %v344, %v1509
  %v1511 = vpop.f32.mrf.mxu0
  %v1512 = vadd.f32 %v344, %v1511
  %1513 = vmatmul.bf16.gmra.mxu0 %v610
  %v1514 = vpop.f32.mrf.mxu0
  %v1515 = vadd.f32 %v344, %v1514
  %v1516 = vpop.f32.mrf.mxu0
  %v1517 = vadd.f32 %v344, %v1516
  %1518 = vmatmul.bf16.gmra.mxu0 %v626
  %v1519 = vpop.f32.mrf.mxu0
  %v1520 = vadd.f32 %v344, %v1519
  %v1521 = vpop.f32.mrf.mxu0
  %1522 = vdwg.mxu0
  %1523 = vmatpush.bf16.msra.mxu0 %v1249
  %1524 = vmatpush.bf16.msra.mxu0 %v1248
  %1525 = vmatpush.bf16.msra.mxu0 %v1247
  %1526 = vmatpush.bf16.msra.mxu0 %v1246
  %1527 = vmatpush.bf16.msra.mxu0 %v1245
  %1528 = vmatpush.bf16.msra.mxu0 %v1244
  %1529 = vmatpush.bf16.msra.mxu0 %v1243
  %1530 = vmatpush.bf16.msra.mxu0 %v1242
  %1531 = vmatmul.bf16.gmra.mxu0 %v563
  %v1532 = vpop.f32.mrf.mxu0
  %v1533 = vadd.f32 %v1500, %v1532
  %v1534 = vpop.f32.mrf.mxu0
  %v1535 = vadd.f32 %v1502, %v1534
  %1536 = vmatmul.bf16.gmra.mxu0 %v579
  %v1537 = vpop.f32.mrf.mxu0
  %v1538 = vadd.f32 %v1505, %v1537
  %v1539 = vpop.f32.mrf.mxu0
  %v1540 = vadd.f32 %v1507, %v1539
  %1541 = vmatmul.bf16.gmra.mxu0 %v595
  %v1542 = vpop.f32.mrf.mxu0
  %v1543 = vadd.f32 %v1510, %v1542
  %v1544 = vpop.f32.mrf.mxu0
  %v1545 = vadd.f32 %v1512, %v1544
  %1546 = vmatmul.bf16.gmra.mxu0 %v611
  %v1547 = vpop.f32.mrf.mxu0
  %v1548 = vadd.f32 %v1515, %v1547
  %v1549 = vpop.f32.mrf.mxu0
  %v1550 = vadd.f32 %v1517, %v1549
  %1551 = vmatmul.bf16.gmra.mxu0 %v627
  %v1552 = vpop.f32.mrf.mxu0
  %v1553 = vadd.f32 %v1520, %v1552
  %v1554 = vpop.f32.mrf.mxu0
  %1555 = vdwg.mxu0
  %1556 = vmatpush.bf16.msra.mxu0 %v1257
  %1557 = vmatpush.bf16.msra.mxu0 %v1256
  %1558 = vmatpush.bf16.msra.mxu0 %v1255
  %1559 = vmatpush.bf16.msra.mxu0 %v1254
  %1560 = vmatpush.bf16.msra.mxu0 %v1253
  %1561 = vmatpush.bf16.msra.mxu0 %v1252
  %1562 = vmatpush.bf16.msra.mxu0 %v1251
  %1563 = vmatpush.bf16.msra.mxu0 %v1250
  %1564 = vmatmul.bf16.gmra.mxu0 %v564
  %v1565 = vpop.f32.mrf.mxu0
  %v1566 = vadd.f32 %v1533, %v1565
  %v1567 = vpop.f32.mrf.mxu0
  %v1568 = vadd.f32 %v1535, %v1567
  %1569 = vmatmul.bf16.gmra.mxu0 %v580
  %v1570 = vpop.f32.mrf.mxu0
  %v1571 = vadd.f32 %v1538, %v1570
  %v1572 = vpop.f32.mrf.mxu0
  %v1573 = vadd.f32 %v1540, %v1572
  %1574 = vmatmul.bf16.gmra.mxu0 %v596
  %v1575 = vpop.f32.mrf.mxu0
  %v1576 = vadd.f32 %v1543, %v1575
  %v1577 = vpop.f32.mrf.mxu0
  %v1578 = vadd.f32 %v1545, %v1577
  %1579 = vmatmul.bf16.gmra.mxu0 %v612
  %v1580 = vpop.f32.mrf.mxu0
  %v1581 = vadd.f32 %v1548, %v1580
  %v1582 = vpop.f32.mrf.mxu0
  %v1583 = vadd.f32 %v1550, %v1582
  %1584 = vmatmul.bf16.gmra.mxu0 %v628
  %v1585 = vpop.f32.mrf.mxu0
  %v1586 = vadd.f32 %v1553, %v1585
  %v1587 = vpop.f32.mrf.mxu0
  %1588 = vdwg.mxu0
  %1589 = vmatpush.bf16.msra.mxu0 %v1265
  %1590 = vmatpush.bf16.msra.mxu0 %v1264
  %1591 = vmatpush.bf16.msra.mxu0 %v1263
  %1592 = vmatpush.bf16.msra.mxu0 %v1262
  %1593 = vmatpush.bf16.msra.mxu0 %v1261
  %1594 = vmatpush.bf16.msra.mxu0 %v1260
  %1595 = vmatpush.bf16.msra.mxu0 %v1259
  %1596 = vmatpush.bf16.msra.mxu0 %v1258
  %1597 = vmatmul.bf16.gmra.mxu0 %v565
  %v1598 = vpop.f32.mrf.mxu0
  %v1599 = vadd.f32 %v1566, %v1598
  %v1600 = vpop.f32.mrf.mxu0
  %v1601 = vadd.f32 %v1568, %v1600
  %1602 = vmatmul.bf16.gmra.mxu0 %v581
  %v1603 = vpop.f32.mrf.mxu0
  %v1604 = vadd.f32 %v1571, %v1603
  %v1605 = vpop.f32.mrf.mxu0
  %v1606 = vadd.f32 %v1573, %v1605
  %1607 = vmatmul.bf16.gmra.mxu0 %v597
  %v1608 = vpop.f32.mrf.mxu0
  %v1609 = vadd.f32 %v1576, %v1608
  %v1610 = vpop.f32.mrf.mxu0
  %v1611 = vadd.f32 %v1578, %v1610
  %1612 = vmatmul.bf16.gmra.mxu0 %v613
  %v1613 = vpop.f32.mrf.mxu0
  %v1614 = vadd.f32 %v1581, %v1613
  %v1615 = vpop.f32.mrf.mxu0
  %v1616 = vadd.f32 %v1583, %v1615
  %1617 = vmatmul.bf16.gmra.mxu0 %v629
  %v1618 = vpop.f32.mrf.mxu0
  %v1619 = vadd.f32 %v1586, %v1618
  %v1620 = vpop.f32.mrf.mxu0
  %1621 = vdwg.mxu0
  %1622 = vmatpush.bf16.msra.mxu0 %v1273
  %1623 = vmatpush.bf16.msra.mxu0 %v1272
  %1624 = vmatpush.bf16.msra.mxu0 %v1271
  %1625 = vmatpush.bf16.msra.mxu0 %v1270
  %1626 = vmatpush.bf16.msra.mxu0 %v1269
  %1627 = vmatpush.bf16.msra.mxu0 %v1268
  %1628 = vmatpush.bf16.msra.mxu0 %v1267
  %1629 = vmatpush.bf16.msra.mxu0 %v1266
  %1630 = vmatmul.bf16.gmra.mxu0 %v566
  %v1631 = vpop.f32.mrf.mxu0
  %v1632 = vadd.f32 %v1599, %v1631
  %v1633 = vpop.f32.mrf.mxu0
  %v1634 = vadd.f32 %v1601, %v1633
  %1635 = vmatmul.bf16.gmra.mxu0 %v582
  %v1636 = vpop.f32.mrf.mxu0
  %v1637 = vadd.f32 %v1604, %v1636
  %v1638 = vpop.f32.mrf.mxu0
  %v1639 = vadd.f32 %v1606, %v1638
  %1640 = vmatmul.bf16.gmra.mxu0 %v598
  %v1641 = vpop.f32.mrf.mxu0
  %v1642 = vadd.f32 %v1609, %v1641
  %v1643 = vpop.f32.mrf.mxu0
  %v1644 = vadd.f32 %v1611, %v1643
  %1645 = vmatmul.bf16.gmra.mxu0 %v614
  %v1646 = vpop.f32.mrf.mxu0
  %v1647 = vadd.f32 %v1614, %v1646
  %v1648 = vpop.f32.mrf.mxu0
  %v1649 = vadd.f32 %v1616, %v1648
  %1650 = vmatmul.bf16.gmra.mxu0 %v630
  %v1651 = vpop.f32.mrf.mxu0
  %v1652 = vadd.f32 %v1619, %v1651
  %v1653 = vpop.f32.mrf.mxu0
  %1654 = vdwg.mxu0
  %1655 = vmatpush.bf16.msra.mxu0 %v1281
  %1656 = vmatpush.bf16.msra.mxu0 %v1280
  %1657 = vmatpush.bf16.msra.mxu0 %v1279
  %1658 = vmatpush.bf16.msra.mxu0 %v1278
  %1659 = vmatpush.bf16.msra.mxu0 %v1277
  %1660 = vmatpush.bf16.msra.mxu0 %v1276
  %1661 = vmatpush.bf16.msra.mxu0 %v1275
  %1662 = vmatpush.bf16.msra.mxu0 %v1274
  %1663 = vmatmul.bf16.gmra.mxu0 %v567
  %v1664 = vpop.f32.mrf.mxu0
  %v1665 = vadd.f32 %v1632, %v1664
  %v1666 = vpop.f32.mrf.mxu0
  %v1667 = vadd.f32 %v1634, %v1666
  %1668 = vmatmul.bf16.gmra.mxu0 %v583
  %v1669 = vpop.f32.mrf.mxu0
  %v1670 = vadd.f32 %v1637, %v1669
  %v1671 = vpop.f32.mrf.mxu0
  %v1672 = vadd.f32 %v1639, %v1671
  %1673 = vmatmul.bf16.gmra.mxu0 %v599
  %v1674 = vpop.f32.mrf.mxu0
  %v1675 = vadd.f32 %v1642, %v1674
  %v1676 = vpop.f32.mrf.mxu0
  %v1677 = vadd.f32 %v1644, %v1676
  %1678 = vmatmul.bf16.gmra.mxu0 %v615
  %v1679 = vpop.f32.mrf.mxu0
  %v1680 = vadd.f32 %v1647, %v1679
  %v1681 = vpop.f32.mrf.mxu0
  %v1682 = vadd.f32 %v1649, %v1681
  %1683 = vmatmul.bf16.gmra.mxu0 %v631
  %v1684 = vpop.f32.mrf.mxu0
  %v1685 = vadd.f32 %v1652, %v1684
  %v1686 = vpop.f32.mrf.mxu0
  %1687 = vdwg.mxu0
  %1688 = vmatpush.bf16.msra.mxu0 %v1289
  %1689 = vmatpush.bf16.msra.mxu0 %v1288
  %1690 = vmatpush.bf16.msra.mxu0 %v1287
  %1691 = vmatpush.bf16.msra.mxu0 %v1286
  %1692 = vmatpush.bf16.msra.mxu0 %v1285
  %1693 = vmatpush.bf16.msra.mxu0 %v1284
  %1694 = vmatpush.bf16.msra.mxu0 %v1283
  %1695 = vmatpush.bf16.msra.mxu0 %v1282
  %1696 = vmatmul.bf16.gmra.mxu0 %v568
  %v1697 = vpop.f32.mrf.mxu0
  %v1698 = vadd.f32 %v1665, %v1697
  %v1699 = vpop.f32.mrf.mxu0
  %v1700 = vadd.f32 %v1667, %v1699
  %1701 = vmatmul.bf16.gmra.mxu0 %v584
  %v1702 = vpop.f32.mrf.mxu0
  %v1703 = vadd.f32 %v1670, %v1702
  %v1704 = vpop.f32.mrf.mxu0
  %v1705 = vadd.f32 %v1672, %v1704
  %1706 = vmatmul.bf16.gmra.mxu0 %v600
  %v1707 = vpop.f32.mrf.mxu0
  %v1708 = vadd.f32 %v1675, %v1707
  %v1709 = vpop.f32.mrf.mxu0
  %v1710 = vadd.f32 %v1677, %v1709
  %1711 = vmatmul.bf16.gmra.mxu0 %v616
  %v1712 = vpop.f32.mrf.mxu0
  %v1713 = vadd.f32 %v1680, %v1712
  %v1714 = vpop.f32.mrf.mxu0
  %v1715 = vadd.f32 %v1682, %v1714
  %1716 = vmatmul.bf16.gmra.mxu0 %v632
  %v1717 = vpop.f32.mrf.mxu0
  %v1718 = vadd.f32 %v1685, %v1717
  %v1719 = vpop.f32.mrf.mxu0
  %1720 = vdwg.mxu0
  %1721 = vmatpush.bf16.msra.mxu0 %v1297
  %1722 = vmatpush.bf16.msra.mxu0 %v1296
  %1723 = vmatpush.bf16.msra.mxu0 %v1295
  %1724 = vmatpush.bf16.msra.mxu0 %v1294
  %1725 = vmatpush.bf16.msra.mxu0 %v1293
  %1726 = vmatpush.bf16.msra.mxu0 %v1292
  %1727 = vmatpush.bf16.msra.mxu0 %v1291
  %1728 = vmatpush.bf16.msra.mxu0 %v1290
  %1729 = vmatmul.bf16.gmra.mxu0 %v569
  %v1730 = vpop.f32.mrf.mxu0
  %v1731 = vadd.f32 %v1698, %v1730
  %v1732 = vpop.f32.mrf.mxu0
  %v1733 = vadd.f32 %v1700, %v1732
  %1734 = vmatmul.bf16.gmra.mxu0 %v585
  %v1735 = vpop.f32.mrf.mxu0
  %v1736 = vadd.f32 %v1703, %v1735
  %v1737 = vpop.f32.mrf.mxu0
  %v1738 = vadd.f32 %v1705, %v1737
  %1739 = vmatmul.bf16.gmra.mxu0 %v601
  %v1740 = vpop.f32.mrf.mxu0
  %v1741 = vadd.f32 %v1708, %v1740
  %v1742 = vpop.f32.mrf.mxu0
  %v1743 = vadd.f32 %v1710, %v1742
  %1744 = vmatmul.bf16.gmra.mxu0 %v617
  %v1745 = vpop.f32.mrf.mxu0
  %v1746 = vadd.f32 %v1713, %v1745
  %v1747 = vpop.f32.mrf.mxu0
  %v1748 = vadd.f32 %v1715, %v1747
  %1749 = vmatmul.bf16.gmra.mxu0 %v633
  %v1750 = vpop.f32.mrf.mxu0
  %v1751 = vadd.f32 %v1718, %v1750
  %v1752 = vpop.f32.mrf.mxu0
  %1753 = vdwg.mxu0
  %1754 = vmatpush.bf16.msra.mxu0 %v1305
  %1755 = vmatpush.bf16.msra.mxu0 %v1304
  %1756 = vmatpush.bf16.msra.mxu0 %v1303
  %1757 = vmatpush.bf16.msra.mxu0 %v1302
  %1758 = vmatpush.bf16.msra.mxu0 %v1301
  %1759 = vmatpush.bf16.msra.mxu0 %v1300
  %1760 = vmatpush.bf16.msra.mxu0 %v1299
  %1761 = vmatpush.bf16.msra.mxu0 %v1298
  %1762 = vmatmul.bf16.gmra.mxu0 %v570
  %v1763 = vpop.f32.mrf.mxu0
  %v1764 = vadd.f32 %v1731, %v1763
  %v1765 = vpop.f32.mrf.mxu0
  %v1766 = vadd.f32 %v1733, %v1765
  %1767 = vmatmul.bf16.gmra.mxu0 %v586
  %v1768 = vpop.f32.mrf.mxu0
  %v1769 = vadd.f32 %v1736, %v1768
  %v1770 = vpop.f32.mrf.mxu0
  %v1771 = vadd.f32 %v1738, %v1770
  %1772 = vmatmul.bf16.gmra.mxu0 %v602
  %v1773 = vpop.f32.mrf.mxu0
  %v1774 = vadd.f32 %v1741, %v1773
  %v1775 = vpop.f32.mrf.mxu0
  %v1776 = vadd.f32 %v1743, %v1775
  %1777 = vmatmul.bf16.gmra.mxu0 %v618
  %v1778 = vpop.f32.mrf.mxu0
  %v1779 = vadd.f32 %v1746, %v1778
  %v1780 = vpop.f32.mrf.mxu0
  %v1781 = vadd.f32 %v1748, %v1780
  %1782 = vmatmul.bf16.gmra.mxu0 %v634
  %v1783 = vpop.f32.mrf.mxu0
  %v1784 = vadd.f32 %v1751, %v1783
  %v1785 = vpop.f32.mrf.mxu0
  %1786 = vdwg.mxu0
  %1787 = vmatpush.bf16.msra.mxu0 %v1313
  %1788 = vmatpush.bf16.msra.mxu0 %v1312
  %1789 = vmatpush.bf16.msra.mxu0 %v1311
  %1790 = vmatpush.bf16.msra.mxu0 %v1310
  %1791 = vmatpush.bf16.msra.mxu0 %v1309
  %1792 = vmatpush.bf16.msra.mxu0 %v1308
  %1793 = vmatpush.bf16.msra.mxu0 %v1307
  %1794 = vmatpush.bf16.msra.mxu0 %v1306
  %1795 = vmatmul.bf16.gmra.mxu0 %v571
  %v1796 = vpop.f32.mrf.mxu0
  %v1797 = vadd.f32 %v1764, %v1796
  %v1798 = vpop.f32.mrf.mxu0
  %v1799 = vadd.f32 %v1766, %v1798
  %1800 = vmatmul.bf16.gmra.mxu0 %v587
  %v1801 = vpop.f32.mrf.mxu0
  %v1802 = vadd.f32 %v1769, %v1801
  %v1803 = vpop.f32.mrf.mxu0
  %v1804 = vadd.f32 %v1771, %v1803
  %1805 = vmatmul.bf16.gmra.mxu0 %v603
  %v1806 = vpop.f32.mrf.mxu0
  %v1807 = vadd.f32 %v1774, %v1806
  %v1808 = vpop.f32.mrf.mxu0
  %v1809 = vadd.f32 %v1776, %v1808
  %1810 = vmatmul.bf16.gmra.mxu0 %v619
  %v1811 = vpop.f32.mrf.mxu0
  %v1812 = vadd.f32 %v1779, %v1811
  %v1813 = vpop.f32.mrf.mxu0
  %v1814 = vadd.f32 %v1781, %v1813
  %1815 = vmatmul.bf16.gmra.mxu0 %v635
  %v1816 = vpop.f32.mrf.mxu0
  %v1817 = vadd.f32 %v1784, %v1816
  %v1818 = vpop.f32.mrf.mxu0
  %1819 = vdwg.mxu0
  %1820 = vmatpush.bf16.msra.mxu0 %v1321
  %1821 = vmatpush.bf16.msra.mxu0 %v1320
  %1822 = vmatpush.bf16.msra.mxu0 %v1319
  %1823 = vmatpush.bf16.msra.mxu0 %v1318
  %1824 = vmatpush.bf16.msra.mxu0 %v1317
  %1825 = vmatpush.bf16.msra.mxu0 %v1316
  %1826 = vmatpush.bf16.msra.mxu0 %v1315
  %1827 = vmatpush.bf16.msra.mxu0 %v1314
  %1828 = vmatmul.bf16.gmra.mxu0 %v572
  %v1829 = vpop.f32.mrf.mxu0
  %v1830 = vadd.f32 %v1797, %v1829
  %v1831 = vpop.f32.mrf.mxu0
  %v1832 = vadd.f32 %v1799, %v1831
  %1833 = vmatmul.bf16.gmra.mxu0 %v588
  %v1834 = vpop.f32.mrf.mxu0
  %v1835 = vadd.f32 %v1802, %v1834
  %v1836 = vpop.f32.mrf.mxu0
  %v1837 = vadd.f32 %v1804, %v1836
  %1838 = vmatmul.bf16.gmra.mxu0 %v604
  %v1839 = vpop.f32.mrf.mxu0
  %v1840 = vadd.f32 %v1807, %v1839
  %v1841 = vpop.f32.mrf.mxu0
  %v1842 = vadd.f32 %v1809, %v1841
  %1843 = vmatmul.bf16.gmra.mxu0 %v620
  %v1844 = vpop.f32.mrf.mxu0
  %v1845 = vadd.f32 %v1812, %v1844
  %v1846 = vpop.f32.mrf.mxu0
  %v1847 = vadd.f32 %v1814, %v1846
  %1848 = vmatmul.bf16.gmra.mxu0 %v636
  %v1849 = vpop.f32.mrf.mxu0
  %v1850 = vadd.f32 %v1817, %v1849
  %v1851 = vpop.f32.mrf.mxu0
  %1852 = vdwg.mxu0
  %1853 = vmatpush.bf16.msra.mxu0 %v1329
  %1854 = vmatpush.bf16.msra.mxu0 %v1328
  %1855 = vmatpush.bf16.msra.mxu0 %v1327
  %1856 = vmatpush.bf16.msra.mxu0 %v1326
  %1857 = vmatpush.bf16.msra.mxu0 %v1325
  %1858 = vmatpush.bf16.msra.mxu0 %v1324
  %1859 = vmatpush.bf16.msra.mxu0 %v1323
  %1860 = vmatpush.bf16.msra.mxu0 %v1322
  %1861 = vmatmul.bf16.gmra.mxu0 %v573
  %v1862 = vpop.f32.mrf.mxu0
  %v1863 = vadd.f32 %v1830, %v1862
  %v1864 = vpop.f32.mrf.mxu0
  %v1865 = vadd.f32 %v1832, %v1864
  %1866 = vmatmul.bf16.gmra.mxu0 %v589
  %v1867 = vpop.f32.mrf.mxu0
  %v1868 = vadd.f32 %v1835, %v1867
  %v1869 = vpop.f32.mrf.mxu0
  %v1870 = vadd.f32 %v1837, %v1869
  %1871 = vmatmul.bf16.gmra.mxu0 %v605
  %v1872 = vpop.f32.mrf.mxu0
  %v1873 = vadd.f32 %v1840, %v1872
  %v1874 = vpop.f32.mrf.mxu0
  %v1875 = vadd.f32 %v1842, %v1874
  %1876 = vmatmul.bf16.gmra.mxu0 %v621
  %v1877 = vpop.f32.mrf.mxu0
  %v1878 = vadd.f32 %v1845, %v1877
  %v1879 = vpop.f32.mrf.mxu0
  %v1880 = vadd.f32 %v1847, %v1879
  %1881 = vmatmul.bf16.gmra.mxu0 %v637
  %v1882 = vpop.f32.mrf.mxu0
  %v1883 = vadd.f32 %v1850, %v1882
  %v1884 = vpop.f32.mrf.mxu0
  %1885 = vdwg.mxu0
  %1886 = vmatpush.bf16.msra.mxu0 %v1337
  %1887 = vmatpush.bf16.msra.mxu0 %v1336
  %1888 = vmatpush.bf16.msra.mxu0 %v1335
  %1889 = vmatpush.bf16.msra.mxu0 %v1334
  %1890 = vmatpush.bf16.msra.mxu0 %v1333
  %1891 = vmatpush.bf16.msra.mxu0 %v1332
  %1892 = vmatpush.bf16.msra.mxu0 %v1331
  %1893 = vmatpush.bf16.msra.mxu0 %v1330
  %1894 = vmatmul.bf16.gmra.mxu0 %v574
  %v1895 = vpop.f32.mrf.mxu0
  %v1896 = vadd.f32 %v1863, %v1895
  %v1897 = vpop.f32.mrf.mxu0
  %v1898 = vadd.f32 %v1865, %v1897
  %1899 = vmatmul.bf16.gmra.mxu0 %v590
  %v1900 = vpop.f32.mrf.mxu0
  %v1901 = vadd.f32 %v1868, %v1900
  %v1902 = vpop.f32.mrf.mxu0
  %v1903 = vadd.f32 %v1870, %v1902
  %1904 = vmatmul.bf16.gmra.mxu0 %v606
  %v1905 = vpop.f32.mrf.mxu0
  %v1906 = vadd.f32 %v1873, %v1905
  %v1907 = vpop.f32.mrf.mxu0
  %v1908 = vadd.f32 %v1875, %v1907
  %1909 = vmatmul.bf16.gmra.mxu0 %v622
  %v1910 = vpop.f32.mrf.mxu0
  %v1911 = vadd.f32 %v1878, %v1910
  %v1912 = vpop.f32.mrf.mxu0
  %v1913 = vadd.f32 %v1880, %v1912
  %1914 = vmatmul.bf16.gmra.mxu0 %v638
  %v1915 = vpop.f32.mrf.mxu0
  %v1916 = vadd.f32 %v1883, %v1915
  %v1917 = vpop.f32.mrf.mxu0
  %1918 = vdwg.mxu0
  %1919 = vmatpush.bf16.msra.mxu0 %v1345
  %1920 = vmatpush.bf16.msra.mxu0 %v1344
  %1921 = vmatpush.bf16.msra.mxu0 %v1343
  %1922 = vmatpush.bf16.msra.mxu0 %v1342
  %1923 = vmatpush.bf16.msra.mxu0 %v1341
  %1924 = vmatpush.bf16.msra.mxu0 %v1340
  %1925 = vmatpush.bf16.msra.mxu0 %v1339
  %1926 = vmatpush.bf16.msra.mxu0 %v1338
  %1927 = vmatmul.bf16.gmra.mxu0 %v575
  %v1928 = vpop.f32.mrf.mxu0
  %v1929 = vadd.f32 %v1896, %v1928
  %v1930 = vpop.f32.mrf.mxu0
  %v1931 = vadd.f32 %v1898, %v1930
  %1932 = vmatmul.bf16.gmra.mxu0 %v591
  %v1933 = vpop.f32.mrf.mxu0
  %v1934 = vadd.f32 %v1901, %v1933
  %v1935 = vpop.f32.mrf.mxu0
  %v1936 = vadd.f32 %v1903, %v1935
  %1937 = vmatmul.bf16.gmra.mxu0 %v607
  %v1938 = vpop.f32.mrf.mxu0
  %v1939 = vadd.f32 %v1906, %v1938
  %v1940 = vpop.f32.mrf.mxu0
  %v1941 = vadd.f32 %v1908, %v1940
  %1942 = vmatmul.bf16.gmra.mxu0 %v623
  %v1943 = vpop.f32.mrf.mxu0
  %v1944 = vadd.f32 %v1911, %v1943
  %v1945 = vpop.f32.mrf.mxu0
  %v1946 = vadd.f32 %v1913, %v1945
  %1947 = vmatmul.bf16.gmra.mxu0 %v639
  %v1948 = vpop.f32.mrf.mxu0
  %v1949 = vadd.f32 %v1916, %v1948
  %v1950 = vpop.f32.mrf.mxu0
  %1951 = vdwg.mxu0
  %1952 = vmatpush.bf16.msra.mxu0 %v1353
  %1953 = vmatpush.bf16.msra.mxu0 %v1352
  %1954 = vmatpush.bf16.msra.mxu0 %v1351
  %1955 = vmatpush.bf16.msra.mxu0 %v1350
  %1956 = vmatpush.bf16.msra.mxu0 %v1349
  %1957 = vmatpush.bf16.msra.mxu0 %v1348
  %1958 = vmatpush.bf16.msra.mxu0 %v1347
  %1959 = vmatpush.bf16.msra.mxu0 %v1346
  %1960 = vmatmul.bf16.gmra.mxu0 %v576
  %v1961 = vpop.f32.mrf.mxu0
  %v1962 = vadd.f32 %v1929, %v1961
  %v1963 = vpop.f32.mrf.mxu0
  %v1964 = vadd.f32 %v1931, %v1963
  %1965 = vmatmul.bf16.gmra.mxu0 %v592
  %v1966 = vpop.f32.mrf.mxu0
  %v1967 = vadd.f32 %v1934, %v1966
  %v1968 = vpop.f32.mrf.mxu0
  %v1969 = vadd.f32 %v1936, %v1968
  %1970 = vmatmul.bf16.gmra.mxu0 %v608
  %v1971 = vpop.f32.mrf.mxu0
  %v1972 = vadd.f32 %v1939, %v1971
  %v1973 = vpop.f32.mrf.mxu0
  %v1974 = vadd.f32 %v1941, %v1973
  %1975 = vmatmul.bf16.gmra.mxu0 %v624
  %v1976 = vpop.f32.mrf.mxu0
  %v1977 = vadd.f32 %v1944, %v1976
  %v1978 = vpop.f32.mrf.mxu0
  %v1979 = vadd.f32 %v1946, %v1978
  %1980 = vmatmul.bf16.gmra.mxu0 %v640
  %v1981 = vpop.f32.mrf.mxu0
  %v1982 = vadd.f32 %v1949, %v1981
  %v1983 = vpop.f32.mrf.mxu0
  %1984 = vdwg.mxu0
  %1985 = vmatpush.bf16.msra.mxu0 %v1361
  %1986 = vmatpush.bf16.msra.mxu0 %v1360
  %1987 = vmatpush.bf16.msra.mxu0 %v1359
  %1988 = vmatpush.bf16.msra.mxu0 %v1358
  %1989 = vmatpush.bf16.msra.mxu0 %v1357
  %1990 = vmatpush.bf16.msra.mxu0 %v1356
  %1991 = vmatpush.bf16.msra.mxu0 %v1355
  %1992 = vmatpush.bf16.msra.mxu0 %v1354
  %1993 = vmatmul.bf16.gmra.mxu0 %v577
  %v1994 = vpop.f32.mrf.mxu0
  %v1995 = vadd.f32 %v1962, %v1994
  %v1996 = vpop.f32.mrf.mxu0
  %v1997 = vadd.f32 %v1964, %v1996
  %1998 = vmatmul.bf16.gmra.mxu0 %v593
  %v1999 = vpop.f32.mrf.mxu0
  %v2000 = vadd.f32 %v1967, %v1999
  %v2001 = vpop.f32.mrf.mxu0
  %v2002 = vadd.f32 %v1969, %v2001
  %2003 = vmatmul.bf16.gmra.mxu0 %v609
  %v2004 = vpop.f32.mrf.mxu0
  %v2005 = vadd.f32 %v1972, %v2004
  %v2006 = vpop.f32.mrf.mxu0
  %v2007 = vadd.f32 %v1974, %v2006
  %2008 = vmatmul.bf16.gmra.mxu0 %v625
  %v2009 = vpop.f32.mrf.mxu0
  %v2010 = vadd.f32 %v1977, %v2009
  %v2011 = vpop.f32.mrf.mxu0
  %v2012 = vadd.f32 %v1979, %v2011
  %2013 = vmatmul.bf16.gmra.mxu0 %v641
  %v2014 = vpop.f32.mrf.mxu0
  %v2015 = vadd.f32 %v1982, %v2014
  %v2016 = vpop.f32.mrf.mxu0
  %2017 = vdwg.mxu0
  %v2018 = vmax.f32 %v1995, 0.0
  %v2019 = vmax.f32 %v1997, 0.0
  %v2020 = vmax.f32 %v2000, 0.0
  %v2021 = vmax.f32 %v2002, 0.0
  %v2022 = vmax.f32 %v2005, 0.0
  %v2023 = vmax.f32 %v2007, 0.0
  %v2024 = vmax.f32 %v2010, 0.0
  %v2025 = vmax.f32 %v2012, 0.0
  %v2026 = vmax.f32 %v2015, 0.0
  %v2027 = vpack.c.bf16 %v2018, %v2018
  %v2028 = vpack.c.bf16 %v2019, %v2019
  %v2029 = vpack.c.bf16 %v2020, %v2020
  %v2030 = vpack.c.bf16 %v2021, %v2021
  %v2031 = vpack.c.bf16 %v2022, %v2022
  %v2032 = vpack.c.bf16 %v2023, %v2023
  %v2033 = vpack.c.bf16 %v2024, %v2024
  %v2034 = vpack.c.bf16 %v2025, %v2025
  %v2035 = vpack.c.bf16 %v2026, %v2026
  %2036 = vst [vmem:[%s3] sm:$0xf] %v2027
  %2037 = vst [vmem:[%s3 + $0x4] sm:$0xf] %v2028
  %2038 = vst [vmem:[%s3 + $0x8] sm:$0xf] %v2029
  %2039 = vst [vmem:[%s3 + $0xc] sm:$0xf] %v2030
  %2040 = vst [vmem:[%s3 + $0x10] sm:$0xf] %v2031
  %2041 = vst [vmem:[%s3 + $0x14] sm:$0xf] %v2032
  %2042 = vst [vmem:[%s3 + $0x18] sm:$0xf] %v2033
  %2043 = vst [vmem:[%s3 + $0x1c] sm:$0xf] %v2034
  %2044 = vst [vmem:[%s3 + $0x20] sm:$0xf] %v2035
  // Predicated region
  $region14: #{small_impala_cnn_forward.4} parent=0 // pred_check
    _
  $region15: #{small_impala_cnn_forward.4} parent=0 // pred_check_branch
    %2046 = sbr.rel (0) target = $region17
  $region16: #{small_impala_cnn_forward.4} parent=0 // pred_region
    _
  $region17: #{small_impala_cnn_forward.4} parent=0 // pred_fallthru
    _
  // Predicated region
  $region18: #{small_impala_cnn_forward.4} parent=0 // pred_check
    _
  $region19: #{small_impala_cnn_forward.4} parent=0 // pred_check_branch
    %2048 = sbr.rel (0) target = $region21
  $region20: #{small_impala_cnn_forward.4} parent=0 // pred_region
    _
  $region21: #{small_impala_cnn_forward.4} parent=0 // pred_fallthru
    _

// kernel: small_impala_cnn_forward.5
$region0: #{small_impala_cnn_forward.5}
  #allocation0 [shape = 'u32[]', space=smem, size = 0x4, offset = 0x4, fixed_abs, tag = 'smem constant byte address 0x4 - core index']
  #allocation1 [shape = 'u32[72,128]{1,0:T(1,128)}', space=vmem, size = 0x9000, scoped, tag = 'internal scratch']
  %s0 = inlined_call_operand.vmem [shape: bf16[2,4608], index: 0, kind: input, shape index: {}]
  %s1 = inlined_call_operand.vmem [shape: bf16[4608,256], index: 1, kind: input, shape index: {}]
  %s2 = inlined_call_operand.vmem [shape: f32[1,256], index: 2, kind: input, shape index: {}]
  %s3 = inlined_call_operand.hbm [shape: f32[2,256], index: 3, kind: output, shape index: {}]
  %s4 = sld [smem:[#allocation0]]
  $region22: #{small_impala_cnn_forward.5} parent=0
    _
  %s6 = ssub.s32 1, %s4
  %s7 = scalar_select 0, %s6, %s4
  $region1: #{small_impala_cnn_forward.5} parent=0
    #allocation2 [shape = 'u8[2048]{0}', space=vmem, size = 0x800, scoped, tag = 'output window, operand 0, single buffered']
    #allocation3 [shape = 's32[1]{0}', space=sflag, size = 0x4, scoped, tag = 'scoped memory for small_impala_cnn_forward.5']
    %8 = vsyncpa [#allocation3], 0
    // Predicated region
    $region2: #{small_impala_cnn_forward.5} parent=1 // pred_check
      _
    $region3: #{small_impala_cnn_forward.5} parent=1 // pred_check_branch
      %10 = sbr.rel (0) target = $region5
    $region4: #{small_impala_cnn_forward.5} parent=1 // pred_region
      _
    $region5: #{small_impala_cnn_forward.5} parent=1 // pred_fallthru
      _
    // Predicated region
    $region6: #{small_impala_cnn_forward.5} parent=1 // pred_check
      _
    $region7: #{small_impala_cnn_forward.5} parent=1 // pred_check_branch
      %12 = sbr.rel (0) target = $region9
    $region8: #{small_impala_cnn_forward.5} parent=1 // pred_region
      _
    $region9: #{small_impala_cnn_forward.5} parent=1 // pred_fallthru
      _
    // Predicated region
    $region10: #{small_impala_cnn_forward.5} parent=1 // pred_check
      _
    $region11: #{small_impala_cnn_forward.5} parent=1 // pred_check_branch
      %14 = sbr.rel (0) target = $region13
    $region12: #{small_impala_cnn_forward.5} parent=1 // pred_region
      _
    $region13: #{small_impala_cnn_forward.5} parent=1 // pred_fallthru
      _
    %v15 = vld [vmem:[%s0] sm:$0xff]
    %v16 = vld [vmem:[%s0 + $0x8] sm:$0xff]
    %v17 = vld [vmem:[%s0 + $0x10] sm:$0xff]
    %v18 = vld [vmem:[%s0 + $0x18] sm:$0xff]
    %v19 = vld [vmem:[%s0 + $0x20] sm:$0xf]
    %v20 = vld [vmem:[%s1] sm:$0xff]
    %v21 = vld [vmem:[%s1 + $0x8] sm:$0xff]
    %v22 = vld [vmem:[%s1 + $0x10] sm:$0xff]
    %v23 = vld [vmem:[%s1 + $0x18] sm:$0xff]
    %v24 = vld [vmem:[%s1 + $0x20] sm:$0xff]
    %v25 = vld [vmem:[%s1 + $0x28] sm:$0xff]
    %v26 = vld [vmem:[%s1 + $0x30] sm:$0xff]
    %v27 = vld [vmem:[%s1 + $0x38] sm:$0xff]
    %v28 = vld [vmem:[%s1 + $0x40] sm:$0xff]
    %v29 = vld [vmem:[%s1 + $0x48] sm:$0xff]
    %v30 = vld [vmem:[%s1 + $0x50] sm:$0xff]
    %v31 = vld [vmem:[%s1 + $0x58] sm:$0xff]
    %v32 = vld [vmem:[%s1 + $0x60] sm:$0xff]
    %v33 = vld [vmem:[%s1 + $0x68] sm:$0xff]
    %v34 = vld [vmem:[%s1 + $0x70] sm:$0xff]
    %v35 = vld [vmem:[%s1 + $0x78] sm:$0xff]
    %v36 = vld [vmem:[%s1 + $0x80] sm:$0xff]
    %v37 = vld [vmem:[%s1 + $0x88] sm:$0xff]
    %v38 = vld [vmem:[%s1 + $0x90] sm:$0xff]
    %v39 = vld [vmem:[%s1 + $0x98] sm:$0xff]
    %v40 = vld [vmem:[%s1 + $0xa0] sm:$0xff]
    %v41 = vld [vmem:[%s1 + $0xa8] sm:$0xff]
    %v42 = vld [vmem:[%s1 + $0xb0] sm:$0xff]
    %v43 = vld [vmem:[%s1 + $0xb8] sm:$0xff]
    %v44 = vld [vmem:[%s1 + $0xc0] sm:$0xff]
    %v45 = vld [vmem:[%s1 + $0xc8] sm:$0xff]
    %v46 = vld [vmem:[%s1 + $0xd0] sm:$0xff]
    %v47 = vld [vmem:[%s1 + $0xd8] sm:$0xff]
    %v48 = vld [vmem:[%s1 + $0xe0] sm:$0xff]
    %v49 = vld [vmem:[%s1 + $0xe8] sm:$0xff]
    %v50 = vld [vmem:[%s1 + $0xf0] sm:$0xff]
    %v51 = vld [vmem:[%s1 + $0xf8] sm:$0xff]
    %v52 = vld [vmem:[%s1 + $0x100] sm:$0xff]
    %v53 = vld [vmem:[%s1 + $0x108] sm:$0xff]
    %v54 = vld [vmem:[%s1 + $0x110] sm:$0xff]
    %v55 = vld [vmem:[%s1 + $0x118] sm:$0xff]
    %v56 = vld [vmem:[%s1 + $0x120] sm:$0xff]
    %v57 = vld [vmem:[%s1 + $0x128] sm:$0xff]
    %v58 = vld [vmem:[%s1 + $0x130] sm:$0xff]
    %v59 = vld [vmem:[%s1 + $0x138] sm:$0xff]
    %v60 = vld [vmem:[%s1 + $0x140] sm:$0xff]
    %v61 = vld [vmem:[%s1 + $0x148] sm:$0xff]
    %v62 = vld [vmem:[%s1 + $0x150] sm:$0xff]
    %v63 = vld [vmem:[%s1 + $0x158] sm:$0xff]
    %v64 = vld [vmem:[%s1 + $0x160] sm:$0xff]
    %v65 = vld [vmem:[%s1 + $0x168] sm:$0xff]
    %v66 = vld [vmem:[%s1 + $0x170] sm:$0xff]
    %v67 = vld [vmem:[%s1 + $0x178] sm:$0xff]
    %v68 = vld [vmem:[%s1 + $0x180] sm:$0xff]
    %v69 = vld [vmem:[%s1 + $0x188] sm:$0xff]
    %v70 = vld [vmem:[%s1 + $0x190] sm:$0xff]
    %v71 = vld [vmem:[%s1 + $0x198] sm:$0xff]
    %v72 = vld [vmem:[%s1 + $0x1a0] sm:$0xff]
    %v73 = vld [vmem:[%s1 + $0x1a8] sm:$0xff]
    %v74 = vld [vmem:[%s1 + $0x1b0] sm:$0xff]
    %v75 = vld [vmem:[%s1 + $0x1b8] sm:$0xff]
    %v76 = vld [vmem:[%s1 + $0x1c0] sm:$0xff]
    %v77 = vld [vmem:[%s1 + $0x1c8] sm:$0xff]
    %v78 = vld [vmem:[%s1 + $0x1d0] sm:$0xff]
    %v79 = vld [vmem:[%s1 + $0x1d8] sm:$0xff]
    %v80 = vld [vmem:[%s1 + $0x1e0] sm:$0xff]
    %v81 = vld [vmem:[%s1 + $0x1e8] sm:$0xff]
    %v82 = vld [vmem:[%s1 + $0x1f0] sm:$0xff]
    %v83 = vld [vmem:[%s1 + $0x1f8] sm:$0xff]
    %v84 = vld [vmem:[%s1 + $0x200] sm:$0xff]
    %v85 = vld [vmem:[%s1 + $0x208] sm:$0xff]
    %v86 = vld [vmem:[%s1 + $0x210] sm:$0xff]
    %v87 = vld [vmem:[%s1 + $0x218] sm:$0xff]
    %v88 = vld [vmem:[%s1 + $0x220] sm:$0xff]
    %v89 = vld [vmem:[%s1 + $0x228] sm:$0xff]
    %v90 = vld [vmem:[%s1 + $0x230] sm:$0xff]
    %v91 = vld [vmem:[%s1 + $0x238] sm:$0xff]
    %v92 = vld [vmem:[%s1 + $0x240] sm:$0xff]
    %v93 = vld [vmem:[%s1 + $0x248] sm:$0xff]
    %v94 = vld [vmem:[%s1 + $0x250] sm:$0xff]
    %v95 = vld [vmem:[%s1 + $0x258] sm:$0xff]
    %v96 = vld [vmem:[%s1 + $0x260] sm:$0xff]
    %v97 = vld [vmem:[%s1 + $0x268] sm:$0xff]
    %v98 = vld [vmem:[%s1 + $0x270] sm:$0xff]
    %v99 = vld [vmem:[%s1 + $0x278] sm:$0xff]
    %v100 = vld [vmem:[%s1 + $0x280] sm:$0xff]
    %v101 = vld [vmem:[%s1 + $0x288] sm:$0xff]
    %v102 = vld [vmem:[%s1 + $0x290] sm:$0xff]
    %v103 = vld [vmem:[%s1 + $0x298] sm:$0xff]
    %v104 = vld [vmem:[%s1 + $0x2a0] sm:$0xff]
    %v105 = vld [vmem:[%s1 + $0x2a8] sm:$0xff]
    %v106 = vld [vmem:[%s1 + $0x2b0] sm:$0xff]
    %v107 = vld [vmem:[%s1 + $0x2b8] sm:$0xff]
    %v108 = vld [vmem:[%s1 + $0x2c0] sm:$0xff]
    %v109 = vld [vmem:[%s1 + $0x2c8] sm:$0xff]
    %v110 = vld [vmem:[%s1 + $0x2d0] sm:$0xff]
    %v111 = vld [vmem:[%s1 + $0x2d8] sm:$0xff]
    %v112 = vld [vmem:[%s1 + $0x2e0] sm:$0xff]
    %v113 = vld [vmem:[%s1 + $0x2e8] sm:$0xff]
    %v114 = vld [vmem:[%s1 + $0x2f0] sm:$0xff]
    %v115 = vld [vmem:[%s1 + $0x2f8] sm:$0xff]
    %v116 = vld [vmem:[%s1 + $0x300] sm:$0xff]
    %v117 = vld [vmem:[%s1 + $0x308] sm:$0xff]
    %v118 = vld [vmem:[%s1 + $0x310] sm:$0xff]
    %v119 = vld [vmem:[%s1 + $0x318] sm:$0xff]
    %v120 = vld [vmem:[%s1 + $0x320] sm:$0xff]
    %v121 = vld [vmem:[%s1 + $0x328] sm:$0xff]
    %v122 = vld [vmem:[%s1 + $0x330] sm:$0xff]
    %v123 = vld [vmem:[%s1 + $0x338] sm:$0xff]
    %v124 = vld [vmem:[%s1 + $0x340] sm:$0xff]
    %v125 = vld [vmem:[%s1 + $0x348] sm:$0xff]
    %v126 = vld [vmem:[%s1 + $0x350] sm:$0xff]
    %v127 = vld [vmem:[%s1 + $0x358] sm:$0xff]
    %v128 = vld [vmem:[%s1 + $0x360] sm:$0xff]
    %v129 = vld [vmem:[%s1 + $0x368] sm:$0xff]
    %v130 = vld [vmem:[%s1 + $0x370] sm:$0xff]
    %v131 = vld [vmem:[%s1 + $0x378] sm:$0xff]
    %v132 = vld [vmem:[%s1 + $0x380] sm:$0xff]
    %v133 = vld [vmem:[%s1 + $0x388] sm:$0xff]
    %v134 = vld [vmem:[%s1 + $0x390] sm:$0xff]
    %v135 = vld [vmem:[%s1 + $0x398] sm:$0xff]
    %v136 = vld [vmem:[%s1 + $0x3a0] sm:$0xff]
    %v137 = vld [vmem:[%s1 + $0x3a8] sm:$0xff]
    %v138 = vld [vmem:[%s1 + $0x3b0] sm:$0xff]
    %v139 = vld [vmem:[%s1 + $0x3b8] sm:$0xff]
    %v140 = vld [vmem:[%s1 + $0x3c0] sm:$0xff]
    %v141 = vld [vmem:[%s1 + $0x3c8] sm:$0xff]
    %v142 = vld [vmem:[%s1 + $0x3d0] sm:$0xff]
    %v143 = vld [vmem:[%s1 + $0x3d8] sm:$0xff]
    %v144 = vld [vmem:[%s1 + $0x3e0] sm:$0xff]
    %v145 = vld [vmem:[%s1 + $0x3e8] sm:$0xff]
    %v146 = vld [vmem:[%s1 + $0x3f0] sm:$0xff]
    %v147 = vld [vmem:[%s1 + $0x3f8] sm:$0xff]
    %v148 = vld [vmem:[%s1 + $0x400] sm:$0xff]
    %v149 = vld [vmem:[%s1 + $0x408] sm:$0xff]
    %v150 = vld [vmem:[%s1 + $0x410] sm:$0xff]
    %v151 = vld [vmem:[%s1 + $0x418] sm:$0xff]
    %v152 = vld [vmem:[%s1 + $0x420] sm:$0xff]
    %v153 = vld [vmem:[%s1 + $0x428] sm:$0xff]
    %v154 = vld [vmem:[%s1 + $0x430] sm:$0xff]
    %v155 = vld [vmem:[%s1 + $0x438] sm:$0xff]
    %v156 = vld [vmem:[%s1 + $0x440] sm:$0xff]
    %v157 = vld [vmem:[%s1 + $0x448] sm:$0xff]
    %v158 = vld [vmem:[%s1 + $0x450] sm:$0xff]
    %v159 = vld [vmem:[%s1 + $0x458] sm:$0xff]
    %v160 = vld [vmem:[%s1 + $0x460] sm:$0xff]
    %v161 = vld [vmem:[%s1 + $0x468] sm:$0xff]
    %v162 = vld [vmem:[%s1 + $0x470] sm:$0xff]
    %v163 = vld [vmem:[%s1 + $0x478] sm:$0xff]
    %v164 = vld [vmem:[%s1 + $0x480] sm:$0xff]
    %v165 = vld [vmem:[%s1 + $0x488] sm:$0xff]
    %v166 = vld [vmem:[%s1 + $0x490] sm:$0xff]
    %v167 = vld [vmem:[%s1 + $0x498] sm:$0xff]
    %v168 = vld [vmem:[%s1 + $0x4a0] sm:$0xff]
    %v169 = vld [vmem:[%s1 + $0x4a8] sm:$0xff]
    %v170 = vld [vmem:[%s1 + $0x4b0] sm:$0xff]
    %v171 = vld [vmem:[%s1 + $0x4b8] sm:$0xff]
    %v172 = vld [vmem:[%s1 + $0x4c0] sm:$0xff]
    %v173 = vld [vmem:[%s1 + $0x4c8] sm:$0xff]
    %v174 = vld [vmem:[%s1 + $0x4d0] sm:$0xff]
    %v175 = vld [vmem:[%s1 + $0x4d8] sm:$0xff]
    %v176 = vld [vmem:[%s1 + $0x4e0] sm:$0xff]
    %v177 = vld [vmem:[%s1 + $0x4e8] sm:$0xff]
    %v178 = vld [vmem:[%s1 + $0x4f0] sm:$0xff]
    %v179 = vld [vmem:[%s1 + $0x4f8] sm:$0xff]
    %v180 = vld [vmem:[%s1 + $0x500] sm:$0xff]
    %v181 = vld [vmem:[%s1 + $0x508] sm:$0xff]
    %v182 = vld [vmem:[%s1 + $0x510] sm:$0xff]
    %v183 = vld [vmem:[%s1 + $0x518] sm:$0xff]
    %v184 = vld [vmem:[%s1 + $0x520] sm:$0xff]
    %v185 = vld [vmem:[%s1 + $0x528] sm:$0xff]
    %v186 = vld [vmem:[%s1 + $0x530] sm:$0xff]
    %v187 = vld [vmem:[%s1 + $0x538] sm:$0xff]
    %v188 = vld [vmem:[%s1 + $0x540] sm:$0xff]
    %v189 = vld [vmem:[%s1 + $0x548] sm:$0xff]
    %v190 = vld [vmem:[%s1 + $0x550] sm:$0xff]
    %v191 = vld [vmem:[%s1 + $0x558] sm:$0xff]
    %v192 = vld [vmem:[%s1 + $0x560] sm:$0xff]
    %v193 = vld [vmem:[%s1 + $0x568] sm:$0xff]
    %v194 = vld [vmem:[%s1 + $0x570] sm:$0xff]
    %v195 = vld [vmem:[%s1 + $0x578] sm:$0xff]
    %v196 = vld [vmem:[%s1 + $0x580] sm:$0xff]
    %v197 = vld [vmem:[%s1 + $0x588] sm:$0xff]
    %v198 = vld [vmem:[%s1 + $0x590] sm:$0xff]
    %v199 = vld [vmem:[%s1 + $0x598] sm:$0xff]
    %v200 = vld [vmem:[%s1 + $0x5a0] sm:$0xff]
    %v201 = vld [vmem:[%s1 + $0x5a8] sm:$0xff]
    %v202 = vld [vmem:[%s1 + $0x5b0] sm:$0xff]
    %v203 = vld [vmem:[%s1 + $0x5b8] sm:$0xff]
    %v204 = vld [vmem:[%s1 + $0x5c0] sm:$0xff]
    %v205 = vld [vmem:[%s1 + $0x5c8] sm:$0xff]
    %v206 = vld [vmem:[%s1 + $0x5d0] sm:$0xff]
    %v207 = vld [vmem:[%s1 + $0x5d8] sm:$0xff]
    %v208 = vld [vmem:[%s1 + $0x5e0] sm:$0xff]
    %v209 = vld [vmem:[%s1 + $0x5e8] sm:$0xff]
    %v210 = vld [vmem:[%s1 + $0x5f0] sm:$0xff]
    %v211 = vld [vmem:[%s1 + $0x5f8] sm:$0xff]
    %v212 = vld [vmem:[%s1 + $0x600] sm:$0xff]
    %v213 = vld [vmem:[%s1 + $0x608] sm:$0xff]
    %v214 = vld [vmem:[%s1 + $0x610] sm:$0xff]
    %v215 = vld [vmem:[%s1 + $0x618] sm:$0xff]
    %v216 = vld [vmem:[%s1 + $0x620] sm:$0xff]
    %v217 = vld [vmem:[%s1 + $0x628] sm:$0xff]
    %v218 = vld [vmem:[%s1 + $0x630] sm:$0xff]
    %v219 = vld [vmem:[%s1 + $0x638] sm:$0xff]
    %v220 = vld [vmem:[%s1 + $0x640] sm:$0xff]
    %v221 = vld [vmem:[%s1 + $0x648] sm:$0xff]
    %v222 = vld [vmem:[%s1 + $0x650] sm:$0xff]
    %v223 = vld [vmem:[%s1 + $0x658] sm:$0xff]
    %v224 = vld [vmem:[%s1 + $0x660] sm:$0xff]
    %v225 = vld [vmem:[%s1 + $0x668] sm:$0xff]
    %v226 = vld [vmem:[%s1 + $0x670] sm:$0xff]
    %v227 = vld [vmem:[%s1 + $0x678] sm:$0xff]
    %v228 = vld [vmem:[%s1 + $0x680] sm:$0xff]
    %v229 = vld [vmem:[%s1 + $0x688] sm:$0xff]
    %v230 = vld [vmem:[%s1 + $0x690] sm:$0xff]
    %v231 = vld [vmem:[%s1 + $0x698] sm:$0xff]
    %v232 = vld [vmem:[%s1 + $0x6a0] sm:$0xff]
    %v233 = vld [vmem:[%s1 + $0x6a8] sm:$0xff]
    %v234 = vld [vmem:[%s1 + $0x6b0] sm:$0xff]
    %v235 = vld [vmem:[%s1 + $0x6b8] sm:$0xff]
    %v236 = vld [vmem:[%s1 + $0x6c0] sm:$0xff]
    %v237 = vld [vmem:[%s1 + $0x6c8] sm:$0xff]
    %v238 = vld [vmem:[%s1 + $0x6d0] sm:$0xff]
    %v239 = vld [vmem:[%s1 + $0x6d8] sm:$0xff]
    %v240 = vld [vmem:[%s1 + $0x6e0] sm:$0xff]
    %v241 = vld [vmem:[%s1 + $0x6e8] sm:$0xff]
    %v242 = vld [vmem:[%s1 + $0x6f0] sm:$0xff]
    %v243 = vld [vmem:[%s1 + $0x6f8] sm:$0xff]
    %v244 = vld [vmem:[%s1 + $0x700] sm:$0xff]
    %v245 = vld [vmem:[%s1 + $0x708] sm:$0xff]
    %v246 = vld [vmem:[%s1 + $0x710] sm:$0xff]
    %v247 = vld [vmem:[%s1 + $0x718] sm:$0xff]
    %v248 = vld [vmem:[%s1 + $0x720] sm:$0xff]
    %v249 = vld [vmem:[%s1 + $0x728] sm:$0xff]
    %v250 = vld [vmem:[%s1 + $0x730] sm:$0xff]
    %v251 = vld [vmem:[%s1 + $0x738] sm:$0xff]
    %v252 = vld [vmem:[%s1 + $0x740] sm:$0xff]
    %v253 = vld [vmem:[%s1 + $0x748] sm:$0xff]
    %v254 = vld [vmem:[%s1 + $0x750] sm:$0xff]
    %v255 = vld [vmem:[%s1 + $0x758] sm:$0xff]
    %v256 = vld [vmem:[%s1 + $0x760] sm:$0xff]
    %v257 = vld [vmem:[%s1 + $0x768] sm:$0xff]
    %v258 = vld [vmem:[%s1 + $0x770] sm:$0xff]
    %v259 = vld [vmem:[%s1 + $0x778] sm:$0xff]
    %v260 = vld [vmem:[%s1 + $0x780] sm:$0xff]
    %v261 = vld [vmem:[%s1 + $0x788] sm:$0xff]
    %v262 = vld [vmem:[%s1 + $0x790] sm:$0xff]
    %v263 = vld [vmem:[%s1 + $0x798] sm:$0xff]
    %v264 = vld [vmem:[%s1 + $0x7a0] sm:$0xff]
    %v265 = vld [vmem:[%s1 + $0x7a8] sm:$0xff]
    %v266 = vld [vmem:[%s1 + $0x7b0] sm:$0xff]
    %v267 = vld [vmem:[%s1 + $0x7b8] sm:$0xff]
    %v268 = vld [vmem:[%s1 + $0x7c0] sm:$0xff]
    %v269 = vld [vmem:[%s1 + $0x7c8] sm:$0xff]
    %v270 = vld [vmem:[%s1 + $0x7d0] sm:$0xff]
    %v271 = vld [vmem:[%s1 + $0x7d8] sm:$0xff]
    %v272 = vld [vmem:[%s1 + $0x7e0] sm:$0xff]
    %v273 = vld [vmem:[%s1 + $0x7e8] sm:$0xff]
    %v274 = vld [vmem:[%s1 + $0x7f0] sm:$0xff]
    %v275 = vld [vmem:[%s1 + $0x7f8] sm:$0xff]
    %v276 = vld [vmem:[%s1 + $0x800] sm:$0xff]
    %v277 = vld [vmem:[%s1 + $0x808] sm:$0xff]
    %v278 = vld [vmem:[%s1 + $0x810] sm:$0xff]
    %v279 = vld [vmem:[%s1 + $0x818] sm:$0xff]
    %v280 = vld [vmem:[%s1 + $0x820] sm:$0xff]
    %v281 = vld [vmem:[%s1 + $0x828] sm:$0xff]
    %v282 = vld [vmem:[%s1 + $0x830] sm:$0xff]
    %v283 = vld [vmem:[%s1 + $0x838] sm:$0xff]
    %v284 = vld [vmem:[%s1 + $0x840] sm:$0xff]
    %v285 = vld [vmem:[%s1 + $0x848] sm:$0xff]
    %v286 = vld [vmem:[%s1 + $0x850] sm:$0xff]
    %v287 = vld [vmem:[%s1 + $0x858] sm:$0xff]
    %v288 = vld [vmem:[%s1 + $0x860] sm:$0xff]
    %v289 = vld [vmem:[%s1 + $0x868] sm:$0xff]
    %v290 = vld [vmem:[%s1 + $0x870] sm:$0xff]
    %v291 = vld [vmem:[%s1 + $0x878] sm:$0xff]
    %v292 = vld [vmem:[%s1 + $0x880] sm:$0xff]
    %v293 = vld [vmem:[%s1 + $0x888] sm:$0xff]
    %v294 = vld [vmem:[%s1 + $0x890] sm:$0xff]
    %v295 = vld [vmem:[%s1 + $0x898] sm:$0xff]
    %v296 = vld [vmem:[%s1 + $0x8a0] sm:$0xff]
    %v297 = vld [vmem:[%s1 + $0x8a8] sm:$0xff]
    %v298 = vld [vmem:[%s1 + $0x8b0] sm:$0xff]
    %v299 = vld [vmem:[%s1 + $0x8b8] sm:$0xff]
    %v300 = vld [vmem:[%s1 + $0x8c0] sm:$0xff]
    %v301 = vld [vmem:[%s1 + $0x8c8] sm:$0xff]
    %v302 = vld [vmem:[%s1 + $0x8d0] sm:$0xff]
    %v303 = vld [vmem:[%s1 + $0x8d8] sm:$0xff]
    %v304 = vld [vmem:[%s1 + $0x8e0] sm:$0xff]
    %v305 = vld [vmem:[%s1 + $0x8e8] sm:$0xff]
    %v306 = vld [vmem:[%s1 + $0x8f0] sm:$0xff]
    %v307 = vld [vmem:[%s1 + $0x8f8] sm:$0xff]
    %v308 = vld [vmem:[%s1 + $0x900] sm:$0xff]
    %v309 = vld [vmem:[%s1 + $0x908] sm:$0xff]
    %v310 = vld [vmem:[%s1 + $0x910] sm:$0xff]
    %v311 = vld [vmem:[%s1 + $0x918] sm:$0xff]
    %v312 = vld [vmem:[%s1 + $0x920] sm:$0xff]
    %v313 = vld [vmem:[%s1 + $0x928] sm:$0xff]
    %v314 = vld [vmem:[%s1 + $0x930] sm:$0xff]
    %v315 = vld [vmem:[%s1 + $0x938] sm:$0xff]
    %v316 = vld [vmem:[%s1 + $0x940] sm:$0xff]
    %v317 = vld [vmem:[%s1 + $0x948] sm:$0xff]
    %v318 = vld [vmem:[%s1 + $0x950] sm:$0xff]
    %v319 = vld [vmem:[%s1 + $0x958] sm:$0xff]
    %v320 = vld [vmem:[%s1 + $0x960] sm:$0xff]
    %v321 = vld [vmem:[%s1 + $0x968] sm:$0xff]
    %v322 = vld [vmem:[%s1 + $0x970] sm:$0xff]
    %v323 = vld [vmem:[%s1 + $0x978] sm:$0xff]
    %v324 = vld [vmem:[%s1 + $0x980] sm:$0xff]
    %v325 = vld [vmem:[%s1 + $0x988] sm:$0xff]
    %v326 = vld [vmem:[%s1 + $0x990] sm:$0xff]
    %v327 = vld [vmem:[%s1 + $0x998] sm:$0xff]
    %v328 = vld [vmem:[%s1 + $0x9a0] sm:$0xff]
    %v329 = vld [vmem:[%s1 + $0x9a8] sm:$0xff]
    %v330 = vld [vmem:[%s1 + $0x9b0] sm:$0xff]
    %v331 = vld [vmem:[%s1 + $0x9b8] sm:$0xff]
    %v332 = vld [vmem:[%s1 + $0x9c0] sm:$0xff]
    %v333 = vld [vmem:[%s1 + $0x9c8] sm:$0xff]
    %v334 = vld [vmem:[%s1 + $0x9d0] sm:$0xff]
    %v335 = vld [vmem:[%s1 + $0x9d8] sm:$0xff]
    %v336 = vld [vmem:[%s1 + $0x9e0] sm:$0xff]
    %v337 = vld [vmem:[%s1 + $0x9e8] sm:$0xff]
    %v338 = vld [vmem:[%s1 + $0x9f0] sm:$0xff]
    %v339 = vld [vmem:[%s1 + $0x9f8] sm:$0xff]
    %v340 = vld [vmem:[%s1 + $0xa00] sm:$0xff]
    %v341 = vld [vmem:[%s1 + $0xa08] sm:$0xff]
    %v342 = vld [vmem:[%s1 + $0xa10] sm:$0xff]
    %v343 = vld [vmem:[%s1 + $0xa18] sm:$0xff]
    %v344 = vld [vmem:[%s1 + $0xa20] sm:$0xff]
    %v345 = vld [vmem:[%s1 + $0xa28] sm:$0xff]
    %v346 = vld [vmem:[%s1 + $0xa30] sm:$0xff]
    %v347 = vld [vmem:[%s1 + $0xa38] sm:$0xff]
    %v348 = vld [vmem:[%s1 + $0xa40] sm:$0xff]
    %v349 = vld [vmem:[%s1 + $0xa48] sm:$0xff]
    %v350 = vld [vmem:[%s1 + $0xa50] sm:$0xff]
    %v351 = vld [vmem:[%s1 + $0xa58] sm:$0xff]
    %v352 = vld [vmem:[%s1 + $0xa60] sm:$0xff]
    %v353 = vld [vmem:[%s1 + $0xa68] sm:$0xff]
    %v354 = vld [vmem:[%s1 + $0xa70] sm:$0xff]
    %v355 = vld [vmem:[%s1 + $0xa78] sm:$0xff]
    %v356 = vld [vmem:[%s1 + $0xa80] sm:$0xff]
    %v357 = vld [vmem:[%s1 + $0xa88] sm:$0xff]
    %v358 = vld [vmem:[%s1 + $0xa90] sm:$0xff]
    %v359 = vld [vmem:[%s1 + $0xa98] sm:$0xff]
    %v360 = vld [vmem:[%s1 + $0xaa0] sm:$0xff]
    %v361 = vld [vmem:[%s1 + $0xaa8] sm:$0xff]
    %v362 = vld [vmem:[%s1 + $0xab0] sm:$0xff]
    %v363 = vld [vmem:[%s1 + $0xab8] sm:$0xff]
    %v364 = vld [vmem:[%s1 + $0xac0] sm:$0xff]
    %v365 = vld [vmem:[%s1 + $0xac8] sm:$0xff]
    %v366 = vld [vmem:[%s1 + $0xad0] sm:$0xff]
    %v367 = vld [vmem:[%s1 + $0xad8] sm:$0xff]
    %v368 = vld [vmem:[%s1 + $0xae0] sm:$0xff]
    %v369 = vld [vmem:[%s1 + $0xae8] sm:$0xff]
    %v370 = vld [vmem:[%s1 + $0xaf0] sm:$0xff]
    %v371 = vld [vmem:[%s1 + $0xaf8] sm:$0xff]
    %v372 = vld [vmem:[%s1 + $0xb00] sm:$0xff]
    %v373 = vld [vmem:[%s1 + $0xb08] sm:$0xff]
    %v374 = vld [vmem:[%s1 + $0xb10] sm:$0xff]
    %v375 = vld [vmem:[%s1 + $0xb18] sm:$0xff]
    %v376 = vld [vmem:[%s1 + $0xb20] sm:$0xff]
    %v377 = vld [vmem:[%s1 + $0xb28] sm:$0xff]
    %v378 = vld [vmem:[%s1 + $0xb30] sm:$0xff]
    %v379 = vld [vmem:[%s1 + $0xb38] sm:$0xff]
    %v380 = vld [vmem:[%s1 + $0xb40] sm:$0xff]
    %v381 = vld [vmem:[%s1 + $0xb48] sm:$0xff]
    %v382 = vld [vmem:[%s1 + $0xb50] sm:$0xff]
    %v383 = vld [vmem:[%s1 + $0xb58] sm:$0xff]
    %v384 = vld [vmem:[%s1 + $0xb60] sm:$0xff]
    %v385 = vld [vmem:[%s1 + $0xb68] sm:$0xff]
    %v386 = vld [vmem:[%s1 + $0xb70] sm:$0xff]
    %v387 = vld [vmem:[%s1 + $0xb78] sm:$0xff]
    %v388 = vld [vmem:[%s1 + $0xb80] sm:$0xff]
    %v389 = vld [vmem:[%s1 + $0xb88] sm:$0xff]
    %v390 = vld [vmem:[%s1 + $0xb90] sm:$0xff]
    %v391 = vld [vmem:[%s1 + $0xb98] sm:$0xff]
    %v392 = vld [vmem:[%s1 + $0xba0] sm:$0xff]
    %v393 = vld [vmem:[%s1 + $0xba8] sm:$0xff]
    %v394 = vld [vmem:[%s1 + $0xbb0] sm:$0xff]
    %v395 = vld [vmem:[%s1 + $0xbb8] sm:$0xff]
    %v396 = vld [vmem:[%s1 + $0xbc0] sm:$0xff]
    %v397 = vld [vmem:[%s1 + $0xbc8] sm:$0xff]
    %v398 = vld [vmem:[%s1 + $0xbd0] sm:$0xff]
    %v399 = vld [vmem:[%s1 + $0xbd8] sm:$0xff]
    %v400 = vld [vmem:[%s1 + $0xbe0] sm:$0xff]
    %v401 = vld [vmem:[%s1 + $0xbe8] sm:$0xff]
    %v402 = vld [vmem:[%s1 + $0xbf0] sm:$0xff]
    %v403 = vld [vmem:[%s1 + $0xbf8] sm:$0xff]
    %v404 = vld [vmem:[%s1 + $0xc00] sm:$0xff]
    %v405 = vld [vmem:[%s1 + $0xc08] sm:$0xff]
    %v406 = vld [vmem:[%s1 + $0xc10] sm:$0xff]
    %v407 = vld [vmem:[%s1 + $0xc18] sm:$0xff]
    %v408 = vld [vmem:[%s1 + $0xc20] sm:$0xff]
    %v409 = vld [vmem:[%s1 + $0xc28] sm:$0xff]
    %v410 = vld [vmem:[%s1 + $0xc30] sm:$0xff]
    %v411 = vld [vmem:[%s1 + $0xc38] sm:$0xff]
    %v412 = vld [vmem:[%s1 + $0xc40] sm:$0xff]
    %v413 = vld [vmem:[%s1 + $0xc48] sm:$0xff]
    %v414 = vld [vmem:[%s1 + $0xc50] sm:$0xff]
    %v415 = vld [vmem:[%s1 + $0xc58] sm:$0xff]
    %v416 = vld [vmem:[%s1 + $0xc60] sm:$0xff]
    %v417 = vld [vmem:[%s1 + $0xc68] sm:$0xff]
    %v418 = vld [vmem:[%s1 + $0xc70] sm:$0xff]
    %v419 = vld [vmem:[%s1 + $0xc78] sm:$0xff]
    %v420 = vld [vmem:[%s1 + $0xc80] sm:$0xff]
    %v421 = vld [vmem:[%s1 + $0xc88] sm:$0xff]
    %v422 = vld [vmem:[%s1 + $0xc90] sm:$0xff]
    %v423 = vld [vmem:[%s1 + $0xc98] sm:$0xff]
    %v424 = vld [vmem:[%s1 + $0xca0] sm:$0xff]
    %v425 = vld [vmem:[%s1 + $0xca8] sm:$0xff]
    %v426 = vld [vmem:[%s1 + $0xcb0] sm:$0xff]
    %v427 = vld [vmem:[%s1 + $0xcb8] sm:$0xff]
    %v428 = vld [vmem:[%s1 + $0xcc0] sm:$0xff]
    %v429 = vld [vmem:[%s1 + $0xcc8] sm:$0xff]
    %v430 = vld [vmem:[%s1 + $0xcd0] sm:$0xff]
    %v431 = vld [vmem:[%s1 + $0xcd8] sm:$0xff]
    %v432 = vld [vmem:[%s1 + $0xce0] sm:$0xff]
    %v433 = vld [vmem:[%s1 + $0xce8] sm:$0xff]
    %v434 = vld [vmem:[%s1 + $0xcf0] sm:$0xff]
    %v435 = vld [vmem:[%s1 + $0xcf8] sm:$0xff]
    %v436 = vld [vmem:[%s1 + $0xd00] sm:$0xff]
    %v437 = vld [vmem:[%s1 + $0xd08] sm:$0xff]
    %v438 = vld [vmem:[%s1 + $0xd10] sm:$0xff]
    %v439 = vld [vmem:[%s1 + $0xd18] sm:$0xff]
    %v440 = vld [vmem:[%s1 + $0xd20] sm:$0xff]
    %v441 = vld [vmem:[%s1 + $0xd28] sm:$0xff]
    %v442 = vld [vmem:[%s1 + $0xd30] sm:$0xff]
    %v443 = vld [vmem:[%s1 + $0xd38] sm:$0xff]
    %v444 = vld [vmem:[%s1 + $0xd40] sm:$0xff]
    %v445 = vld [vmem:[%s1 + $0xd48] sm:$0xff]
    %v446 = vld [vmem:[%s1 + $0xd50] sm:$0xff]
    %v447 = vld [vmem:[%s1 + $0xd58] sm:$0xff]
    %v448 = vld [vmem:[%s1 + $0xd60] sm:$0xff]
    %v449 = vld [vmem:[%s1 + $0xd68] sm:$0xff]
    %v450 = vld [vmem:[%s1 + $0xd70] sm:$0xff]
    %v451 = vld [vmem:[%s1 + $0xd78] sm:$0xff]
    %v452 = vld [vmem:[%s1 + $0xd80] sm:$0xff]
    %v453 = vld [vmem:[%s1 + $0xd88] sm:$0xff]
    %v454 = vld [vmem:[%s1 + $0xd90] sm:$0xff]
    %v455 = vld [vmem:[%s1 + $0xd98] sm:$0xff]
    %v456 = vld [vmem:[%s1 + $0xda0] sm:$0xff]
    %v457 = vld [vmem:[%s1 + $0xda8] sm:$0xff]
    %v458 = vld [vmem:[%s1 + $0xdb0] sm:$0xff]
    %v459 = vld [vmem:[%s1 + $0xdb8] sm:$0xff]
    %v460 = vld [vmem:[%s1 + $0xdc0] sm:$0xff]
    %v461 = vld [vmem:[%s1 + $0xdc8] sm:$0xff]
    %v462 = vld [vmem:[%s1 + $0xdd0] sm:$0xff]
    %v463 = vld [vmem:[%s1 + $0xdd8] sm:$0xff]
    %v464 = vld [vmem:[%s1 + $0xde0] sm:$0xff]
    %v465 = vld [vmem:[%s1 + $0xde8] sm:$0xff]
    %v466 = vld [vmem:[%s1 + $0xdf0] sm:$0xff]
    %v467 = vld [vmem:[%s1 + $0xdf8] sm:$0xff]
    %v468 = vld [vmem:[%s1 + $0xe00] sm:$0xff]
    %v469 = vld [vmem:[%s1 + $0xe08] sm:$0xff]
    %v470 = vld [vmem:[%s1 + $0xe10] sm:$0xff]
    %v471 = vld [vmem:[%s1 + $0xe18] sm:$0xff]
    %v472 = vld [vmem:[%s1 + $0xe20] sm:$0xff]
    %v473 = vld [vmem:[%s1 + $0xe28] sm:$0xff]
    %v474 = vld [vmem:[%s1 + $0xe30] sm:$0xff]
    %v475 = vld [vmem:[%s1 + $0xe38] sm:$0xff]
    %v476 = vld [vmem:[%s1 + $0xe40] sm:$0xff]
    %v477 = vld [vmem:[%s1 + $0xe48] sm:$0xff]
    %v478 = vld [vmem:[%s1 + $0xe50] sm:$0xff]
    %v479 = vld [vmem:[%s1 + $0xe58] sm:$0xff]
    %v480 = vld [vmem:[%s1 + $0xe60] sm:$0xff]
    %v481 = vld [vmem:[%s1 + $0xe68] sm:$0xff]
    %v482 = vld [vmem:[%s1 + $0xe70] sm:$0xff]
    %v483 = vld [vmem:[%s1 + $0xe78] sm:$0xff]
    %v484 = vld [vmem:[%s1 + $0xe80] sm:$0xff]
    %v485 = vld [vmem:[%s1 + $0xe88] sm:$0xff]
    %v486 = vld [vmem:[%s1 + $0xe90] sm:$0xff]
    %v487 = vld [vmem:[%s1 + $0xe98] sm:$0xff]
    %v488 = vld [vmem:[%s1 + $0xea0] sm:$0xff]
    %v489 = vld [vmem:[%s1 + $0xea8] sm:$0xff]
    %v490 = vld [vmem:[%s1 + $0xeb0] sm:$0xff]
    %v491 = vld [vmem:[%s1 + $0xeb8] sm:$0xff]
    %v492 = vld [vmem:[%s1 + $0xec0] sm:$0xff]
    %v493 = vld [vmem:[%s1 + $0xec8] sm:$0xff]
    %v494 = vld [vmem:[%s1 + $0xed0] sm:$0xff]
    %v495 = vld [vmem:[%s1 + $0xed8] sm:$0xff]
    %v496 = vld [vmem:[%s1 + $0xee0] sm:$0xff]
    %v497 = vld [vmem:[%s1 + $0xee8] sm:$0xff]
    %v498 = vld [vmem:[%s1 + $0xef0] sm:$0xff]
    %v499 = vld [vmem:[%s1 + $0xef8] sm:$0xff]
    %v500 = vld [vmem:[%s1 + $0xf00] sm:$0xff]
    %v501 = vld [vmem:[%s1 + $0xf08] sm:$0xff]
    %v502 = vld [vmem:[%s1 + $0xf10] sm:$0xff]
    %v503 = vld [vmem:[%s1 + $0xf18] sm:$0xff]
    %v504 = vld [vmem:[%s1 + $0xf20] sm:$0xff]
    %v505 = vld [vmem:[%s1 + $0xf28] sm:$0xff]
    %v506 = vld [vmem:[%s1 + $0xf30] sm:$0xff]
    %v507 = vld [vmem:[%s1 + $0xf38] sm:$0xff]
    %v508 = vld [vmem:[%s1 + $0xf40] sm:$0xff]
    %v509 = vld [vmem:[%s1 + $0xf48] sm:$0xff]
    %v510 = vld [vmem:[%s1 + $0xf50] sm:$0xff]
    %v511 = vld [vmem:[%s1 + $0xf58] sm:$0xff]
    %v512 = vld [vmem:[%s1 + $0xf60] sm:$0xff]
    %v513 = vld [vmem:[%s1 + $0xf68] sm:$0xff]
    %v514 = vld [vmem:[%s1 + $0xf70] sm:$0xff]
    %v515 = vld [vmem:[%s1 + $0xf78] sm:$0xff]
    %v516 = vld [vmem:[%s1 + $0xf80] sm:$0xff]
    %v517 = vld [vmem:[%s1 + $0xf88] sm:$0xff]
    %v518 = vld [vmem:[%s1 + $0xf90] sm:$0xff]
    %v519 = vld [vmem:[%s1 + $0xf98] sm:$0xff]
    %v520 = vld [vmem:[%s1 + $0xfa0] sm:$0xff]
    %v521 = vld [vmem:[%s1 + $0xfa8] sm:$0xff]
    %v522 = vld [vmem:[%s1 + $0xfb0] sm:$0xff]
    %v523 = vld [vmem:[%s1 + $0xfb8] sm:$0xff]
    %v524 = vld [vmem:[%s1 + $0xfc0] sm:$0xff]
    %v525 = vld [vmem:[%s1 + $0xfc8] sm:$0xff]
    %v526 = vld [vmem:[%s1 + $0xfd0] sm:$0xff]
    %v527 = vld [vmem:[%s1 + $0xfd8] sm:$0xff]
    %v528 = vld [vmem:[%s1 + $0xfe0] sm:$0xff]
    %v529 = vld [vmem:[%s1 + $0xfe8] sm:$0xff]
    %v530 = vld [vmem:[%s1 + $0xff0] sm:$0xff]
    %v531 = vld [vmem:[%s1 + $0xff8] sm:$0xff]
    %v532 = vld [vmem:[%s1 + $0x1000] sm:$0xff]
    %v533 = vld [vmem:[%s1 + $0x1008] sm:$0xff]
    %v534 = vld [vmem:[%s1 + $0x1010] sm:$0xff]
    %v535 = vld [vmem:[%s1 + $0x1018] sm:$0xff]
    %v536 = vld [vmem:[%s1 + $0x1020] sm:$0xff]
    %v537 = vld [vmem:[%s1 + $0x1028] sm:$0xff]
    %v538 = vld [vmem:[%s1 + $0x1030] sm:$0xff]
    %v539 = vld [vmem:[%s1 + $0x1038] sm:$0xff]
    %v540 = vld [vmem:[%s1 + $0x1040] sm:$0xff]
    %v541 = vld [vmem:[%s1 + $0x1048] sm:$0xff]
    %v542 = vld [vmem:[%s1 + $0x1050] sm:$0xff]
    %v543 = vld [vmem:[%s1 + $0x1058] sm:$0xff]
    %v544 = vld [vmem:[%s1 + $0x1060] sm:$0xff]
    %v545 = vld [vmem:[%s1 + $0x1068] sm:$0xff]
    %v546 = vld [vmem:[%s1 + $0x1070] sm:$0xff]
    %v547 = vld [vmem:[%s1 + $0x1078] sm:$0xff]
    %v548 = vld [vmem:[%s1 + $0x1080] sm:$0xff]
    %v549 = vld [vmem:[%s1 + $0x1088] sm:$0xff]
    %v550 = vld [vmem:[%s1 + $0x1090] sm:$0xff]
    %v551 = vld [vmem:[%s1 + $0x1098] sm:$0xff]
    %v552 = vld [vmem:[%s1 + $0x10a0] sm:$0xff]
    %v553 = vld [vmem:[%s1 + $0x10a8] sm:$0xff]
    %v554 = vld [vmem:[%s1 + $0x10b0] sm:$0xff]
    %v555 = vld [vmem:[%s1 + $0x10b8] sm:$0xff]
    %v556 = vld [vmem:[%s1 + $0x10c0] sm:$0xff]
    %v557 = vld [vmem:[%s1 + $0x10c8] sm:$0xff]
    %v558 = vld [vmem:[%s1 + $0x10d0] sm:$0xff]
    %v559 = vld [vmem:[%s1 + $0x10d8] sm:$0xff]
    %v560 = vld [vmem:[%s1 + $0x10e0] sm:$0xff]
    %v561 = vld [vmem:[%s1 + $0x10e8] sm:$0xff]
    %v562 = vld [vmem:[%s1 + $0x10f0] sm:$0xff]
    %v563 = vld [vmem:[%s1 + $0x10f8] sm:$0xff]
    %v564 = vld [vmem:[%s1 + $0x1100] sm:$0xff]
    %v565 = vld [vmem:[%s1 + $0x1108] sm:$0xff]
    %v566 = vld [vmem:[%s1 + $0x1110] sm:$0xff]
    %v567 = vld [vmem:[%s1 + $0x1118] sm:$0xff]
    %v568 = vld [vmem:[%s1 + $0x1120] sm:$0xff]
    %v569 = vld [vmem:[%s1 + $0x1128] sm:$0xff]
    %v570 = vld [vmem:[%s1 + $0x1130] sm:$0xff]
    %v571 = vld [vmem:[%s1 + $0x1138] sm:$0xff]
    %v572 = vld [vmem:[%s1 + $0x1140] sm:$0xff]
    %v573 = vld [vmem:[%s1 + $0x1148] sm:$0xff]
    %v574 = vld [vmem:[%s1 + $0x1150] sm:$0xff]
    %v575 = vld [vmem:[%s1 + $0x1158] sm:$0xff]
    %v576 = vld [vmem:[%s1 + $0x1160] sm:$0xff]
    %v577 = vld [vmem:[%s1 + $0x1168] sm:$0xff]
    %v578 = vld [vmem:[%s1 + $0x1170] sm:$0xff]
    %v579 = vld [vmem:[%s1 + $0x1178] sm:$0xff]
    %v580 = vld [vmem:[%s1 + $0x1180] sm:$0xff]
    %v581 = vld [vmem:[%s1 + $0x1188] sm:$0xff]
    %v582 = vld [vmem:[%s1 + $0x1190] sm:$0xff]
    %v583 = vld [vmem:[%s1 + $0x1198] sm:$0xff]
    %v584 = vld [vmem:[%s1 + $0x11a0] sm:$0xff]
    %v585 = vld [vmem:[%s1 + $0x11a8] sm:$0xff]
    %v586 = vld [vmem:[%s1 + $0x11b0] sm:$0xff]
    %v587 = vld [vmem:[%s1 + $0x11b8] sm:$0xff]
    %v588 = vld [vmem:[%s1 + $0x11c0] sm:$0xff]
    %v589 = vld [vmem:[%s1 + $0x11c8] sm:$0xff]
    %v590 = vld [vmem:[%s1 + $0x11d0] sm:$0xff]
    %v591 = vld [vmem:[%s1 + $0x11d8] sm:$0xff]
    %v592 = vld [vmem:[%s1 + $0x11e0] sm:$0xff]
    %v593 = vld [vmem:[%s1 + $0x11e8] sm:$0xff]
    %v594 = vld [vmem:[%s1 + $0x11f0] sm:$0xff]
    %v595 = vld [vmem:[%s1 + $0x11f8] sm:$0xff]
    %v596 = vld [vmem:[%s2] sm:$0x3]
    %v598 = vperm.slane %v596, 0
    %v599 = vperm.slane %v596, 1
    %603 = vst [vmem:[#allocation1] ss:$9 sm:$0xff] %v15
    %v604 = vld [vmem:[#allocation1] sm:$0xff]
    %v605 = vld [vmem:[#allocation1 + $0x9] sm:$0xff]
    %v606 = vld [vmem:[#allocation1 + $0x12] sm:$0xff]
    %v607 = vld [vmem:[#allocation1 + $0x1b] sm:$0xff]
    %v608 = vld [vmem:[#allocation1 + $0x24] sm:$0xff]
    %v609 = vld [vmem:[#allocation1 + $0x2d] sm:$0xff]
    %v610 = vld [vmem:[#allocation1 + $0x36] sm:$0xff]
    %v611 = vld [vmem:[#allocation1 + $0x3f] sm:$0xff]
    %613 = vst [vmem:[#allocation1] ss:$9 sm:$0xff] %v16
    %v614 = vld [vmem:[#allocation1] sm:$0xff]
    %v615 = vld [vmem:[#allocation1 + $0x9] sm:$0xff]
    %v616 = vld [vmem:[#allocation1 + $0x12] sm:$0xff]
    %v617 = vld [vmem:[#allocation1 + $0x1b] sm:$0xff]
    %v618 = vld [vmem:[#allocation1 + $0x24] sm:$0xff]
    %v619 = vld [vmem:[#allocation1 + $0x2d] sm:$0xff]
    %v620 = vld [vmem:[#allocation1 + $0x36] sm:$0xff]
    %v621 = vld [vmem:[#allocation1 + $0x3f] sm:$0xff]
    %623 = vst [vmem:[#allocation1] ss:$9 sm:$0xff] %v17
    %v624 = vld [vmem:[#allocation1] sm:$0xff]
    %v625 = vld [vmem:[#allocation1 + $0x9] sm:$0xff]
    %v626 = vld [vmem:[#allocation1 + $0x12] sm:$0xff]
    %v627 = vld [vmem:[#allocation1 + $0x1b] sm:$0xff]
    %v628 = vld [vmem:[#allocation1 + $0x24] sm:$0xff]
    %v629 = vld [vmem:[#allocation1 + $0x2d] sm:$0xff]
    %v630 = vld [vmem:[#allocation1 + $0x36] sm:$0xff]
    %v631 = vld [vmem:[#allocation1 + $0x3f] sm:$0xff]
    %633 = vst [vmem:[#allocation1] ss:$9 sm:$0xff] %v18
    %v634 = vld [vmem:[#allocation1] sm:$0xff]
    %v635 = vld [vmem:[#allocation1 + $0x9] sm:$0xff]
    %v636 = vld [vmem:[#allocation1 + $0x12] sm:$0xff]
    %v637 = vld [vmem:[#allocation1 + $0x1b] sm:$0xff]
    %v638 = vld [vmem:[#allocation1 + $0x24] sm:$0xff]
    %v639 = vld [vmem:[#allocation1 + $0x2d] sm:$0xff]
    %v640 = vld [vmem:[#allocation1 + $0x36] sm:$0xff]
    %v641 = vld [vmem:[#allocation1 + $0x3f] sm:$0xff]
    %643 = vst [vmem:[#allocation1] ss:$9 sm:$0xff] %v19
    %v644 = vld [vmem:[#allocation1] sm:$0xff]
    %v645 = vld [vmem:[#allocation1 + $0x9] sm:$0xff]
    %v646 = vld [vmem:[#allocation1 + $0x12] sm:$0xff]
    %v647 = vld [vmem:[#allocation1 + $0x1b] sm:$0xff]
    %v1260 = vunpack.c.l.b16 %v20
    %v1261 = vunpack.c.h.b16 %v20
    %v1262 = vunpack.c.l.b16 %v21
    %v1263 = vunpack.c.h.b16 %v21
    %v1264 = vunpack.c.l.b16 %v22
    %v1265 = vunpack.c.h.b16 %v22
    %v1266 = vunpack.c.l.b16 %v23
    %v1267 = vunpack.c.h.b16 %v23
    %v1268 = vunpack.c.l.b16 %v24
    %v1269 = vunpack.c.h.b16 %v24
    %v1270 = vunpack.c.l.b16 %v25
    %v1271 = vunpack.c.h.b16 %v25
    %v1272 = vunpack.c.l.b16 %v26
    %v1273 = vunpack.c.h.b16 %v26
    %v1274 = vunpack.c.l.b16 %v27
    %v1275 = vunpack.c.h.b16 %v27
    %v1276 = vunpack.c.l.b16 %v28
    %v1277 = vunpack.c.h.b16 %v28
    %v1278 = vunpack.c.l.b16 %v29
    %v1279 = vunpack.c.h.b16 %v29
    %v1280 = vunpack.c.l.b16 %v30
    %v1281 = vunpack.c.h.b16 %v30
    %v1282 = vunpack.c.l.b16 %v31
    %v1283 = vunpack.c.h.b16 %v31
    %v1284 = vunpack.c.l.b16 %v32
    %v1285 = vunpack.c.h.b16 %v32
    %v1286 = vunpack.c.l.b16 %v33
    %v1287 = vunpack.c.h.b16 %v33
    %v1288 = vunpack.c.l.b16 %v34
    %v1289 = vunpack.c.h.b16 %v34
    %v1290 = vunpack.c.l.b16 %v35
    %v1291 = vunpack.c.h.b16 %v35
    %v1292 = vunpack.c.l.b16 %v36
    %v1293 = vunpack.c.h.b16 %v36
    %v1294 = vunpack.c.l.b16 %v37
    %v1295 = vunpack.c.h.b16 %v37
    %v1296 = vunpack.c.l.b16 %v38
    %v1297 = vunpack.c.h.b16 %v38
    %v1298 = vunpack.c.l.b16 %v39
    %v1299 = vunpack.c.h.b16 %v39
    %v1300 = vunpack.c.l.b16 %v40
    %v1301 = vunpack.c.h.b16 %v40
    %v1302 = vunpack.c.l.b16 %v41
    %v1303 = vunpack.c.h.b16 %v41
    %v1304 = vunpack.c.l.b16 %v42
    %v1305 = vunpack.c.h.b16 %v42
    %v1306 = vunpack.c.l.b16 %v43
    %v1307 = vunpack.c.h.b16 %v43
    %v1308 = vunpack.c.l.b16 %v44
    %v1309 = vunpack.c.h.b16 %v44
    %v1310 = vunpack.c.l.b16 %v45
    %v1311 = vunpack.c.h.b16 %v45
    %v1312 = vunpack.c.l.b16 %v46
    %v1313 = vunpack.c.h.b16 %v46
    %v1314 = vunpack.c.l.b16 %v47
    %v1315 = vunpack.c.h.b16 %v47
    %v1316 = vunpack.c.l.b16 %v48
    %v1317 = vunpack.c.h.b16 %v48
    %v1318 = vunpack.c.l.b16 %v49
    %v1319 = vunpack.c.h.b16 %v49
    %v1320 = vunpack.c.l.b16 %v50
    %v1321 = vunpack.c.h.b16 %v50
    %v1322 = vunpack.c.l.b16 %v51
    %v1323 = vunpack.c.h.b16 %v51
    %v1324 = vunpack.c.l.b16 %v52
    %v1325 = vunpack.c.h.b16 %v52
    %v1326 = vunpack.c.l.b16 %v53
    %v1327 = vunpack.c.h.b16 %v53
    %v1328 = vunpack.c.l.b16 %v54
    %v1329 = vunpack.c.h.b16 %v54
    %v1330 = vunpack.c.l.b16 %v55
    %v1331 = vunpack.c.h.b16 %v55
    %v1332 = vunpack.c.l.b16 %v56
    %v1333 = vunpack.c.h.b16 %v56
    %v1334 = vunpack.c.l.b16 %v57
    %v1335 = vunpack.c.h.b16 %v57
    %v1336 = vunpack.c.l.b16 %v58
    %v1337 = vunpack.c.h.b16 %v58
    %v1338 = vunpack.c.l.b16 %v59
    %v1339 = vunpack.c.h.b16 %v59
    %v1340 = vunpack.c.l.b16 %v60
    %v1341 = vunpack.c.h.b16 %v60
    %v1342 = vunpack.c.l.b16 %v61
    %v1343 = vunpack.c.h.b16 %v61
    %v1344 = vunpack.c.l.b16 %v62
    %v1345 = vunpack.c.h.b16 %v62
    %v1346 = vunpack.c.l.b16 %v63
    %v1347 = vunpack.c.h.b16 %v63
    %v1348 = vunpack.c.l.b16 %v64
    %v1349 = vunpack.c.h.b16 %v64
    %v1350 = vunpack.c.l.b16 %v65
    %v1351 = vunpack.c.h.b16 %v65
    %v1352 = vunpack.c.l.b16 %v66
    %v1353 = vunpack.c.h.b16 %v66
    %v1354 = vunpack.c.l.b16 %v67
    %v1355 = vunpack.c.h.b16 %v67
    %v1356 = vunpack.c.l.b16 %v68
    %v1357 = vunpack.c.h.b16 %v68
    %v1358 = vunpack.c.l.b16 %v69
    %v1359 = vunpack.c.h.b16 %v69
    %v1360 = vunpack.c.l.b16 %v70
    %v1361 = vunpack.c.h.b16 %v70
    %v1362 = vunpack.c.l.b16 %v71
    %v1363 = vunpack.c.h.b16 %v71
    %v1364 = vunpack.c.l.b16 %v72
    %v1365 = vunpack.c.h.b16 %v72
    %v1366 = vunpack.c.l.b16 %v73
    %v1367 = vunpack.c.h.b16 %v73
    %v1368 = vunpack.c.l.b16 %v74
    %v1369 = vunpack.c.h.b16 %v74
    %v1370 = vunpack.c.l.b16 %v75
    %v1371 = vunpack.c.h.b16 %v75
    %v1372 = vunpack.c.l.b16 %v76
    %v1373 = vunpack.c.h.b16 %v76
    %v1374 = vunpack.c.l.b16 %v77
    %v1375 = vunpack.c.h.b16 %v77
    %v1376 = vunpack.c.l.b16 %v78
    %v1377 = vunpack.c.h.b16 %v78
    %v1378 = vunpack.c.l.b16 %v79
    %v1379 = vunpack.c.h.b16 %v79
    %v1380 = vunpack.c.l.b16 %v80
    %v1381 = vunpack.c.h.b16 %v80
    %v1382 = vunpack.c.l.b16 %v81
    %v1383 = vunpack.c.h.b16 %v81
    %v1384 = vunpack.c.l.b16 %v82
    %v1385 = vunpack.c.h.b16 %v82
    %v1386 = vunpack.c.l.b16 %v83
    %v1387 = vunpack.c.h.b16 %v83
    %v1388 = vunpack.c.l.b16 %v84
    %v1389 = vunpack.c.h.b16 %v84
    %v1390 = vunpack.c.l.b16 %v85
    %v1391 = vunpack.c.h.b16 %v85
    %v1392 = vunpack.c.l.b16 %v86
    %v1393 = vunpack.c.h.b16 %v86
    %v1394 = vunpack.c.l.b16 %v87
    %v1395 = vunpack.c.h.b16 %v87
    %v1396 = vunpack.c.l.b16 %v88
    %v1397 = vunpack.c.h.b16 %v88
    %v1398 = vunpack.c.l.b16 %v89
    %v1399 = vunpack.c.h.b16 %v89
    %v1400 = vunpack.c.l.b16 %v90
    %v1401 = vunpack.c.h.b16 %v90
    %v1402 = vunpack.c.l.b16 %v91
    %v1403 = vunpack.c.h.b16 %v91
    %v1404 = vunpack.c.l.b16 %v92
    %v1405 = vunpack.c.h.b16 %v92
    %v1406 = vunpack.c.l.b16 %v93
    %v1407 = vunpack.c.h.b16 %v93
    %v1408 = vunpack.c.l.b16 %v94
    %v1409 = vunpack.c.h.b16 %v94
    %v1410 = vunpack.c.l.b16 %v95
    %v1411 = vunpack.c.h.b16 %v95
    %v1412 = vunpack.c.l.b16 %v96
    %v1413 = vunpack.c.h.b16 %v96
    %v1414 = vunpack.c.l.b16 %v97
    %v1415 = vunpack.c.h.b16 %v97
    %v1416 = vunpack.c.l.b16 %v98
    %v1417 = vunpack.c.h.b16 %v98
    %v1418 = vunpack.c.l.b16 %v99
    %v1419 = vunpack.c.h.b16 %v99
    %v1420 = vunpack.c.l.b16 %v100
    %v1421 = vunpack.c.h.b16 %v100
    %v1422 = vunpack.c.l.b16 %v101
    %v1423 = vunpack.c.h.b16 %v101
    %v1424 = vunpack.c.l.b16 %v102
    %v1425 = vunpack.c.h.b16 %v102
    %v1426 = vunpack.c.l.b16 %v103
    %v1427 = vunpack.c.h.b16 %v103
    %v1428 = vunpack.c.l.b16 %v104
    %v1429 = vunpack.c.h.b16 %v104
    %v1430 = vunpack.c.l.b16 %v105
    %v1431 = vunpack.c.h.b16 %v105
    %v1432 = vunpack.c.l.b16 %v106
    %v1433 = vunpack.c.h.b16 %v106
    %v1434 = vunpack.c.l.b16 %v107
    %v1435 = vunpack.c.h.b16 %v107
    %v1436 = vunpack.c.l.b16 %v108
    %v1437 = vunpack.c.h.b16 %v108
    %v1438 = vunpack.c.l.b16 %v109
    %v1439 = vunpack.c.h.b16 %v109
    %v1440 = vunpack.c.l.b16 %v110
    %v1441 = vunpack.c.h.b16 %v110
    %v1442 = vunpack.c.l.b16 %v111
    %v1443 = vunpack.c.h.b16 %v111
    %v1444 = vunpack.c.l.b16 %v112
    %v1445 = vunpack.c.h.b16 %v112
    %v1446 = vunpack.c.l.b16 %v113
    %v1447 = vunpack.c.h.b16 %v113
    %v1448 = vunpack.c.l.b16 %v114
    %v1449 = vunpack.c.h.b16 %v114
    %v1450 = vunpack.c.l.b16 %v115
    %v1451 = vunpack.c.h.b16 %v115
    %v1452 = vunpack.c.l.b16 %v116
    %v1453 = vunpack.c.h.b16 %v116
    %v1454 = vunpack.c.l.b16 %v117
    %v1455 = vunpack.c.h.b16 %v117
    %v1456 = vunpack.c.l.b16 %v118
    %v1457 = vunpack.c.h.b16 %v118
    %v1458 = vunpack.c.l.b16 %v119
    %v1459 = vunpack.c.h.b16 %v119
    %v1460 = vunpack.c.l.b16 %v120
    %v1461 = vunpack.c.h.b16 %v120
    %v1462 = vunpack.c.l.b16 %v121
    %v1463 = vunpack.c.h.b16 %v121
    %v1464 = vunpack.c.l.b16 %v122
    %v1465 = vunpack.c.h.b16 %v122
    %v1466 = vunpack.c.l.b16 %v123
    %v1467 = vunpack.c.h.b16 %v123
    %v1468 = vunpack.c.l.b16 %v124
    %v1469 = vunpack.c.h.b16 %v124
    %v1470 = vunpack.c.l.b16 %v125
    %v1471 = vunpack.c.h.b16 %v125
    %v1472 = vunpack.c.l.b16 %v126
    %v1473 = vunpack.c.h.b16 %v126
    %v1474 = vunpack.c.l.b16 %v127
    %v1475 = vunpack.c.h.b16 %v127
    %v1476 = vunpack.c.l.b16 %v128
    %v1477 = vunpack.c.h.b16 %v128
    %v1478 = vunpack.c.l.b16 %v129
    %v1479 = vunpack.c.h.b16 %v129
    %v1480 = vunpack.c.l.b16 %v130
    %v1481 = vunpack.c.h.b16 %v130
    %v1482 = vunpack.c.l.b16 %v131
    %v1483 = vunpack.c.h.b16 %v131
    %v1484 = vunpack.c.l.b16 %v132
    %v1485 = vunpack.c.h.b16 %v132
    %v1486 = vunpack.c.l.b16 %v133
    %v1487 = vunpack.c.h.b16 %v133
    %v1488 = vunpack.c.l.b16 %v134
    %v1489 = vunpack.c.h.b16 %v134
    %v1490 = vunpack.c.l.b16 %v135
    %v1491 = vunpack.c.h.b16 %v135
    %v1492 = vunpack.c.l.b16 %v136
    %v1493 = vunpack.c.h.b16 %v136
    %v1494 = vunpack.c.l.b16 %v137
    %v1495 = vunpack.c.h.b16 %v137
    %v1496 = vunpack.c.l.b16 %v138
    %v1497 = vunpack.c.h.b16 %v138
    %v1498 = vunpack.c.l.b16 %v139
    %v1499 = vunpack.c.h.b16 %v139
    %v1500 = vunpack.c.l.b16 %v140
    %v1501 = vunpack.c.h.b16 %v140
    %v1502 = vunpack.c.l.b16 %v141
    %v1503 = vunpack.c.h.b16 %v141
    %v1504 = vunpack.c.l.b16 %v142
    %v1505 = vunpack.c.h.b16 %v142
    %v1506 = vunpack.c.l.b16 %v143
    %v1507 = vunpack.c.h.b16 %v143
    %v1508 = vunpack.c.l.b16 %v144
    %v1509 = vunpack.c.h.b16 %v144
    %v1510 = vunpack.c.l.b16 %v145
    %v1511 = vunpack.c.h.b16 %v145
    %v1512 = vunpack.c.l.b16 %v146
    %v1513 = vunpack.c.h.b16 %v146
    %v1514 = vunpack.c.l.b16 %v147
    %v1515 = vunpack.c.h.b16 %v147
    %v1516 = vunpack.c.l.b16 %v148
    %v1517 = vunpack.c.h.b16 %v148
    %v1518 = vunpack.c.l.b16 %v149
    %v1519 = vunpack.c.h.b16 %v149
    %v1520 = vunpack.c.l.b16 %v150
    %v1521 = vunpack.c.h.b16 %v150
    %v1522 = vunpack.c.l.b16 %v151
    %v1523 = vunpack.c.h.b16 %v151
    %v1524 = vunpack.c.l.b16 %v152
    %v1525 = vunpack.c.h.b16 %v152
    %v1526 = vunpack.c.l.b16 %v153
    %v1527 = vunpack.c.h.b16 %v153
    %v1528 = vunpack.c.l.b16 %v154
    %v1529 = vunpack.c.h.b16 %v154
    %v1530 = vunpack.c.l.b16 %v155
    %v1531 = vunpack.c.h.b16 %v155
    %v1532 = vunpack.c.l.b16 %v156
    %v1533 = vunpack.c.h.b16 %v156
    %v1534 = vunpack.c.l.b16 %v157
    %v1535 = vunpack.c.h.b16 %v157
    %v1536 = vunpack.c.l.b16 %v158
    %v1537 = vunpack.c.h.b16 %v158
    %v1538 = vunpack.c.l.b16 %v159
    %v1539 = vunpack.c.h.b16 %v159
    %v1540 = vunpack.c.l.b16 %v160
    %v1541 = vunpack.c.h.b16 %v160
    %v1542 = vunpack.c.l.b16 %v161
    %v1543 = vunpack.c.h.b16 %v161
    %v1544 = vunpack.c.l.b16 %v162
    %v1545 = vunpack.c.h.b16 %v162
    %v1546 = vunpack.c.l.b16 %v163
    %v1547 = vunpack.c.h.b16 %v163
    %v1548 = vunpack.c.l.b16 %v164
    %v1549 = vunpack.c.h.b16 %v164
    %v1550 = vunpack.c.l.b16 %v165
    %v1551 = vunpack.c.h.b16 %v165
    %v1552 = vunpack.c.l.b16 %v166
    %v1553 = vunpack.c.h.b16 %v166
    %v1554 = vunpack.c.l.b16 %v167
    %v1555 = vunpack.c.h.b16 %v167
    %v1556 = vunpack.c.l.b16 %v168
    %v1557 = vunpack.c.h.b16 %v168
    %v1558 = vunpack.c.l.b16 %v169
    %v1559 = vunpack.c.h.b16 %v169
    %v1560 = vunpack.c.l.b16 %v170
    %v1561 = vunpack.c.h.b16 %v170
    %v1562 = vunpack.c.l.b16 %v171
    %v1563 = vunpack.c.h.b16 %v171
    %v1564 = vunpack.c.l.b16 %v172
    %v1565 = vunpack.c.h.b16 %v172
    %v1566 = vunpack.c.l.b16 %v173
    %v1567 = vunpack.c.h.b16 %v173
    %v1568 = vunpack.c.l.b16 %v174
    %v1569 = vunpack.c.h.b16 %v174
    %v1570 = vunpack.c.l.b16 %v175
    %v1571 = vunpack.c.h.b16 %v175
    %v1572 = vunpack.c.l.b16 %v176
    %v1573 = vunpack.c.h.b16 %v176
    %v1574 = vunpack.c.l.b16 %v177
    %v1575 = vunpack.c.h.b16 %v177
    %v1576 = vunpack.c.l.b16 %v178
    %v1577 = vunpack.c.h.b16 %v178
    %v1578 = vunpack.c.l.b16 %v179
    %v1579 = vunpack.c.h.b16 %v179
    %v1580 = vunpack.c.l.b16 %v180
    %v1581 = vunpack.c.h.b16 %v180
    %v1582 = vunpack.c.l.b16 %v181
    %v1583 = vunpack.c.h.b16 %v181
    %v1584 = vunpack.c.l.b16 %v182
    %v1585 = vunpack.c.h.b16 %v182
    %v1586 = vunpack.c.l.b16 %v183
    %v1587 = vunpack.c.h.b16 %v183
    %v1588 = vunpack.c.l.b16 %v184
    %v1589 = vunpack.c.h.b16 %v184
    %v1590 = vunpack.c.l.b16 %v185
    %v1591 = vunpack.c.h.b16 %v185
    %v1592 = vunpack.c.l.b16 %v186
    %v1593 = vunpack.c.h.b16 %v186
    %v1594 = vunpack.c.l.b16 %v187
    %v1595 = vunpack.c.h.b16 %v187
    %v1596 = vunpack.c.l.b16 %v188
    %v1597 = vunpack.c.h.b16 %v188
    %v1598 = vunpack.c.l.b16 %v189
    %v1599 = vunpack.c.h.b16 %v189
    %v1600 = vunpack.c.l.b16 %v190
    %v1601 = vunpack.c.h.b16 %v190
    %v1602 = vunpack.c.l.b16 %v191
    %v1603 = vunpack.c.h.b16 %v191
    %v1604 = vunpack.c.l.b16 %v192
    %v1605 = vunpack.c.h.b16 %v192
    %v1606 = vunpack.c.l.b16 %v193
    %v1607 = vunpack.c.h.b16 %v193
    %v1608 = vunpack.c.l.b16 %v194
    %v1609 = vunpack.c.h.b16 %v194
    %v1610 = vunpack.c.l.b16 %v195
    %v1611 = vunpack.c.h.b16 %v195
    %v1612 = vunpack.c.l.b16 %v196
    %v1613 = vunpack.c.h.b16 %v196
    %v1614 = vunpack.c.l.b16 %v197
    %v1615 = vunpack.c.h.b16 %v197
    %v1616 = vunpack.c.l.b16 %v198
    %v1617 = vunpack.c.h.b16 %v198
    %v1618 = vunpack.c.l.b16 %v199
    %v1619 = vunpack.c.h.b16 %v199
    %v1620 = vunpack.c.l.b16 %v200
    %v1621 = vunpack.c.h.b16 %v200
    %v1622 = vunpack.c.l.b16 %v201
    %v1623 = vunpack.c.h.b16 %v201
    %v1624 = vunpack.c.l.b16 %v202
    %v1625 = vunpack.c.h.b16 %v202
    %v1626 = vunpack.c.l.b16 %v203
    %v1627 = vunpack.c.h.b16 %v203
    %v1628 = vunpack.c.l.b16 %v204
    %v1629 = vunpack.c.h.b16 %v204
    %v1630 = vunpack.c.l.b16 %v205
    %v1631 = vunpack.c.h.b16 %v205
    %v1632 = vunpack.c.l.b16 %v206
    %v1633 = vunpack.c.h.b16 %v206
    %v1634 = vunpack.c.l.b16 %v207
    %v1635 = vunpack.c.h.b16 %v207
    %v1636 = vunpack.c.l.b16 %v208
    %v1637 = vunpack.c.h.b16 %v208
    %v1638 = vunpack.c.l.b16 %v209
    %v1639 = vunpack.c.h.b16 %v209
    %v1640 = vunpack.c.l.b16 %v210
    %v1641 = vunpack.c.h.b16 %v210
    %v1642 = vunpack.c.l.b16 %v211
    %v1643 = vunpack.c.h.b16 %v211
    %v1644 = vunpack.c.l.b16 %v212
    %v1645 = vunpack.c.h.b16 %v212
    %v1646 = vunpack.c.l.b16 %v213
    %v1647 = vunpack.c.h.b16 %v213
    %v1648 = vunpack.c.l.b16 %v214
    %v1649 = vunpack.c.h.b16 %v214
    %v1650 = vunpack.c.l.b16 %v215
    %v1651 = vunpack.c.h.b16 %v215
    %v1652 = vunpack.c.l.b16 %v216
    %v1653 = vunpack.c.h.b16 %v216
    %v1654 = vunpack.c.l.b16 %v217
    %v1655 = vunpack.c.h.b16 %v217
    %v1656 = vunpack.c.l.b16 %v218
    %v1657 = vunpack.c.h.b16 %v218
    %v1658 = vunpack.c.l.b16 %v219
    %v1659 = vunpack.c.h.b16 %v219
    %v1660 = vunpack.c.l.b16 %v220
    %v1661 = vunpack.c.h.b16 %v220
    %v1662 = vunpack.c.l.b16 %v221
    %v1663 = vunpack.c.h.b16 %v221
    %v1664 = vunpack.c.l.b16 %v222
    %v1665 = vunpack.c.h.b16 %v222
    %v1666 = vunpack.c.l.b16 %v223
    %v1667 = vunpack.c.h.b16 %v223
    %v1668 = vunpack.c.l.b16 %v224
    %v1669 = vunpack.c.h.b16 %v224
    %v1670 = vunpack.c.l.b16 %v225
    %v1671 = vunpack.c.h.b16 %v225
    %v1672 = vunpack.c.l.b16 %v226
    %v1673 = vunpack.c.h.b16 %v226
    %v1674 = vunpack.c.l.b16 %v227
    %v1675 = vunpack.c.h.b16 %v227
    %v1676 = vunpack.c.l.b16 %v228
    %v1677 = vunpack.c.h.b16 %v228
    %v1678 = vunpack.c.l.b16 %v229
    %v1679 = vunpack.c.h.b16 %v229
    %v1680 = vunpack.c.l.b16 %v230
    %v1681 = vunpack.c.h.b16 %v230
    %v1682 = vunpack.c.l.b16 %v231
    %v1683 = vunpack.c.h.b16 %v231
    %v1684 = vunpack.c.l.b16 %v232
    %v1685 = vunpack.c.h.b16 %v232
    %v1686 = vunpack.c.l.b16 %v233
    %v1687 = vunpack.c.h.b16 %v233
    %v1688 = vunpack.c.l.b16 %v234
    %v1689 = vunpack.c.h.b16 %v234
    %v1690 = vunpack.c.l.b16 %v235
    %v1691 = vunpack.c.h.b16 %v235
    %v1692 = vunpack.c.l.b16 %v236
    %v1693 = vunpack.c.h.b16 %v236
    %v1694 = vunpack.c.l.b16 %v237
    %v1695 = vunpack.c.h.b16 %v237
    %v1696 = vunpack.c.l.b16 %v238
    %v1697 = vunpack.c.h.b16 %v238
    %v1698 = vunpack.c.l.b16 %v239
    %v1699 = vunpack.c.h.b16 %v239
    %v1700 = vunpack.c.l.b16 %v240
    %v1701 = vunpack.c.h.b16 %v240
    %v1702 = vunpack.c.l.b16 %v241
    %v1703 = vunpack.c.h.b16 %v241
    %v1704 = vunpack.c.l.b16 %v242
    %v1705 = vunpack.c.h.b16 %v242
    %v1706 = vunpack.c.l.b16 %v243
    %v1707 = vunpack.c.h.b16 %v243
    %v1708 = vunpack.c.l.b16 %v244
    %v1709 = vunpack.c.h.b16 %v244
    %v1710 = vunpack.c.l.b16 %v245
    %v1711 = vunpack.c.h.b16 %v245
    %v1712 = vunpack.c.l.b16 %v246
    %v1713 = vunpack.c.h.b16 %v246
    %v1714 = vunpack.c.l.b16 %v247
    %v1715 = vunpack.c.h.b16 %v247
    %v1716 = vunpack.c.l.b16 %v248
    %v1717 = vunpack.c.h.b16 %v248
    %v1718 = vunpack.c.l.b16 %v249
    %v1719 = vunpack.c.h.b16 %v249
    %v1720 = vunpack.c.l.b16 %v250
    %v1721 = vunpack.c.h.b16 %v250
    %v1722 = vunpack.c.l.b16 %v251
    %v1723 = vunpack.c.h.b16 %v251
    %v1724 = vunpack.c.l.b16 %v252
    %v1725 = vunpack.c.h.b16 %v252
    %v1726 = vunpack.c.l.b16 %v253
    %v1727 = vunpack.c.h.b16 %v253
    %v1728 = vunpack.c.l.b16 %v254
    %v1729 = vunpack.c.h.b16 %v254
    %v1730 = vunpack.c.l.b16 %v255
    %v1731 = vunpack.c.h.b16 %v255
    %v1732 = vunpack.c.l.b16 %v256
    %v1733 = vunpack.c.h.b16 %v256
    %v1734 = vunpack.c.l.b16 %v257
    %v1735 = vunpack.c.h.b16 %v257
    %v1736 = vunpack.c.l.b16 %v258
    %v1737 = vunpack.c.h.b16 %v258
    %v1738 = vunpack.c.l.b16 %v259
    %v1739 = vunpack.c.h.b16 %v259
    %v1740 = vunpack.c.l.b16 %v260
    %v1741 = vunpack.c.h.b16 %v260
    %v1742 = vunpack.c.l.b16 %v261
    %v1743 = vunpack.c.h.b16 %v261
    %v1744 = vunpack.c.l.b16 %v262
    %v1745 = vunpack.c.h.b16 %v262
    %v1746 = vunpack.c.l.b16 %v263
    %v1747 = vunpack.c.h.b16 %v263
    %v1748 = vunpack.c.l.b16 %v264
    %v1749 = vunpack.c.h.b16 %v264
    %v1750 = vunpack.c.l.b16 %v265
    %v1751 = vunpack.c.h.b16 %v265
    %v1752 = vunpack.c.l.b16 %v266
    %v1753 = vunpack.c.h.b16 %v266
    %v1754 = vunpack.c.l.b16 %v267
    %v1755 = vunpack.c.h.b16 %v267
    %v1756 = vunpack.c.l.b16 %v268
    %v1757 = vunpack.c.h.b16 %v268
    %v1758 = vunpack.c.l.b16 %v269
    %v1759 = vunpack.c.h.b16 %v269
    %v1760 = vunpack.c.l.b16 %v270
    %v1761 = vunpack.c.h.b16 %v270
    %v1762 = vunpack.c.l.b16 %v271
    %v1763 = vunpack.c.h.b16 %v271
    %v1764 = vunpack.c.l.b16 %v272
    %v1765 = vunpack.c.h.b16 %v272
    %v1766 = vunpack.c.l.b16 %v273
    %v1767 = vunpack.c.h.b16 %v273
    %v1768 = vunpack.c.l.b16 %v274
    %v1769 = vunpack.c.h.b16 %v274
    %v1770 = vunpack.c.l.b16 %v275
    %v1771 = vunpack.c.h.b16 %v275
    %v1772 = vunpack.c.l.b16 %v276
    %v1773 = vunpack.c.h.b16 %v276
    %v1774 = vunpack.c.l.b16 %v277
    %v1775 = vunpack.c.h.b16 %v277
    %v1776 = vunpack.c.l.b16 %v278
    %v1777 = vunpack.c.h.b16 %v278
    %v1778 = vunpack.c.l.b16 %v279
    %v1779 = vunpack.c.h.b16 %v279
    %v1780 = vunpack.c.l.b16 %v280
    %v1781 = vunpack.c.h.b16 %v280
    %v1782 = vunpack.c.l.b16 %v281
    %v1783 = vunpack.c.h.b16 %v281
    %v1784 = vunpack.c.l.b16 %v282
    %v1785 = vunpack.c.h.b16 %v282
    %v1786 = vunpack.c.l.b16 %v283
    %v1787 = vunpack.c.h.b16 %v283
    %v1788 = vunpack.c.l.b16 %v284
    %v1789 = vunpack.c.h.b16 %v284
    %v1790 = vunpack.c.l.b16 %v285
    %v1791 = vunpack.c.h.b16 %v285
    %v1792 = vunpack.c.l.b16 %v286
    %v1793 = vunpack.c.h.b16 %v286
    %v1794 = vunpack.c.l.b16 %v287
    %v1795 = vunpack.c.h.b16 %v287
    %v1796 = vunpack.c.l.b16 %v288
    %v1797 = vunpack.c.h.b16 %v288
    %v1798 = vunpack.c.l.b16 %v289
    %v1799 = vunpack.c.h.b16 %v289
    %v1800 = vunpack.c.l.b16 %v290
    %v1801 = vunpack.c.h.b16 %v290
    %v1802 = vunpack.c.l.b16 %v291
    %v1803 = vunpack.c.h.b16 %v291
    %v1804 = vunpack.c.l.b16 %v292
    %v1805 = vunpack.c.h.b16 %v292
    %v1806 = vunpack.c.l.b16 %v293
    %v1807 = vunpack.c.h.b16 %v293
    %v1808 = vunpack.c.l.b16 %v294
    %v1809 = vunpack.c.h.b16 %v294
    %v1810 = vunpack.c.l.b16 %v295
    %v1811 = vunpack.c.h.b16 %v295
    %v1812 = vunpack.c.l.b16 %v296
    %v1813 = vunpack.c.h.b16 %v296
    %v1814 = vunpack.c.l.b16 %v297
    %v1815 = vunpack.c.h.b16 %v297
    %v1816 = vunpack.c.l.b16 %v298
    %v1817 = vunpack.c.h.b16 %v298
    %v1818 = vunpack.c.l.b16 %v299
    %v1819 = vunpack.c.h.b16 %v299
    %v1820 = vunpack.c.l.b16 %v300
    %v1821 = vunpack.c.h.b16 %v300
    %v1822 = vunpack.c.l.b16 %v301
    %v1823 = vunpack.c.h.b16 %v301
    %v1824 = vunpack.c.l.b16 %v302
    %v1825 = vunpack.c.h.b16 %v302
    %v1826 = vunpack.c.l.b16 %v303
    %v1827 = vunpack.c.h.b16 %v303
    %v1828 = vunpack.c.l.b16 %v304
    %v1829 = vunpack.c.h.b16 %v304
    %v1830 = vunpack.c.l.b16 %v305
    %v1831 = vunpack.c.h.b16 %v305
    %v1832 = vunpack.c.l.b16 %v306
    %v1833 = vunpack.c.h.b16 %v306
    %v1834 = vunpack.c.l.b16 %v307
    %v1835 = vunpack.c.h.b16 %v307
    %v1836 = vunpack.c.l.b16 %v308
    %v1837 = vunpack.c.h.b16 %v308
    %v1838 = vunpack.c.l.b16 %v309
    %v1839 = vunpack.c.h.b16 %v309
    %v1840 = vunpack.c.l.b16 %v310
    %v1841 = vunpack.c.h.b16 %v310
    %v1842 = vunpack.c.l.b16 %v311
    %v1843 = vunpack.c.h.b16 %v311
    %v1844 = vunpack.c.l.b16 %v312
    %v1845 = vunpack.c.h.b16 %v312
    %v1846 = vunpack.c.l.b16 %v313
    %v1847 = vunpack.c.h.b16 %v313
    %v1848 = vunpack.c.l.b16 %v314
    %v1849 = vunpack.c.h.b16 %v314
    %v1850 = vunpack.c.l.b16 %v315
    %v1851 = vunpack.c.h.b16 %v315
    %v1852 = vunpack.c.l.b16 %v316
    %v1853 = vunpack.c.h.b16 %v316
    %v1854 = vunpack.c.l.b16 %v317
    %v1855 = vunpack.c.h.b16 %v317
    %v1856 = vunpack.c.l.b16 %v318
    %v1857 = vunpack.c.h.b16 %v318
    %v1858 = vunpack.c.l.b16 %v319
    %v1859 = vunpack.c.h.b16 %v319
    %v1860 = vunpack.c.l.b16 %v320
    %v1861 = vunpack.c.h.b16 %v320
    %v1862 = vunpack.c.l.b16 %v321
    %v1863 = vunpack.c.h.b16 %v321
    %v1864 = vunpack.c.l.b16 %v322
    %v1865 = vunpack.c.h.b16 %v322
    %v1866 = vunpack.c.l.b16 %v323
    %v1867 = vunpack.c.h.b16 %v323
    %v1868 = vunpack.c.l.b16 %v324
    %v1869 = vunpack.c.h.b16 %v324
    %v1870 = vunpack.c.l.b16 %v325
    %v1871 = vunpack.c.h.b16 %v325
    %v1872 = vunpack.c.l.b16 %v326
    %v1873 = vunpack.c.h.b16 %v326
    %v1874 = vunpack.c.l.b16 %v327
    %v1875 = vunpack.c.h.b16 %v327
    %v1876 = vunpack.c.l.b16 %v328
    %v1877 = vunpack.c.h.b16 %v328
    %v1878 = vunpack.c.l.b16 %v329
    %v1879 = vunpack.c.h.b16 %v329
    %v1880 = vunpack.c.l.b16 %v330
    %v1881 = vunpack.c.h.b16 %v330
    %v1882 = vunpack.c.l.b16 %v331
    %v1883 = vunpack.c.h.b16 %v331
    %v1884 = vunpack.c.l.b16 %v332
    %v1885 = vunpack.c.h.b16 %v332
    %v1886 = vunpack.c.l.b16 %v333
    %v1887 = vunpack.c.h.b16 %v333
    %v1888 = vunpack.c.l.b16 %v334
    %v1889 = vunpack.c.h.b16 %v334
    %v1890 = vunpack.c.l.b16 %v335
    %v1891 = vunpack.c.h.b16 %v335
    %v1892 = vunpack.c.l.b16 %v336
    %v1893 = vunpack.c.h.b16 %v336
    %v1894 = vunpack.c.l.b16 %v337
    %v1895 = vunpack.c.h.b16 %v337
    %v1896 = vunpack.c.l.b16 %v338
    %v1897 = vunpack.c.h.b16 %v338
    %v1898 = vunpack.c.l.b16 %v339
    %v1899 = vunpack.c.h.b16 %v339
    %v1900 = vunpack.c.l.b16 %v340
    %v1901 = vunpack.c.h.b16 %v340
    %v1902 = vunpack.c.l.b16 %v341
    %v1903 = vunpack.c.h.b16 %v341
    %v1904 = vunpack.c.l.b16 %v342
    %v1905 = vunpack.c.h.b16 %v342
    %v1906 = vunpack.c.l.b16 %v343
    %v1907 = vunpack.c.h.b16 %v343
    %v1908 = vunpack.c.l.b16 %v344
    %v1909 = vunpack.c.h.b16 %v344
    %v1910 = vunpack.c.l.b16 %v345
    %v1911 = vunpack.c.h.b16 %v345
    %v1912 = vunpack.c.l.b16 %v346
    %v1913 = vunpack.c.h.b16 %v346
    %v1914 = vunpack.c.l.b16 %v347
    %v1915 = vunpack.c.h.b16 %v347
    %v1916 = vunpack.c.l.b16 %v348
    %v1917 = vunpack.c.h.b16 %v348
    %v1918 = vunpack.c.l.b16 %v349
    %v1919 = vunpack.c.h.b16 %v349
    %v1920 = vunpack.c.l.b16 %v350
    %v1921 = vunpack.c.h.b16 %v350
    %v1922 = vunpack.c.l.b16 %v351
    %v1923 = vunpack.c.h.b16 %v351
    %v1924 = vunpack.c.l.b16 %v352
    %v1925 = vunpack.c.h.b16 %v352
    %v1926 = vunpack.c.l.b16 %v353
    %v1927 = vunpack.c.h.b16 %v353
    %v1928 = vunpack.c.l.b16 %v354
    %v1929 = vunpack.c.h.b16 %v354
    %v1930 = vunpack.c.l.b16 %v355
    %v1931 = vunpack.c.h.b16 %v355
    %v1932 = vunpack.c.l.b16 %v356
    %v1933 = vunpack.c.h.b16 %v356
    %v1934 = vunpack.c.l.b16 %v357
    %v1935 = vunpack.c.h.b16 %v357
    %v1936 = vunpack.c.l.b16 %v358
    %v1937 = vunpack.c.h.b16 %v358
    %v1938 = vunpack.c.l.b16 %v359
    %v1939 = vunpack.c.h.b16 %v359
    %v1940 = vunpack.c.l.b16 %v360
    %v1941 = vunpack.c.h.b16 %v360
    %v1942 = vunpack.c.l.b16 %v361
    %v1943 = vunpack.c.h.b16 %v361
    %v1944 = vunpack.c.l.b16 %v362
    %v1945 = vunpack.c.h.b16 %v362
    %v1946 = vunpack.c.l.b16 %v363
    %v1947 = vunpack.c.h.b16 %v363
    %v1948 = vunpack.c.l.b16 %v364
    %v1949 = vunpack.c.h.b16 %v364
    %v1950 = vunpack.c.l.b16 %v365
    %v1951 = vunpack.c.h.b16 %v365
    %v1952 = vunpack.c.l.b16 %v366
    %v1953 = vunpack.c.h.b16 %v366
    %v1954 = vunpack.c.l.b16 %v367
    %v1955 = vunpack.c.h.b16 %v367
    %v1956 = vunpack.c.l.b16 %v368
    %v1957 = vunpack.c.h.b16 %v368
    %v1958 = vunpack.c.l.b16 %v369
    %v1959 = vunpack.c.h.b16 %v369
    %v1960 = vunpack.c.l.b16 %v370
    %v1961 = vunpack.c.h.b16 %v370
    %v1962 = vunpack.c.l.b16 %v371
    %v1963 = vunpack.c.h.b16 %v371
    %v1964 = vunpack.c.l.b16 %v372
    %v1965 = vunpack.c.h.b16 %v372
    %v1966 = vunpack.c.l.b16 %v373
    %v1967 = vunpack.c.h.b16 %v373
    %v1968 = vunpack.c.l.b16 %v374
    %v1969 = vunpack.c.h.b16 %v374
    %v1970 = vunpack.c.l.b16 %v375
    %v1971 = vunpack.c.h.b16 %v375
    %v1972 = vunpack.c.l.b16 %v376
    %v1973 = vunpack.c.h.b16 %v376
    %v1974 = vunpack.c.l.b16 %v377
    %v1975 = vunpack.c.h.b16 %v377
    %v1976 = vunpack.c.l.b16 %v378
    %v1977 = vunpack.c.h.b16 %v378
    %v1978 = vunpack.c.l.b16 %v379
    %v1979 = vunpack.c.h.b16 %v379
    %v1980 = vunpack.c.l.b16 %v380
    %v1981 = vunpack.c.h.b16 %v380
    %v1982 = vunpack.c.l.b16 %v381
    %v1983 = vunpack.c.h.b16 %v381
    %v1984 = vunpack.c.l.b16 %v382
    %v1985 = vunpack.c.h.b16 %v382
    %v1986 = vunpack.c.l.b16 %v383
    %v1987 = vunpack.c.h.b16 %v383
    %v1988 = vunpack.c.l.b16 %v384
    %v1989 = vunpack.c.h.b16 %v384
    %v1990 = vunpack.c.l.b16 %v385
    %v1991 = vunpack.c.h.b16 %v385
    %v1992 = vunpack.c.l.b16 %v386
    %v1993 = vunpack.c.h.b16 %v386
    %v1994 = vunpack.c.l.b16 %v387
    %v1995 = vunpack.c.h.b16 %v387
    %v1996 = vunpack.c.l.b16 %v388
    %v1997 = vunpack.c.h.b16 %v388
    %v1998 = vunpack.c.l.b16 %v389
    %v1999 = vunpack.c.h.b16 %v389
    %v2000 = vunpack.c.l.b16 %v390
    %v2001 = vunpack.c.h.b16 %v390
    %v2002 = vunpack.c.l.b16 %v391
    %v2003 = vunpack.c.h.b16 %v391
    %v2004 = vunpack.c.l.b16 %v392
    %v2005 = vunpack.c.h.b16 %v392
    %v2006 = vunpack.c.l.b16 %v393
    %v2007 = vunpack.c.h.b16 %v393
    %v2008 = vunpack.c.l.b16 %v394
    %v2009 = vunpack.c.h.b16 %v394
    %v2010 = vunpack.c.l.b16 %v395
    %v2011 = vunpack.c.h.b16 %v395
    %v2012 = vunpack.c.l.b16 %v396
    %v2013 = vunpack.c.h.b16 %v396
    %v2014 = vunpack.c.l.b16 %v397
    %v2015 = vunpack.c.h.b16 %v397
    %v2016 = vunpack.c.l.b16 %v398
    %v2017 = vunpack.c.h.b16 %v398
    %v2018 = vunpack.c.l.b16 %v399
    %v2019 = vunpack.c.h.b16 %v399
    %v2020 = vunpack.c.l.b16 %v400
    %v2021 = vunpack.c.h.b16 %v400
    %v2022 = vunpack.c.l.b16 %v401
    %v2023 = vunpack.c.h.b16 %v401
    %v2024 = vunpack.c.l.b16 %v402
    %v2025 = vunpack.c.h.b16 %v402
    %v2026 = vunpack.c.l.b16 %v403
    %v2027 = vunpack.c.h.b16 %v403
    %v2028 = vunpack.c.l.b16 %v404
    %v2029 = vunpack.c.h.b16 %v404
    %v2030 = vunpack.c.l.b16 %v405
    %v2031 = vunpack.c.h.b16 %v405
    %v2032 = vunpack.c.l.b16 %v406
    %v2033 = vunpack.c.h.b16 %v406
    %v2034 = vunpack.c.l.b16 %v407
    %v2035 = vunpack.c.h.b16 %v407
    %v2036 = vunpack.c.l.b16 %v408
    %v2037 = vunpack.c.h.b16 %v408
    %v2038 = vunpack.c.l.b16 %v409
    %v2039 = vunpack.c.h.b16 %v409
    %v2040 = vunpack.c.l.b16 %v410
    %v2041 = vunpack.c.h.b16 %v410
    %v2042 = vunpack.c.l.b16 %v411
    %v2043 = vunpack.c.h.b16 %v411
    %v2044 = vunpack.c.l.b16 %v412
    %v2045 = vunpack.c.h.b16 %v412
    %v2046 = vunpack.c.l.b16 %v413
    %v2047 = vunpack.c.h.b16 %v413
    %v2048 = vunpack.c.l.b16 %v414
    %v2049 = vunpack.c.h.b16 %v414
    %v2050 = vunpack.c.l.b16 %v415
    %v2051 = vunpack.c.h.b16 %v415
    %v2052 = vunpack.c.l.b16 %v416
    %v2053 = vunpack.c.h.b16 %v416
    %v2054 = vunpack.c.l.b16 %v417
    %v2055 = vunpack.c.h.b16 %v417
    %v2056 = vunpack.c.l.b16 %v418
    %v2057 = vunpack.c.h.b16 %v418
    %v2058 = vunpack.c.l.b16 %v419
    %v2059 = vunpack.c.h.b16 %v419
    %v2060 = vunpack.c.l.b16 %v420
    %v2061 = vunpack.c.h.b16 %v420
    %v2062 = vunpack.c.l.b16 %v421
    %v2063 = vunpack.c.h.b16 %v421
    %v2064 = vunpack.c.l.b16 %v422
    %v2065 = vunpack.c.h.b16 %v422
    %v2066 = vunpack.c.l.b16 %v423
    %v2067 = vunpack.c.h.b16 %v423
    %v2068 = vunpack.c.l.b16 %v424
    %v2069 = vunpack.c.h.b16 %v424
    %v2070 = vunpack.c.l.b16 %v425
    %v2071 = vunpack.c.h.b16 %v425
    %v2072 = vunpack.c.l.b16 %v426
    %v2073 = vunpack.c.h.b16 %v426
    %v2074 = vunpack.c.l.b16 %v427
    %v2075 = vunpack.c.h.b16 %v427
    %v2076 = vunpack.c.l.b16 %v428
    %v2077 = vunpack.c.h.b16 %v428
    %v2078 = vunpack.c.l.b16 %v429
    %v2079 = vunpack.c.h.b16 %v429
    %v2080 = vunpack.c.l.b16 %v430
    %v2081 = vunpack.c.h.b16 %v430
    %v2082 = vunpack.c.l.b16 %v431
    %v2083 = vunpack.c.h.b16 %v431
    %v2084 = vunpack.c.l.b16 %v432
    %v2085 = vunpack.c.h.b16 %v432
    %v2086 = vunpack.c.l.b16 %v433
    %v2087 = vunpack.c.h.b16 %v433
    %v2088 = vunpack.c.l.b16 %v434
    %v2089 = vunpack.c.h.b16 %v434
    %v2090 = vunpack.c.l.b16 %v435
    %v2091 = vunpack.c.h.b16 %v435
    %v2092 = vunpack.c.l.b16 %v436
    %v2093 = vunpack.c.h.b16 %v436
    %v2094 = vunpack.c.l.b16 %v437
    %v2095 = vunpack.c.h.b16 %v437
    %v2096 = vunpack.c.l.b16 %v438
    %v2097 = vunpack.c.h.b16 %v438
    %v2098 = vunpack.c.l.b16 %v439
    %v2099 = vunpack.c.h.b16 %v439
    %v2100 = vunpack.c.l.b16 %v440
    %v2101 = vunpack.c.h.b16 %v440
    %v2102 = vunpack.c.l.b16 %v441
    %v2103 = vunpack.c.h.b16 %v441
    %v2104 = vunpack.c.l.b16 %v442
    %v2105 = vunpack.c.h.b16 %v442
    %v2106 = vunpack.c.l.b16 %v443
    %v2107 = vunpack.c.h.b16 %v443
    %v2108 = vunpack.c.l.b16 %v444
    %v2109 = vunpack.c.h.b16 %v444
    %v2110 = vunpack.c.l.b16 %v445
    %v2111 = vunpack.c.h.b16 %v445
    %v2112 = vunpack.c.l.b16 %v446
    %v2113 = vunpack.c.h.b16 %v446
    %v2114 = vunpack.c.l.b16 %v447
    %v2115 = vunpack.c.h.b16 %v447
    %v2116 = vunpack.c.l.b16 %v448
    %v2117 = vunpack.c.h.b16 %v448
    %v2118 = vunpack.c.l.b16 %v449
    %v2119 = vunpack.c.h.b16 %v449
    %v2120 = vunpack.c.l.b16 %v450
    %v2121 = vunpack.c.h.b16 %v450
    %v2122 = vunpack.c.l.b16 %v451
    %v2123 = vunpack.c.h.b16 %v451
    %v2124 = vunpack.c.l.b16 %v452
    %v2125 = vunpack.c.h.b16 %v452
    %v2126 = vunpack.c.l.b16 %v453
    %v2127 = vunpack.c.h.b16 %v453
    %v2128 = vunpack.c.l.b16 %v454
    %v2129 = vunpack.c.h.b16 %v454
    %v2130 = vunpack.c.l.b16 %v455
    %v2131 = vunpack.c.h.b16 %v455
    %v2132 = vunpack.c.l.b16 %v456
    %v2133 = vunpack.c.h.b16 %v456
    %v2134 = vunpack.c.l.b16 %v457
    %v2135 = vunpack.c.h.b16 %v457
    %v2136 = vunpack.c.l.b16 %v458
    %v2137 = vunpack.c.h.b16 %v458
    %v2138 = vunpack.c.l.b16 %v459
    %v2139 = vunpack.c.h.b16 %v459
    %v2140 = vunpack.c.l.b16 %v460
    %v2141 = vunpack.c.h.b16 %v460
    %v2142 = vunpack.c.l.b16 %v461
    %v2143 = vunpack.c.h.b16 %v461
    %v2144 = vunpack.c.l.b16 %v462
    %v2145 = vunpack.c.h.b16 %v462
    %v2146 = vunpack.c.l.b16 %v463
    %v2147 = vunpack.c.h.b16 %v463
    %v2148 = vunpack.c.l.b16 %v464
    %v2149 = vunpack.c.h.b16 %v464
    %v2150 = vunpack.c.l.b16 %v465
    %v2151 = vunpack.c.h.b16 %v465
    %v2152 = vunpack.c.l.b16 %v466
    %v2153 = vunpack.c.h.b16 %v466
    %v2154 = vunpack.c.l.b16 %v467
    %v2155 = vunpack.c.h.b16 %v467
    %v2156 = vunpack.c.l.b16 %v468
    %v2157 = vunpack.c.h.b16 %v468
    %v2158 = vunpack.c.l.b16 %v469
    %v2159 = vunpack.c.h.b16 %v469
    %v2160 = vunpack.c.l.b16 %v470
    %v2161 = vunpack.c.h.b16 %v470
    %v2162 = vunpack.c.l.b16 %v471
    %v2163 = vunpack.c.h.b16 %v471
    %v2164 = vunpack.c.l.b16 %v472
    %v2165 = vunpack.c.h.b16 %v472
    %v2166 = vunpack.c.l.b16 %v473
    %v2167 = vunpack.c.h.b16 %v473
    %v2168 = vunpack.c.l.b16 %v474
    %v2169 = vunpack.c.h.b16 %v474
    %v2170 = vunpack.c.l.b16 %v475
    %v2171 = vunpack.c.h.b16 %v475
    %v2172 = vunpack.c.l.b16 %v476
    %v2173 = vunpack.c.h.b16 %v476
    %v2174 = vunpack.c.l.b16 %v477
    %v2175 = vunpack.c.h.b16 %v477
    %v2176 = vunpack.c.l.b16 %v478
    %v2177 = vunpack.c.h.b16 %v478
    %v2178 = vunpack.c.l.b16 %v479
    %v2179 = vunpack.c.h.b16 %v479
    %v2180 = vunpack.c.l.b16 %v480
    %v2181 = vunpack.c.h.b16 %v480
    %v2182 = vunpack.c.l.b16 %v481
    %v2183 = vunpack.c.h.b16 %v481
    %v2184 = vunpack.c.l.b16 %v482
    %v2185 = vunpack.c.h.b16 %v482
    %v2186 = vunpack.c.l.b16 %v483
    %v2187 = vunpack.c.h.b16 %v483
    %v2188 = vunpack.c.l.b16 %v484
    %v2189 = vunpack.c.h.b16 %v484
    %v2190 = vunpack.c.l.b16 %v485
    %v2191 = vunpack.c.h.b16 %v485
    %v2192 = vunpack.c.l.b16 %v486
    %v2193 = vunpack.c.h.b16 %v486
    %v2194 = vunpack.c.l.b16 %v487
    %v2195 = vunpack.c.h.b16 %v487
    %v2196 = vunpack.c.l.b16 %v488
    %v2197 = vunpack.c.h.b16 %v488
    %v2198 = vunpack.c.l.b16 %v489
    %v2199 = vunpack.c.h.b16 %v489
    %v2200 = vunpack.c.l.b16 %v490
    %v2201 = vunpack.c.h.b16 %v490
    %v2202 = vunpack.c.l.b16 %v491
    %v2203 = vunpack.c.h.b16 %v491
    %v2204 = vunpack.c.l.b16 %v492
    %v2205 = vunpack.c.h.b16 %v492
    %v2206 = vunpack.c.l.b16 %v493
    %v2207 = vunpack.c.h.b16 %v493
    %v2208 = vunpack.c.l.b16 %v494
    %v2209 = vunpack.c.h.b16 %v494
    %v2210 = vunpack.c.l.b16 %v495
    %v2211 = vunpack.c.h.b16 %v495
    %v2212 = vunpack.c.l.b16 %v496
    %v2213 = vunpack.c.h.b16 %v496
    %v2214 = vunpack.c.l.b16 %v497
    %v2215 = vunpack.c.h.b16 %v497
    %v2216 = vunpack.c.l.b16 %v498
    %v2217 = vunpack.c.h.b16 %v498
    %v2218 = vunpack.c.l.b16 %v499
    %v2219 = vunpack.c.h.b16 %v499
    %v2220 = vunpack.c.l.b16 %v500
    %v2221 = vunpack.c.h.b16 %v500
    %v2222 = vunpack.c.l.b16 %v501
    %v2223 = vunpack.c.h.b16 %v501
    %v2224 = vunpack.c.l.b16 %v502
    %v2225 = vunpack.c.h.b16 %v502
    %v2226 = vunpack.c.l.b16 %v503
    %v2227 = vunpack.c.h.b16 %v503
    %v2228 = vunpack.c.l.b16 %v504
    %v2229 = vunpack.c.h.b16 %v504
    %v2230 = vunpack.c.l.b16 %v505
    %v2231 = vunpack.c.h.b16 %v505
    %v2232 = vunpack.c.l.b16 %v506
    %v2233 = vunpack.c.h.b16 %v506
    %v2234 = vunpack.c.l.b16 %v507
    %v2235 = vunpack.c.h.b16 %v507
    %v2236 = vunpack.c.l.b16 %v508
    %v2237 = vunpack.c.h.b16 %v508
    %v2238 = vunpack.c.l.b16 %v509
    %v2239 = vunpack.c.h.b16 %v509
    %v2240 = vunpack.c.l.b16 %v510
    %v2241 = vunpack.c.h.b16 %v510
    %v2242 = vunpack.c.l.b16 %v511
    %v2243 = vunpack.c.h.b16 %v511
    %v2244 = vunpack.c.l.b16 %v512
    %v2245 = vunpack.c.h.b16 %v512
    %v2246 = vunpack.c.l.b16 %v513
    %v2247 = vunpack.c.h.b16 %v513
    %v2248 = vunpack.c.l.b16 %v514
    %v2249 = vunpack.c.h.b16 %v514
    %v2250 = vunpack.c.l.b16 %v515
    %v2251 = vunpack.c.h.b16 %v515
    %v2252 = vunpack.c.l.b16 %v516
    %v2253 = vunpack.c.h.b16 %v516
    %v2254 = vunpack.c.l.b16 %v517
    %v2255 = vunpack.c.h.b16 %v517
    %v2256 = vunpack.c.l.b16 %v518
    %v2257 = vunpack.c.h.b16 %v518
    %v2258 = vunpack.c.l.b16 %v519
    %v2259 = vunpack.c.h.b16 %v519
    %v2260 = vunpack.c.l.b16 %v520
    %v2261 = vunpack.c.h.b16 %v520
    %v2262 = vunpack.c.l.b16 %v521
    %v2263 = vunpack.c.h.b16 %v521
    %v2264 = vunpack.c.l.b16 %v522
    %v2265 = vunpack.c.h.b16 %v522
    %v2266 = vunpack.c.l.b16 %v523
    %v2267 = vunpack.c.h.b16 %v523
    %v2268 = vunpack.c.l.b16 %v524
    %v2269 = vunpack.c.h.b16 %v524
    %v2270 = vunpack.c.l.b16 %v525
    %v2271 = vunpack.c.h.b16 %v525
    %v2272 = vunpack.c.l.b16 %v526
    %v2273 = vunpack.c.h.b16 %v526
    %v2274 = vunpack.c.l.b16 %v527
    %v2275 = vunpack.c.h.b16 %v527
    %v2276 = vunpack.c.l.b16 %v528
    %v2277 = vunpack.c.h.b16 %v528
    %v2278 = vunpack.c.l.b16 %v529
    %v2279 = vunpack.c.h.b16 %v529
    %v2280 = vunpack.c.l.b16 %v530
    %v2281 = vunpack.c.h.b16 %v530
    %v2282 = vunpack.c.l.b16 %v531
    %v2283 = vunpack.c.h.b16 %v531
    %v2284 = vunpack.c.l.b16 %v532
    %v2285 = vunpack.c.h.b16 %v532
    %v2286 = vunpack.c.l.b16 %v533
    %v2287 = vunpack.c.h.b16 %v533
    %v2288 = vunpack.c.l.b16 %v534
    %v2289 = vunpack.c.h.b16 %v534
    %v2290 = vunpack.c.l.b16 %v535
    %v2291 = vunpack.c.h.b16 %v535
    %v2292 = vunpack.c.l.b16 %v536
    %v2293 = vunpack.c.h.b16 %v536
    %v2294 = vunpack.c.l.b16 %v537
    %v2295 = vunpack.c.h.b16 %v537
    %v2296 = vunpack.c.l.b16 %v538
    %v2297 = vunpack.c.h.b16 %v538
    %v2298 = vunpack.c.l.b16 %v539
    %v2299 = vunpack.c.h.b16 %v539
    %v2300 = vunpack.c.l.b16 %v540
    %v2301 = vunpack.c.h.b16 %v540
    %v2302 = vunpack.c.l.b16 %v541
    %v2303 = vunpack.c.h.b16 %v541
    %v2304 = vunpack.c.l.b16 %v542
    %v2305 = vunpack.c.h.b16 %v542
    %v2306 = vunpack.c.l.b16 %v543
    %v2307 = vunpack.c.h.b16 %v543
    %v2308 = vunpack.c.l.b16 %v544
    %v2309 = vunpack.c.h.b16 %v544
    %v2310 = vunpack.c.l.b16 %v545
    %v2311 = vunpack.c.h.b16 %v545
    %v2312 = vunpack.c.l.b16 %v546
    %v2313 = vunpack.c.h.b16 %v546
    %v2314 = vunpack.c.l.b16 %v547
    %v2315 = vunpack.c.h.b16 %v547
    %v2316 = vunpack.c.l.b16 %v548
    %v2317 = vunpack.c.h.b16 %v548
    %v2318 = vunpack.c.l.b16 %v549
    %v2319 = vunpack.c.h.b16 %v549
    %v2320 = vunpack.c.l.b16 %v550
    %v2321 = vunpack.c.h.b16 %v550
    %v2322 = vunpack.c.l.b16 %v551
    %v2323 = vunpack.c.h.b16 %v551
    %v2324 = vunpack.c.l.b16 %v552
    %v2325 = vunpack.c.h.b16 %v552
    %v2326 = vunpack.c.l.b16 %v553
    %v2327 = vunpack.c.h.b16 %v553
    %v2328 = vunpack.c.l.b16 %v554
    %v2329 = vunpack.c.h.b16 %v554
    %v2330 = vunpack.c.l.b16 %v555
    %v2331 = vunpack.c.h.b16 %v555
    %v2332 = vunpack.c.l.b16 %v556
    %v2333 = vunpack.c.h.b16 %v556
    %v2334 = vunpack.c.l.b16 %v557
    %v2335 = vunpack.c.h.b16 %v557
    %v2336 = vunpack.c.l.b16 %v558
    %v2337 = vunpack.c.h.b16 %v558
    %v2338 = vunpack.c.l.b16 %v559
    %v2339 = vunpack.c.h.b16 %v559
    %v2340 = vunpack.c.l.b16 %v560
    %v2341 = vunpack.c.h.b16 %v560
    %v2342 = vunpack.c.l.b16 %v561
    %v2343 = vunpack.c.h.b16 %v561
    %v2344 = vunpack.c.l.b16 %v562
    %v2345 = vunpack.c.h.b16 %v562
    %v2346 = vunpack.c.l.b16 %v563
    %v2347 = vunpack.c.h.b16 %v563
    %v2348 = vunpack.c.l.b16 %v564
    %v2349 = vunpack.c.h.b16 %v564
    %v2350 = vunpack.c.l.b16 %v565
    %v2351 = vunpack.c.h.b16 %v565
    %v2352 = vunpack.c.l.b16 %v566
    %v2353 = vunpack.c.h.b16 %v566
    %v2354 = vunpack.c.l.b16 %v567
    %v2355 = vunpack.c.h.b16 %v567
    %v2356 = vunpack.c.l.b16 %v568
    %v2357 = vunpack.c.h.b16 %v568
    %v2358 = vunpack.c.l.b16 %v569
    %v2359 = vunpack.c.h.b16 %v569
    %v2360 = vunpack.c.l.b16 %v570
    %v2361 = vunpack.c.h.b16 %v570
    %v2362 = vunpack.c.l.b16 %v571
    %v2363 = vunpack.c.h.b16 %v571
    %v2364 = vunpack.c.l.b16 %v572
    %v2365 = vunpack.c.h.b16 %v572
    %v2366 = vunpack.c.l.b16 %v573
    %v2367 = vunpack.c.h.b16 %v573
    %v2368 = vunpack.c.l.b16 %v574
    %v2369 = vunpack.c.h.b16 %v574
    %v2370 = vunpack.c.l.b16 %v575
    %v2371 = vunpack.c.h.b16 %v575
    %v2372 = vunpack.c.l.b16 %v576
    %v2373 = vunpack.c.h.b16 %v576
    %v2374 = vunpack.c.l.b16 %v577
    %v2375 = vunpack.c.h.b16 %v577
    %v2376 = vunpack.c.l.b16 %v578
    %v2377 = vunpack.c.h.b16 %v578
    %v2378 = vunpack.c.l.b16 %v579
    %v2379 = vunpack.c.h.b16 %v579
    %v2380 = vunpack.c.l.b16 %v580
    %v2381 = vunpack.c.h.b16 %v580
    %v2382 = vunpack.c.l.b16 %v581
    %v2383 = vunpack.c.h.b16 %v581
    %v2384 = vunpack.c.l.b16 %v582
    %v2385 = vunpack.c.h.b16 %v582
    %v2386 = vunpack.c.l.b16 %v583
    %v2387 = vunpack.c.h.b16 %v583
    %v2388 = vunpack.c.l.b16 %v584
    %v2389 = vunpack.c.h.b16 %v584
    %v2390 = vunpack.c.l.b16 %v585
    %v2391 = vunpack.c.h.b16 %v585
    %v2392 = vunpack.c.l.b16 %v586
    %v2393 = vunpack.c.h.b16 %v586
    %v2394 = vunpack.c.l.b16 %v587
    %v2395 = vunpack.c.h.b16 %v587
    %v2396 = vunpack.c.l.b16 %v588
    %v2397 = vunpack.c.h.b16 %v588
    %v2398 = vunpack.c.l.b16 %v589
    %v2399 = vunpack.c.h.b16 %v589
    %v2400 = vunpack.c.l.b16 %v590
    %v2401 = vunpack.c.h.b16 %v590
    %v2402 = vunpack.c.l.b16 %v591
    %v2403 = vunpack.c.h.b16 %v591
    %v2404 = vunpack.c.l.b16 %v592
    %v2405 = vunpack.c.h.b16 %v592
    %v2406 = vunpack.c.l.b16 %v593
    %v2407 = vunpack.c.h.b16 %v593
    %v2408 = vunpack.c.l.b16 %v594
    %v2409 = vunpack.c.h.b16 %v594
    %v2410 = vunpack.c.l.b16 %v595
    %v2411 = vunpack.c.h.b16 %v595
    %v2412 = vpack.c.b16 %v1262, %v1260
    %v2413 = vpack.c.b16 %v1263, %v1261
    %v2414 = vpack.c.b16 %v1266, %v1264
    %v2415 = vpack.c.b16 %v1267, %v1265
    %v2416 = vpack.c.b16 %v1270, %v1268
    %v2417 = vpack.c.b16 %v1271, %v1269
    %v2418 = vpack.c.b16 %v1274, %v1272
    %v2419 = vpack.c.b16 %v1275, %v1273
    %v2420 = vpack.c.b16 %v1278, %v1276
    %v2421 = vpack.c.b16 %v1279, %v1277
    %v2422 = vpack.c.b16 %v1282, %v1280
    %v2423 = vpack.c.b16 %v1283, %v1281
    %v2424 = vpack.c.b16 %v1286, %v1284
    %v2425 = vpack.c.b16 %v1287, %v1285
    %v2426 = vpack.c.b16 %v1290, %v1288
    %v2427 = vpack.c.b16 %v1291, %v1289
    %v2428 = vpack.c.b16 %v1294, %v1292
    %v2429 = vpack.c.b16 %v1295, %v1293
    %v2430 = vpack.c.b16 %v1298, %v1296
    %v2431 = vpack.c.b16 %v1299, %v1297
    %v2432 = vpack.c.b16 %v1302, %v1300
    %v2433 = vpack.c.b16 %v1303, %v1301
    %v2434 = vpack.c.b16 %v1306, %v1304
    %v2435 = vpack.c.b16 %v1307, %v1305
    %v2436 = vpack.c.b16 %v1310, %v1308
    %v2437 = vpack.c.b16 %v1311, %v1309
    %v2438 = vpack.c.b16 %v1314, %v1312
    %v2439 = vpack.c.b16 %v1315, %v1313
    %v2440 = vpack.c.b16 %v1318, %v1316
    %v2441 = vpack.c.b16 %v1319, %v1317
    %v2442 = vpack.c.b16 %v1322, %v1320
    %v2443 = vpack.c.b16 %v1323, %v1321
    %v2444 = vpack.c.b16 %v1326, %v1324
    %v2445 = vpack.c.b16 %v1327, %v1325
    %v2446 = vpack.c.b16 %v1330, %v1328
    %v2447 = vpack.c.b16 %v1331, %v1329
    %v2448 = vpack.c.b16 %v1334, %v1332
    %v2449 = vpack.c.b16 %v1335, %v1333
    %v2450 = vpack.c.b16 %v1338, %v1336
    %v2451 = vpack.c.b16 %v1339, %v1337
    %v2452 = vpack.c.b16 %v1342, %v1340
    %v2453 = vpack.c.b16 %v1343, %v1341
    %v2454 = vpack.c.b16 %v1346, %v1344
    %v2455 = vpack.c.b16 %v1347, %v1345
    %v2456 = vpack.c.b16 %v1350, %v1348
    %v2457 = vpack.c.b16 %v1351, %v1349
    %v2458 = vpack.c.b16 %v1354, %v1352
    %v2459 = vpack.c.b16 %v1355, %v1353
    %v2460 = vpack.c.b16 %v1358, %v1356
    %v2461 = vpack.c.b16 %v1359, %v1357
    %v2462 = vpack.c.b16 %v1362, %v1360
    %v2463 = vpack.c.b16 %v1363, %v1361
    %v2464 = vpack.c.b16 %v1366, %v1364
    %v2465 = vpack.c.b16 %v1367, %v1365
    %v2466 = vpack.c.b16 %v1370, %v1368
    %v2467 = vpack.c.b16 %v1371, %v1369
    %v2468 = vpack.c.b16 %v1374, %v1372
    %v2469 = vpack.c.b16 %v1375, %v1373
    %v2470 = vpack.c.b16 %v1378, %v1376
    %v2471 = vpack.c.b16 %v1379, %v1377
    %v2472 = vpack.c.b16 %v1382, %v1380
    %v2473 = vpack.c.b16 %v1383, %v1381
    %v2474 = vpack.c.b16 %v1386, %v1384
    %v2475 = vpack.c.b16 %v1387, %v1385
    %v2476 = vpack.c.b16 %v1390, %v1388
    %v2477 = vpack.c.b16 %v1391, %v1389
    %v2478 = vpack.c.b16 %v1394, %v1392
    %v2479 = vpack.c.b16 %v1395, %v1393
    %v2480 = vpack.c.b16 %v1398, %v1396
    %v2481 = vpack.c.b16 %v1399, %v1397
    %v2482 = vpack.c.b16 %v1402, %v1400
    %v2483 = vpack.c.b16 %v1403, %v1401
    %v2484 = vpack.c.b16 %v1406, %v1404
    %v2485 = vpack.c.b16 %v1407, %v1405
    %v2486 = vpack.c.b16 %v1410, %v1408
    %v2487 = vpack.c.b16 %v1411, %v1409
    %v2488 = vpack.c.b16 %v1414, %v1412
    %v2489 = vpack.c.b16 %v1415, %v1413
    %v2490 = vpack.c.b16 %v1418, %v1416
    %v2491 = vpack.c.b16 %v1419, %v1417
    %v2492 = vpack.c.b16 %v1422, %v1420
    %v2493 = vpack.c.b16 %v1423, %v1421
    %v2494 = vpack.c.b16 %v1426, %v1424
    %v2495 = vpack.c.b16 %v1427, %v1425
    %v2496 = vpack.c.b16 %v1430, %v1428
    %v2497 = vpack.c.b16 %v1431, %v1429
    %v2498 = vpack.c.b16 %v1434, %v1432
    %v2499 = vpack.c.b16 %v1435, %v1433
    %v2500 = vpack.c.b16 %v1438, %v1436
    %v2501 = vpack.c.b16 %v1439, %v1437
    %v2502 = vpack.c.b16 %v1442, %v1440
    %v2503 = vpack.c.b16 %v1443, %v1441
    %v2504 = vpack.c.b16 %v1446, %v1444
    %v2505 = vpack.c.b16 %v1447, %v1445
    %v2506 = vpack.c.b16 %v1450, %v1448
    %v2507 = vpack.c.b16 %v1451, %v1449
    %v2508 = vpack.c.b16 %v1454, %v1452
    %v2509 = vpack.c.b16 %v1455, %v1453
    %v2510 = vpack.c.b16 %v1458, %v1456
    %v2511 = vpack.c.b16 %v1459, %v1457
    %v2512 = vpack.c.b16 %v1462, %v1460
    %v2513 = vpack.c.b16 %v1463, %v1461
    %v2514 = vpack.c.b16 %v1466, %v1464
    %v2515 = vpack.c.b16 %v1467, %v1465
    %v2516 = vpack.c.b16 %v1470, %v1468
    %v2517 = vpack.c.b16 %v1471, %v1469
    %v2518 = vpack.c.b16 %v1474, %v1472
    %v2519 = vpack.c.b16 %v1475, %v1473
    %v2520 = vpack.c.b16 %v1478, %v1476
    %v2521 = vpack.c.b16 %v1479, %v1477
    %v2522 = vpack.c.b16 %v1482, %v1480
    %v2523 = vpack.c.b16 %v1483, %v1481
    %v2524 = vpack.c.b16 %v1486, %v1484
    %v2525 = vpack.c.b16 %v1487, %v1485
    %v2526 = vpack.c.b16 %v1490, %v1488
    %v2527 = vpack.c.b16 %v1491, %v1489
    %v2528 = vpack.c.b16 %v1494, %v1492
    %v2529 = vpack.c.b16 %v1495, %v1493
    %v2530 = vpack.c.b16 %v1498, %v1496
    %v2531 = vpack.c.b16 %v1499, %v1497
    %v2532 = vpack.c.b16 %v1502, %v1500
    %v2533 = vpack.c.b16 %v1503, %v1501
    %v2534 = vpack.c.b16 %v1506, %v1504
    %v2535 = vpack.c.b16 %v1507, %v1505
    %v2536 = vpack.c.b16 %v1510, %v1508
    %v2537 = vpack.c.b16 %v1511, %v1509
    %v2538 = vpack.c.b16 %v1514, %v1512
    %v2539 = vpack.c.b16 %v1515, %v1513
    %v2540 = vpack.c.b16 %v1518, %v1516
    %v2541 = vpack.c.b16 %v1519, %v1517
    %v2542 = vpack.c.b16 %v1522, %v1520
    %v2543 = vpack.c.b16 %v1523, %v1521
    %v2544 = vpack.c.b16 %v1526, %v1524
    %v2545 = vpack.c.b16 %v1527, %v1525
    %v2546 = vpack.c.b16 %v1530, %v1528
    %v2547 = vpack.c.b16 %v1531, %v1529
    %v2548 = vpack.c.b16 %v1534, %v1532
    %v2549 = vpack.c.b16 %v1535, %v1533
    %v2550 = vpack.c.b16 %v1538, %v1536
    %v2551 = vpack.c.b16 %v1539, %v1537
    %v2552 = vpack.c.b16 %v1542, %v1540
    %v2553 = vpack.c.b16 %v1543, %v1541
    %v2554 = vpack.c.b16 %v1546, %v1544
    %v2555 = vpack.c.b16 %v1547, %v1545
    %v2556 = vpack.c.b16 %v1550, %v1548
    %v2557 = vpack.c.b16 %v1551, %v1549
    %v2558 = vpack.c.b16 %v1554, %v1552
    %v2559 = vpack.c.b16 %v1555, %v1553
    %v2560 = vpack.c.b16 %v1558, %v1556
    %v2561 = vpack.c.b16 %v1559, %v1557
    %v2562 = vpack.c.b16 %v1562, %v1560
    %v2563 = vpack.c.b16 %v1563, %v1561
    %v2564 = vpack.c.b16 %v1566, %v1564
    %v2565 = vpack.c.b16 %v1567, %v1565
    %v2566 = vpack.c.b16 %v1570, %v1568
    %v2567 = vpack.c.b16 %v1571, %v1569
    %v2568 = vpack.c.b16 %v1574, %v1572
    %v2569 = vpack.c.b16 %v1575, %v1573
    %v2570 = vpack.c.b16 %v1578, %v1576
    %v2571 = vpack.c.b16 %v1579, %v1577
    %v2572 = vpack.c.b16 %v1582, %v1580
    %v2573 = vpack.c.b16 %v1583, %v1581
    %v2574 = vpack.c.b16 %v1586, %v1584
    %v2575 = vpack.c.b16 %v1587, %v1585
    %v2576 = vpack.c.b16 %v1590, %v1588
    %v2577 = vpack.c.b16 %v1591, %v1589
    %v2578 = vpack.c.b16 %v1594, %v1592
    %v2579 = vpack.c.b16 %v1595, %v1593
    %v2580 = vpack.c.b16 %v1598, %v1596
    %v2581 = vpack.c.b16 %v1599, %v1597
    %v2582 = vpack.c.b16 %v1602, %v1600
    %v2583 = vpack.c.b16 %v1603, %v1601
    %v2584 = vpack.c.b16 %v1606, %v1604
    %v2585 = vpack.c.b16 %v1607, %v1605
    %v2586 = vpack.c.b16 %v1610, %v1608
    %v2587 = vpack.c.b16 %v1611, %v1609
    %v2588 = vpack.c.b16 %v1614, %v1612
    %v2589 = vpack.c.b16 %v1615, %v1613
    %v2590 = vpack.c.b16 %v1618, %v1616
    %v2591 = vpack.c.b16 %v1619, %v1617
    %v2592 = vpack.c.b16 %v1622, %v1620
    %v2593 = vpack.c.b16 %v1623, %v1621
    %v2594 = vpack.c.b16 %v1626, %v1624
    %v2595 = vpack.c.b16 %v1627, %v1625
    %v2596 = vpack.c.b16 %v1630, %v1628
    %v2597 = vpack.c.b16 %v1631, %v1629
    %v2598 = vpack.c.b16 %v1634, %v1632
    %v2599 = vpack.c.b16 %v1635, %v1633
    %v2600 = vpack.c.b16 %v1638, %v1636
    %v2601 = vpack.c.b16 %v1639, %v1637
    %v2602 = vpack.c.b16 %v1642, %v1640
    %v2603 = vpack.c.b16 %v1643, %v1641
    %v2604 = vpack.c.b16 %v1646, %v1644
    %v2605 = vpack.c.b16 %v1647, %v1645
    %v2606 = vpack.c.b16 %v1650, %v1648
    %v2607 = vpack.c.b16 %v1651, %v1649
    %v2608 = vpack.c.b16 %v1654, %v1652
    %v2609 = vpack.c.b16 %v1655, %v1653
    %v2610 = vpack.c.b16 %v1658, %v1656
    %v2611 = vpack.c.b16 %v1659, %v1657
    %v2612 = vpack.c.b16 %v1662, %v1660
    %v2613 = vpack.c.b16 %v1663, %v1661
    %v2614 = vpack.c.b16 %v1666, %v1664
    %v2615 = vpack.c.b16 %v1667, %v1665
    %v2616 = vpack.c.b16 %v1670, %v1668
    %v2617 = vpack.c.b16 %v1671, %v1669
    %v2618 = vpack.c.b16 %v1674, %v1672
    %v2619 = vpack.c.b16 %v1675, %v1673
    %v2620 = vpack.c.b16 %v1678, %v1676
    %v2621 = vpack.c.b16 %v1679, %v1677
    %v2622 = vpack.c.b16 %v1682, %v1680
    %v2623 = vpack.c.b16 %v1683, %v1681
    %v2624 = vpack.c.b16 %v1686, %v1684
    %v2625 = vpack.c.b16 %v1687, %v1685
    %v2626 = vpack.c.b16 %v1690, %v1688
    %v2627 = vpack.c.b16 %v1691, %v1689
    %v2628 = vpack.c.b16 %v1694, %v1692
    %v2629 = vpack.c.b16 %v1695, %v1693
    %v2630 = vpack.c.b16 %v1698, %v1696
    %v2631 = vpack.c.b16 %v1699, %v1697
    %v2632 = vpack.c.b16 %v1702, %v1700
    %v2633 = vpack.c.b16 %v1703, %v1701
    %v2634 = vpack.c.b16 %v1706, %v1704
    %v2635 = vpack.c.b16 %v1707, %v1705
    %v2636 = vpack.c.b16 %v1710, %v1708
    %v2637 = vpack.c.b16 %v1711, %v1709
    %v2638 = vpack.c.b16 %v1714, %v1712
    %v2639 = vpack.c.b16 %v1715, %v1713
    %v2640 = vpack.c.b16 %v1718, %v1716
    %v2641 = vpack.c.b16 %v1719, %v1717
    %v2642 = vpack.c.b16 %v1722, %v1720
    %v2643 = vpack.c.b16 %v1723, %v1721
    %v2644 = vpack.c.b16 %v1726, %v1724
    %v2645 = vpack.c.b16 %v1727, %v1725
    %v2646 = vpack.c.b16 %v1730, %v1728
    %v2647 = vpack.c.b16 %v1731, %v1729
    %v2648 = vpack.c.b16 %v1734, %v1732
    %v2649 = vpack.c.b16 %v1735, %v1733
    %v2650 = vpack.c.b16 %v1738, %v1736
    %v2651 = vpack.c.b16 %v1739, %v1737
    %v2652 = vpack.c.b16 %v1742, %v1740
    %v2653 = vpack.c.b16 %v1743, %v1741
    %v2654 = vpack.c.b16 %v1746, %v1744
    %v2655 = vpack.c.b16 %v1747, %v1745
    %v2656 = vpack.c.b16 %v1750, %v1748
    %v2657 = vpack.c.b16 %v1751, %v1749
    %v2658 = vpack.c.b16 %v1754, %v1752
    %v2659 = vpack.c.b16 %v1755, %v1753
    %v2660 = vpack.c.b16 %v1758, %v1756
    %v2661 = vpack.c.b16 %v1759, %v1757
    %v2662 = vpack.c.b16 %v1762, %v1760
    %v2663 = vpack.c.b16 %v1763, %v1761
    %v2664 = vpack.c.b16 %v1766, %v1764
    %v2665 = vpack.c.b16 %v1767, %v1765
    %v2666 = vpack.c.b16 %v1770, %v1768
    %v2667 = vpack.c.b16 %v1771, %v1769
    %v2668 = vpack.c.b16 %v1774, %v1772
    %v2669 = vpack.c.b16 %v1775, %v1773
    %v2670 = vpack.c.b16 %v1778, %v1776
    %v2671 = vpack.c.b16 %v1779, %v1777
    %v2672 = vpack.c.b16 %v1782, %v1780
    %v2673 = vpack.c.b16 %v1783, %v1781
    %v2674 = vpack.c.b16 %v1786, %v1784
    %v2675 = vpack.c.b16 %v1787, %v1785
    %v2676 = vpack.c.b16 %v1790, %v1788
    %v2677 = vpack.c.b16 %v1791, %v1789
    %v2678 = vpack.c.b16 %v1794, %v1792
    %v2679 = vpack.c.b16 %v1795, %v1793
    %v2680 = vpack.c.b16 %v1798, %v1796
    %v2681 = vpack.c.b16 %v1799, %v1797
    %v2682 = vpack.c.b16 %v1802, %v1800
    %v2683 = vpack.c.b16 %v1803, %v1801
    %v2684 = vpack.c.b16 %v1806, %v1804
    %v2685 = vpack.c.b16 %v1807, %v1805
    %v2686 = vpack.c.b16 %v1810, %v1808
    %v2687 = vpack.c.b16 %v1811, %v1809
    %v2688 = vpack.c.b16 %v1814, %v1812
    %v2689 = vpack.c.b16 %v1815, %v1813
    %v2690 = vpack.c.b16 %v1818, %v1816
    %v2691 = vpack.c.b16 %v1819, %v1817
    %v2692 = vpack.c.b16 %v1822, %v1820
    %v2693 = vpack.c.b16 %v1823, %v1821
    %v2694 = vpack.c.b16 %v1826, %v1824
    %v2695 = vpack.c.b16 %v1827, %v1825
    %v2696 = vpack.c.b16 %v1830, %v1828
    %v2697 = vpack.c.b16 %v1831, %v1829
    %v2698 = vpack.c.b16 %v1834, %v1832
    %v2699 = vpack.c.b16 %v1835, %v1833
    %v2700 = vpack.c.b16 %v1838, %v1836
    %v2701 = vpack.c.b16 %v1839, %v1837
    %v2702 = vpack.c.b16 %v1842, %v1840
    %v2703 = vpack.c.b16 %v1843, %v1841
    %v2704 = vpack.c.b16 %v1846, %v1844
    %v2705 = vpack.c.b16 %v1847, %v1845
    %v2706 = vpack.c.b16 %v1850, %v1848
    %v2707 = vpack.c.b16 %v1851, %v1849
    %v2708 = vpack.c.b16 %v1854, %v1852
    %v2709 = vpack.c.b16 %v1855, %v1853
    %v2710 = vpack.c.b16 %v1858, %v1856
    %v2711 = vpack.c.b16 %v1859, %v1857
    %v2712 = vpack.c.b16 %v1862, %v1860
    %v2713 = vpack.c.b16 %v1863, %v1861
    %v2714 = vpack.c.b16 %v1866, %v1864
    %v2715 = vpack.c.b16 %v1867, %v1865
    %v2716 = vpack.c.b16 %v1870, %v1868
    %v2717 = vpack.c.b16 %v1871, %v1869
    %v2718 = vpack.c.b16 %v1874, %v1872
    %v2719 = vpack.c.b16 %v1875, %v1873
    %v2720 = vpack.c.b16 %v1878, %v1876
    %v2721 = vpack.c.b16 %v1879, %v1877
    %v2722 = vpack.c.b16 %v1882, %v1880
    %v2723 = vpack.c.b16 %v1883, %v1881
    %v2724 = vpack.c.b16 %v1886, %v1884
    %v2725 = vpack.c.b16 %v1887, %v1885
    %v2726 = vpack.c.b16 %v1890, %v1888
    %v2727 = vpack.c.b16 %v1891, %v1889
    %v2728 = vpack.c.b16 %v1894, %v1892
    %v2729 = vpack.c.b16 %v1895, %v1893
    %v2730 = vpack.c.b16 %v1898, %v1896
    %v2731 = vpack.c.b16 %v1899, %v1897
    %v2732 = vpack.c.b16 %v1902, %v1900
    %v2733 = vpack.c.b16 %v1903, %v1901
    %v2734 = vpack.c.b16 %v1906, %v1904
    %v2735 = vpack.c.b16 %v1907, %v1905
    %v2736 = vpack.c.b16 %v1910, %v1908
    %v2737 = vpack.c.b16 %v1911, %v1909
    %v2738 = vpack.c.b16 %v1914, %v1912
    %v2739 = vpack.c.b16 %v1915, %v1913
    %v2740 = vpack.c.b16 %v1918, %v1916
    %v2741 = vpack.c.b16 %v1919, %v1917
    %v2742 = vpack.c.b16 %v1922, %v1920
    %v2743 = vpack.c.b16 %v1923, %v1921
    %v2744 = vpack.c.b16 %v1926, %v1924
    %v2745 = vpack.c.b16 %v1927, %v1925
    %v2746 = vpack.c.b16 %v1930, %v1928
    %v2747 = vpack.c.b16 %v1931, %v1929
    %v2748 = vpack.c.b16 %v1934, %v1932
    %v2749 = vpack.c.b16 %v1935, %v1933
    %v2750 = vpack.c.b16 %v1938, %v1936
    %v2751 = vpack.c.b16 %v1939, %v1937
    %v2752 = vpack.c.b16 %v1942, %v1940
    %v2753 = vpack.c.b16 %v1943, %v1941
    %v2754 = vpack.c.b16 %v1946, %v1944
    %v2755 = vpack.c.b16 %v1947, %v1945
    %v2756 = vpack.c.b16 %v1950, %v1948
    %v2757 = vpack.c.b16 %v1951, %v1949
    %v2758 = vpack.c.b16 %v1954, %v1952
    %v2759 = vpack.c.b16 %v1955, %v1953
    %v2760 = vpack.c.b16 %v1958, %v1956
    %v2761 = vpack.c.b16 %v1959, %v1957
    %v2762 = vpack.c.b16 %v1962, %v1960
    %v2763 = vpack.c.b16 %v1963, %v1961
    %v2764 = vpack.c.b16 %v1966, %v1964
    %v2765 = vpack.c.b16 %v1967, %v1965
    %v2766 = vpack.c.b16 %v1970, %v1968
    %v2767 = vpack.c.b16 %v1971, %v1969
    %v2768 = vpack.c.b16 %v1974, %v1972
    %v2769 = vpack.c.b16 %v1975, %v1973
    %v2770 = vpack.c.b16 %v1978, %v1976
    %v2771 = vpack.c.b16 %v1979, %v1977
    %v2772 = vpack.c.b16 %v1982, %v1980
    %v2773 = vpack.c.b16 %v1983, %v1981
    %v2774 = vpack.c.b16 %v1986, %v1984
    %v2775 = vpack.c.b16 %v1987, %v1985
    %v2776 = vpack.c.b16 %v1990, %v1988
    %v2777 = vpack.c.b16 %v1991, %v1989
    %v2778 = vpack.c.b16 %v1994, %v1992
    %v2779 = vpack.c.b16 %v1995, %v1993
    %v2780 = vpack.c.b16 %v1998, %v1996
    %v2781 = vpack.c.b16 %v1999, %v1997
    %v2782 = vpack.c.b16 %v2002, %v2000
    %v2783 = vpack.c.b16 %v2003, %v2001
    %v2784 = vpack.c.b16 %v2006, %v2004
    %v2785 = vpack.c.b16 %v2007, %v2005
    %v2786 = vpack.c.b16 %v2010, %v2008
    %v2787 = vpack.c.b16 %v2011, %v2009
    %v2788 = vpack.c.b16 %v2014, %v2012
    %v2789 = vpack.c.b16 %v2015, %v2013
    %v2790 = vpack.c.b16 %v2018, %v2016
    %v2791 = vpack.c.b16 %v2019, %v2017
    %v2792 = vpack.c.b16 %v2022, %v2020
    %v2793 = vpack.c.b16 %v2023, %v2021
    %v2794 = vpack.c.b16 %v2026, %v2024
    %v2795 = vpack.c.b16 %v2027, %v2025
    %v2796 = vpack.c.b16 %v2030, %v2028
    %v2797 = vpack.c.b16 %v2031, %v2029
    %v2798 = vpack.c.b16 %v2034, %v2032
    %v2799 = vpack.c.b16 %v2035, %v2033
    %v2800 = vpack.c.b16 %v2038, %v2036
    %v2801 = vpack.c.b16 %v2039, %v2037
    %v2802 = vpack.c.b16 %v2042, %v2040
    %v2803 = vpack.c.b16 %v2043, %v2041
    %v2804 = vpack.c.b16 %v2046, %v2044
    %v2805 = vpack.c.b16 %v2047, %v2045
    %v2806 = vpack.c.b16 %v2050, %v2048
    %v2807 = vpack.c.b16 %v2051, %v2049
    %v2808 = vpack.c.b16 %v2054, %v2052
    %v2809 = vpack.c.b16 %v2055, %v2053
    %v2810 = vpack.c.b16 %v2058, %v2056
    %v2811 = vpack.c.b16 %v2059, %v2057
    %v2812 = vpack.c.b16 %v2062, %v2060
    %v2813 = vpack.c.b16 %v2063, %v2061
    %v2814 = vpack.c.b16 %v2066, %v2064
    %v2815 = vpack.c.b16 %v2067, %v2065
    %v2816 = vpack.c.b16 %v2070, %v2068
    %v2817 = vpack.c.b16 %v2071, %v2069
    %v2818 = vpack.c.b16 %v2074, %v2072
    %v2819 = vpack.c.b16 %v2075, %v2073
    %v2820 = vpack.c.b16 %v2078, %v2076
    %v2821 = vpack.c.b16 %v2079, %v2077
    %v2822 = vpack.c.b16 %v2082, %v2080
    %v2823 = vpack.c.b16 %v2083, %v2081
    %v2824 = vpack.c.b16 %v2086, %v2084
    %v2825 = vpack.c.b16 %v2087, %v2085
    %v2826 = vpack.c.b16 %v2090, %v2088
    %v2827 = vpack.c.b16 %v2091, %v2089
    %v2828 = vpack.c.b16 %v2094, %v2092
    %v2829 = vpack.c.b16 %v2095, %v2093
    %v2830 = vpack.c.b16 %v2098, %v2096
    %v2831 = vpack.c.b16 %v2099, %v2097
    %v2832 = vpack.c.b16 %v2102, %v2100
    %v2833 = vpack.c.b16 %v2103, %v2101
    %v2834 = vpack.c.b16 %v2106, %v2104
    %v2835 = vpack.c.b16 %v2107, %v2105
    %v2836 = vpack.c.b16 %v2110, %v2108
    %v2837 = vpack.c.b16 %v2111, %v2109
    %v2838 = vpack.c.b16 %v2114, %v2112
    %v2839 = vpack.c.b16 %v2115, %v2113
    %v2840 = vpack.c.b16 %v2118, %v2116
    %v2841 = vpack.c.b16 %v2119, %v2117
    %v2842 = vpack.c.b16 %v2122, %v2120
    %v2843 = vpack.c.b16 %v2123, %v2121
    %v2844 = vpack.c.b16 %v2126, %v2124
    %v2845 = vpack.c.b16 %v2127, %v2125
    %v2846 = vpack.c.b16 %v2130, %v2128
    %v2847 = vpack.c.b16 %v2131, %v2129
    %v2848 = vpack.c.b16 %v2134, %v2132
    %v2849 = vpack.c.b16 %v2135, %v2133
    %v2850 = vpack.c.b16 %v2138, %v2136
    %v2851 = vpack.c.b16 %v2139, %v2137
    %v2852 = vpack.c.b16 %v2142, %v2140
    %v2853 = vpack.c.b16 %v2143, %v2141
    %v2854 = vpack.c.b16 %v2146, %v2144
    %v2855 = vpack.c.b16 %v2147, %v2145
    %v2856 = vpack.c.b16 %v2150, %v2148
    %v2857 = vpack.c.b16 %v2151, %v2149
    %v2858 = vpack.c.b16 %v2154, %v2152
    %v2859 = vpack.c.b16 %v2155, %v2153
    %v2860 = vpack.c.b16 %v2158, %v2156
    %v2861 = vpack.c.b16 %v2159, %v2157
    %v2862 = vpack.c.b16 %v2162, %v2160
    %v2863 = vpack.c.b16 %v2163, %v2161
    %v2864 = vpack.c.b16 %v2166, %v2164
    %v2865 = vpack.c.b16 %v2167, %v2165
    %v2866 = vpack.c.b16 %v2170, %v2168
    %v2867 = vpack.c.b16 %v2171, %v2169
    %v2868 = vpack.c.b16 %v2174, %v2172
    %v2869 = vpack.c.b16 %v2175, %v2173
    %v2870 = vpack.c.b16 %v2178, %v2176
    %v2871 = vpack.c.b16 %v2179, %v2177
    %v2872 = vpack.c.b16 %v2182, %v2180
    %v2873 = vpack.c.b16 %v2183, %v2181
    %v2874 = vpack.c.b16 %v2186, %v2184
    %v2875 = vpack.c.b16 %v2187, %v2185
    %v2876 = vpack.c.b16 %v2190, %v2188
    %v2877 = vpack.c.b16 %v2191, %v2189
    %v2878 = vpack.c.b16 %v2194, %v2192
    %v2879 = vpack.c.b16 %v2195, %v2193
    %v2880 = vpack.c.b16 %v2198, %v2196
    %v2881 = vpack.c.b16 %v2199, %v2197
    %v2882 = vpack.c.b16 %v2202, %v2200
    %v2883 = vpack.c.b16 %v2203, %v2201
    %v2884 = vpack.c.b16 %v2206, %v2204
    %v2885 = vpack.c.b16 %v2207, %v2205
    %v2886 = vpack.c.b16 %v2210, %v2208
    %v2887 = vpack.c.b16 %v2211, %v2209
    %v2888 = vpack.c.b16 %v2214, %v2212
    %v2889 = vpack.c.b16 %v2215, %v2213
    %v2890 = vpack.c.b16 %v2218, %v2216
    %v2891 = vpack.c.b16 %v2219, %v2217
    %v2892 = vpack.c.b16 %v2222, %v2220
    %v2893 = vpack.c.b16 %v2223, %v2221
    %v2894 = vpack.c.b16 %v2226, %v2224
    %v2895 = vpack.c.b16 %v2227, %v2225
    %v2896 = vpack.c.b16 %v2230, %v2228
    %v2897 = vpack.c.b16 %v2231, %v2229
    %v2898 = vpack.c.b16 %v2234, %v2232
    %v2899 = vpack.c.b16 %v2235, %v2233
    %v2900 = vpack.c.b16 %v2238, %v2236
    %v2901 = vpack.c.b16 %v2239, %v2237
    %v2902 = vpack.c.b16 %v2242, %v2240
    %v2903 = vpack.c.b16 %v2243, %v2241
    %v2904 = vpack.c.b16 %v2246, %v2244
    %v2905 = vpack.c.b16 %v2247, %v2245
    %v2906 = vpack.c.b16 %v2250, %v2248
    %v2907 = vpack.c.b16 %v2251, %v2249
    %v2908 = vpack.c.b16 %v2254, %v2252
    %v2909 = vpack.c.b16 %v2255, %v2253
    %v2910 = vpack.c.b16 %v2258, %v2256
    %v2911 = vpack.c.b16 %v2259, %v2257
    %v2912 = vpack.c.b16 %v2262, %v2260
    %v2913 = vpack.c.b16 %v2263, %v2261
    %v2914 = vpack.c.b16 %v2266, %v2264
    %v2915 = vpack.c.b16 %v2267, %v2265
    %v2916 = vpack.c.b16 %v2270, %v2268
    %v2917 = vpack.c.b16 %v2271, %v2269
    %v2918 = vpack.c.b16 %v2274, %v2272
    %v2919 = vpack.c.b16 %v2275, %v2273
    %v2920 = vpack.c.b16 %v2278, %v2276
    %v2921 = vpack.c.b16 %v2279, %v2277
    %v2922 = vpack.c.b16 %v2282, %v2280
    %v2923 = vpack.c.b16 %v2283, %v2281
    %v2924 = vpack.c.b16 %v2286, %v2284
    %v2925 = vpack.c.b16 %v2287, %v2285
    %v2926 = vpack.c.b16 %v2290, %v2288
    %v2927 = vpack.c.b16 %v2291, %v2289
    %v2928 = vpack.c.b16 %v2294, %v2292
    %v2929 = vpack.c.b16 %v2295, %v2293
    %v2930 = vpack.c.b16 %v2298, %v2296
    %v2931 = vpack.c.b16 %v2299, %v2297
    %v2932 = vpack.c.b16 %v2302, %v2300
    %v2933 = vpack.c.b16 %v2303, %v2301
    %v2934 = vpack.c.b16 %v2306, %v2304
    %v2935 = vpack.c.b16 %v2307, %v2305
    %v2936 = vpack.c.b16 %v2310, %v2308
    %v2937 = vpack.c.b16 %v2311, %v2309
    %v2938 = vpack.c.b16 %v2314, %v2312
    %v2939 = vpack.c.b16 %v2315, %v2313
    %v2940 = vpack.c.b16 %v2318, %v2316
    %v2941 = vpack.c.b16 %v2319, %v2317
    %v2942 = vpack.c.b16 %v2322, %v2320
    %v2943 = vpack.c.b16 %v2323, %v2321
    %v2944 = vpack.c.b16 %v2326, %v2324
    %v2945 = vpack.c.b16 %v2327, %v2325
    %v2946 = vpack.c.b16 %v2330, %v2328
    %v2947 = vpack.c.b16 %v2331, %v2329
    %v2948 = vpack.c.b16 %v2334, %v2332
    %v2949 = vpack.c.b16 %v2335, %v2333
    %v2950 = vpack.c.b16 %v2338, %v2336
    %v2951 = vpack.c.b16 %v2339, %v2337
    %v2952 = vpack.c.b16 %v2342, %v2340
    %v2953 = vpack.c.b16 %v2343, %v2341
    %v2954 = vpack.c.b16 %v2346, %v2344
    %v2955 = vpack.c.b16 %v2347, %v2345
    %v2956 = vpack.c.b16 %v2350, %v2348
    %v2957 = vpack.c.b16 %v2351, %v2349
    %v2958 = vpack.c.b16 %v2354, %v2352
    %v2959 = vpack.c.b16 %v2355, %v2353
    %v2960 = vpack.c.b16 %v2358, %v2356
    %v2961 = vpack.c.b16 %v2359, %v2357
    %v2962 = vpack.c.b16 %v2362, %v2360
    %v2963 = vpack.c.b16 %v2363, %v2361
    %v2964 = vpack.c.b16 %v2366, %v2364
    %v2965 = vpack.c.b16 %v2367, %v2365
    %v2966 = vpack.c.b16 %v2370, %v2368
    %v2967 = vpack.c.b16 %v2371, %v2369
    %v2968 = vpack.c.b16 %v2374, %v2372
    %v2969 = vpack.c.b16 %v2375, %v2373
    %v2970 = vpack.c.b16 %v2378, %v2376
    %v2971 = vpack.c.b16 %v2379, %v2377
    %v2972 = vpack.c.b16 %v2382, %v2380
    %v2973 = vpack.c.b16 %v2383, %v2381
    %v2974 = vpack.c.b16 %v2386, %v2384
    %v2975 = vpack.c.b16 %v2387, %v2385
    %v2976 = vpack.c.b16 %v2390, %v2388
    %v2977 = vpack.c.b16 %v2391, %v2389
    %v2978 = vpack.c.b16 %v2394, %v2392
    %v2979 = vpack.c.b16 %v2395, %v2393
    %v2980 = vpack.c.b16 %v2398, %v2396
    %v2981 = vpack.c.b16 %v2399, %v2397
    %v2982 = vpack.c.b16 %v2402, %v2400
    %v2983 = vpack.c.b16 %v2403, %v2401
    %v2984 = vpack.c.b16 %v2406, %v2404
    %v2985 = vpack.c.b16 %v2407, %v2405
    %v2986 = vpack.c.b16 %v2410, %v2408
    %v2987 = vpack.c.b16 %v2411, %v2409
    %3564 = vmatpush.bf16.msra.mxu0 %v2426
    %3565 = vmatpush.bf16.msra.mxu0 %v2424
    %3566 = vmatpush.bf16.msra.mxu0 %v2422
    %3567 = vmatpush.bf16.msra.mxu0 %v2420
    %3568 = vmatpush.bf16.msra.mxu0 %v2418
    %3569 = vmatpush.bf16.msra.mxu0 %v2416
    %3570 = vmatpush.bf16.msra.mxu0 %v2414
    %3571 = vmatpush.bf16.msra.mxu0 %v2412
    %3572 = vmatmul.bf16.gmra.mxu0 %v604
    %v3573 = vpop.f32.mrf.mxu0
    %v3574 = vadd.f32 %v598, %v3573
    %v3575 = vpop.f32.mrf.mxu0
    %3576 = vdwg.mxu0
    %3577 = vmatpush.bf16.msra.mxu0 %v2442
    %3578 = vmatpush.bf16.msra.mxu0 %v2440
    %3579 = vmatpush.bf16.msra.mxu0 %v2438
    %3580 = vmatpush.bf16.msra.mxu0 %v2436
    %3581 = vmatpush.bf16.msra.mxu0 %v2434
    %3582 = vmatpush.bf16.msra.mxu0 %v2432
    %3583 = vmatpush.bf16.msra.mxu0 %v2430
    %3584 = vmatpush.bf16.msra.mxu0 %v2428
    %3585 = vmatmul.bf16.gmra.mxu0 %v605
    %v3586 = vpop.f32.mrf.mxu0
    %v3587 = vadd.f32 %v3574, %v3586
    %v3588 = vpop.f32.mrf.mxu0
    %3589 = vdwg.mxu0
    %3590 = vmatpush.bf16.msra.mxu0 %v2458
    %3591 = vmatpush.bf16.msra.mxu0 %v2456
    %3592 = vmatpush.bf16.msra.mxu0 %v2454
    %3593 = vmatpush.bf16.msra.mxu0 %v2452
    %3594 = vmatpush.bf16.msra.mxu0 %v2450
    %3595 = vmatpush.bf16.msra.mxu0 %v2448
    %3596 = vmatpush.bf16.msra.mxu0 %v2446
    %3597 = vmatpush.bf16.msra.mxu0 %v2444
    %3598 = vmatmul.bf16.gmra.mxu0 %v606
    %v3599 = vpop.f32.mrf.mxu0
    %v3600 = vadd.f32 %v3587, %v3599
    %v3601 = vpop.f32.mrf.mxu0
    %3602 = vdwg.mxu0
    %3603 = vmatpush.bf16.msra.mxu0 %v2474
    %3604 = vmatpush.bf16.msra.mxu0 %v2472
    %3605 = vmatpush.bf16.msra.mxu0 %v2470
    %3606 = vmatpush.bf16.msra.mxu0 %v2468
    %3607 = vmatpush.bf16.msra.mxu0 %v2466
    %3608 = vmatpush.bf16.msra.mxu0 %v2464
    %3609 = vmatpush.bf16.msra.mxu0 %v2462
    %3610 = vmatpush.bf16.msra.mxu0 %v2460
    %3611 = vmatmul.bf16.gmra.mxu0 %v607
    %v3612 = vpop.f32.mrf.mxu0
    %v3613 = vadd.f32 %v3600, %v3612
    %v3614 = vpop.f32.mrf.mxu0
    %3615 = vdwg.mxu0
    %3616 = vmatpush.bf16.msra.mxu0 %v2490
    %3617 = vmatpush.bf16.msra.mxu0 %v2488
    %3618 = vmatpush.bf16.msra.mxu0 %v2486
    %3619 = vmatpush.bf16.msra.mxu0 %v2484
    %3620 = vmatpush.bf16.msra.mxu0 %v2482
    %3621 = vmatpush.bf16.msra.mxu0 %v2480
    %3622 = vmatpush.bf16.msra.mxu0 %v2478
    %3623 = vmatpush.bf16.msra.mxu0 %v2476
    %3624 = vmatmul.bf16.gmra.mxu0 %v608
    %v3625 = vpop.f32.mrf.mxu0
    %v3626 = vadd.f32 %v3613, %v3625
    %v3627 = vpop.f32.mrf.mxu0
    %3628 = vdwg.mxu0
    %3629 = vmatpush.bf16.msra.mxu0 %v2506
    %3630 = vmatpush.bf16.msra.mxu0 %v2504
    %3631 = vmatpush.bf16.msra.mxu0 %v2502
    %3632 = vmatpush.bf16.msra.mxu0 %v2500
    %3633 = vmatpush.bf16.msra.mxu0 %v2498
    %3634 = vmatpush.bf16.msra.mxu0 %v2496
    %3635 = vmatpush.bf16.msra.mxu0 %v2494
    %3636 = vmatpush.bf16.msra.mxu0 %v2492
    %3637 = vmatmul.bf16.gmra.mxu0 %v609
    %v3638 = vpop.f32.mrf.mxu0
    %v3639 = vadd.f32 %v3626, %v3638
    %v3640 = vpop.f32.mrf.mxu0
    %3641 = vdwg.mxu0
    %3642 = vmatpush.bf16.msra.mxu0 %v2522
    %3643 = vmatpush.bf16.msra.mxu0 %v2520
    %3644 = vmatpush.bf16.msra.mxu0 %v2518
    %3645 = vmatpush.bf16.msra.mxu0 %v2516
    %3646 = vmatpush.bf16.msra.mxu0 %v2514
    %3647 = vmatpush.bf16.msra.mxu0 %v2512
    %3648 = vmatpush.bf16.msra.mxu0 %v2510
    %3649 = vmatpush.bf16.msra.mxu0 %v2508
    %3650 = vmatmul.bf16.gmra.mxu0 %v610
    %v3651 = vpop.f32.mrf.mxu0
    %v3652 = vadd.f32 %v3639, %v3651
    %v3653 = vpop.f32.mrf.mxu0
    %3654 = vdwg.mxu0
    %3655 = vmatpush.bf16.msra.mxu0 %v2538
    %3656 = vmatpush.bf16.msra.mxu0 %v2536
    %3657 = vmatpush.bf16.msra.mxu0 %v2534
    %3658 = vmatpush.bf16.msra.mxu0 %v2532
    %3659 = vmatpush.bf16.msra.mxu0 %v2530
    %3660 = vmatpush.bf16.msra.mxu0 %v2528
    %3661 = vmatpush.bf16.msra.mxu0 %v2526
    %3662 = vmatpush.bf16.msra.mxu0 %v2524
    %3663 = vmatmul.bf16.gmra.mxu0 %v611
    %v3664 = vpop.f32.mrf.mxu0
    %v3665 = vadd.f32 %v3652, %v3664
    %v3666 = vpop.f32.mrf.mxu0
    %3667 = vdwg.mxu0
    %3668 = vmatpush.bf16.msra.mxu0 %v2554
    %3669 = vmatpush.bf16.msra.mxu0 %v2552
    %3670 = vmatpush.bf16.msra.mxu0 %v2550
    %3671 = vmatpush.bf16.msra.mxu0 %v2548
    %3672 = vmatpush.bf16.msra.mxu0 %v2546
    %3673 = vmatpush.bf16.msra.mxu0 %v2544
    %3674 = vmatpush.bf16.msra.mxu0 %v2542
    %3675 = vmatpush.bf16.msra.mxu0 %v2540
    %3676 = vmatmul.bf16.gmra.mxu0 %v614
    %v3677 = vpop.f32.mrf.mxu0
    %v3678 = vadd.f32 %v3665, %v3677
    %v3679 = vpop.f32.mrf.mxu0
    %3680 = vdwg.mxu0
    %3681 = vmatpush.bf16.msra.mxu0 %v2570
    %3682 = vmatpush.bf16.msra.mxu0 %v2568
    %3683 = vmatpush.bf16.msra.mxu0 %v2566
    %3684 = vmatpush.bf16.msra.mxu0 %v2564
    %3685 = vmatpush.bf16.msra.mxu0 %v2562
    %3686 = vmatpush.bf16.msra.mxu0 %v2560
    %3687 = vmatpush.bf16.msra.mxu0 %v2558
    %3688 = vmatpush.bf16.msra.mxu0 %v2556
    %3689 = vmatmul.bf16.gmra.mxu0 %v615
    %v3690 = vpop.f32.mrf.mxu0
    %v3691 = vadd.f32 %v3678, %v3690
    %v3692 = vpop.f32.mrf.mxu0
    %3693 = vdwg.mxu0
    %3694 = vmatpush.bf16.msra.mxu0 %v2586
    %3695 = vmatpush.bf16.msra.mxu0 %v2584
    %3696 = vmatpush.bf16.msra.mxu0 %v2582
    %3697 = vmatpush.bf16.msra.mxu0 %v2580
    %3698 = vmatpush.bf16.msra.mxu0 %v2578
    %3699 = vmatpush.bf16.msra.mxu0 %v2576
    %3700 = vmatpush.bf16.msra.mxu0 %v2574
    %3701 = vmatpush.bf16.msra.mxu0 %v2572
    %3702 = vmatmul.bf16.gmra.mxu0 %v616
    %v3703 = vpop.f32.mrf.mxu0
    %v3704 = vadd.f32 %v3691, %v3703
    %v3705 = vpop.f32.mrf.mxu0
    %3706 = vdwg.mxu0
    %3707 = vmatpush.bf16.msra.mxu0 %v2602
    %3708 = vmatpush.bf16.msra.mxu0 %v2600
    %3709 = vmatpush.bf16.msra.mxu0 %v2598
    %3710 = vmatpush.bf16.msra.mxu0 %v2596
    %3711 = vmatpush.bf16.msra.mxu0 %v2594
    %3712 = vmatpush.bf16.msra.mxu0 %v2592
    %3713 = vmatpush.bf16.msra.mxu0 %v2590
    %3714 = vmatpush.bf16.msra.mxu0 %v2588
    %3715 = vmatmul.bf16.gmra.mxu0 %v617
    %v3716 = vpop.f32.mrf.mxu0
    %v3717 = vadd.f32 %v3704, %v3716
    %v3718 = vpop.f32.mrf.mxu0
    %3719 = vdwg.mxu0
    %3720 = vmatpush.bf16.msra.mxu0 %v2618
    %3721 = vmatpush.bf16.msra.mxu0 %v2616
    %3722 = vmatpush.bf16.msra.mxu0 %v2614
    %3723 = vmatpush.bf16.msra.mxu0 %v2612
    %3724 = vmatpush.bf16.msra.mxu0 %v2610
    %3725 = vmatpush.bf16.msra.mxu0 %v2608
    %3726 = vmatpush.bf16.msra.mxu0 %v2606
    %3727 = vmatpush.bf16.msra.mxu0 %v2604
    %3728 = vmatmul.bf16.gmra.mxu0 %v618
    %v3729 = vpop.f32.mrf.mxu0
    %v3730 = vadd.f32 %v3717, %v3729
    %v3731 = vpop.f32.mrf.mxu0
    %3732 = vdwg.mxu0
    %3733 = vmatpush.bf16.msra.mxu0 %v2634
    %3734 = vmatpush.bf16.msra.mxu0 %v2632
    %3735 = vmatpush.bf16.msra.mxu0 %v2630
    %3736 = vmatpush.bf16.msra.mxu0 %v2628
    %3737 = vmatpush.bf16.msra.mxu0 %v2626
    %3738 = vmatpush.bf16.msra.mxu0 %v2624
    %3739 = vmatpush.bf16.msra.mxu0 %v2622
    %3740 = vmatpush.bf16.msra.mxu0 %v2620
    %3741 = vmatmul.bf16.gmra.mxu0 %v619
    %v3742 = vpop.f32.mrf.mxu0
    %v3743 = vadd.f32 %v3730, %v3742
    %v3744 = vpop.f32.mrf.mxu0
    %3745 = vdwg.mxu0
    %3746 = vmatpush.bf16.msra.mxu0 %v2650
    %3747 = vmatpush.bf16.msra.mxu0 %v2648
    %3748 = vmatpush.bf16.msra.mxu0 %v2646
    %3749 = vmatpush.bf16.msra.mxu0 %v2644
    %3750 = vmatpush.bf16.msra.mxu0 %v2642
    %3751 = vmatpush.bf16.msra.mxu0 %v2640
    %3752 = vmatpush.bf16.msra.mxu0 %v2638
    %3753 = vmatpush.bf16.msra.mxu0 %v2636
    %3754 = vmatmul.bf16.gmra.mxu0 %v620
    %v3755 = vpop.f32.mrf.mxu0
    %v3756 = vadd.f32 %v3743, %v3755
    %v3757 = vpop.f32.mrf.mxu0
    %3758 = vdwg.mxu0
    %3759 = vmatpush.bf16.msra.mxu0 %v2666
    %3760 = vmatpush.bf16.msra.mxu0 %v2664
    %3761 = vmatpush.bf16.msra.mxu0 %v2662
    %3762 = vmatpush.bf16.msra.mxu0 %v2660
    %3763 = vmatpush.bf16.msra.mxu0 %v2658
    %3764 = vmatpush.bf16.msra.mxu0 %v2656
    %3765 = vmatpush.bf16.msra.mxu0 %v2654
    %3766 = vmatpush.bf16.msra.mxu0 %v2652
    %3767 = vmatmul.bf16.gmra.mxu0 %v621
    %v3768 = vpop.f32.mrf.mxu0
    %v3769 = vadd.f32 %v3756, %v3768
    %v3770 = vpop.f32.mrf.mxu0
    %3771 = vdwg.mxu0
    %3772 = vmatpush.bf16.msra.mxu0 %v2682
    %3773 = vmatpush.bf16.msra.mxu0 %v2680
    %3774 = vmatpush.bf16.msra.mxu0 %v2678
    %3775 = vmatpush.bf16.msra.mxu0 %v2676
    %3776 = vmatpush.bf16.msra.mxu0 %v2674
    %3777 = vmatpush.bf16.msra.mxu0 %v2672
    %3778 = vmatpush.bf16.msra.mxu0 %v2670
    %3779 = vmatpush.bf16.msra.mxu0 %v2668
    %3780 = vmatmul.bf16.gmra.mxu0 %v624
    %v3781 = vpop.f32.mrf.mxu0
    %v3782 = vadd.f32 %v3769, %v3781
    %v3783 = vpop.f32.mrf.mxu0
    %3784 = vdwg.mxu0
    %3785 = vmatpush.bf16.msra.mxu0 %v2698
    %3786 = vmatpush.bf16.msra.mxu0 %v2696
    %3787 = vmatpush.bf16.msra.mxu0 %v2694
    %3788 = vmatpush.bf16.msra.mxu0 %v2692
    %3789 = vmatpush.bf16.msra.mxu0 %v2690
    %3790 = vmatpush.bf16.msra.mxu0 %v2688
    %3791 = vmatpush.bf16.msra.mxu0 %v2686
    %3792 = vmatpush.bf16.msra.mxu0 %v2684
    %3793 = vmatmul.bf16.gmra.mxu0 %v625
    %v3794 = vpop.f32.mrf.mxu0
    %v3795 = vadd.f32 %v3782, %v3794
    %v3796 = vpop.f32.mrf.mxu0
    %3797 = vdwg.mxu0
    %3798 = vmatpush.bf16.msra.mxu0 %v2714
    %3799 = vmatpush.bf16.msra.mxu0 %v2712
    %3800 = vmatpush.bf16.msra.mxu0 %v2710
    %3801 = vmatpush.bf16.msra.mxu0 %v2708
    %3802 = vmatpush.bf16.msra.mxu0 %v2706
    %3803 = vmatpush.bf16.msra.mxu0 %v2704
    %3804 = vmatpush.bf16.msra.mxu0 %v2702
    %3805 = vmatpush.bf16.msra.mxu0 %v2700
    %3806 = vmatmul.bf16.gmra.mxu0 %v626
    %v3807 = vpop.f32.mrf.mxu0
    %v3808 = vadd.f32 %v3795, %v3807
    %v3809 = vpop.f32.mrf.mxu0
    %3810 = vdwg.mxu0
    %3811 = vmatpush.bf16.msra.mxu0 %v2730
    %3812 = vmatpush.bf16.msra.mxu0 %v2728
    %3813 = vmatpush.bf16.msra.mxu0 %v2726
    %3814 = vmatpush.bf16.msra.mxu0 %v2724
    %3815 = vmatpush.bf16.msra.mxu0 %v2722
    %3816 = vmatpush.bf16.msra.mxu0 %v2720
    %3817 = vmatpush.bf16.msra.mxu0 %v2718
    %3818 = vmatpush.bf16.msra.mxu0 %v2716
    %3819 = vmatmul.bf16.gmra.mxu0 %v627
    %v3820 = vpop.f32.mrf.mxu0
    %v3821 = vadd.f32 %v3808, %v3820
    %v3822 = vpop.f32.mrf.mxu0
    %3823 = vdwg.mxu0
    %3824 = vmatpush.bf16.msra.mxu0 %v2746
    %3825 = vmatpush.bf16.msra.mxu0 %v2744
    %3826 = vmatpush.bf16.msra.mxu0 %v2742
    %3827 = vmatpush.bf16.msra.mxu0 %v2740
    %3828 = vmatpush.bf16.msra.mxu0 %v2738
    %3829 = vmatpush.bf16.msra.mxu0 %v2736
    %3830 = vmatpush.bf16.msra.mxu0 %v2734
    %3831 = vmatpush.bf16.msra.mxu0 %v2732
    %3832 = vmatmul.bf16.gmra.mxu0 %v628
    %v3833 = vpop.f32.mrf.mxu0
    %v3834 = vadd.f32 %v3821, %v3833
    %v3835 = vpop.f32.mrf.mxu0
    %3836 = vdwg.mxu0
    %3837 = vmatpush.bf16.msra.mxu0 %v2762
    %3838 = vmatpush.bf16.msra.mxu0 %v2760
    %3839 = vmatpush.bf16.msra.mxu0 %v2758
    %3840 = vmatpush.bf16.msra.mxu0 %v2756
    %3841 = vmatpush.bf16.msra.mxu0 %v2754
    %3842 = vmatpush.bf16.msra.mxu0 %v2752
    %3843 = vmatpush.bf16.msra.mxu0 %v2750
    %3844 = vmatpush.bf16.msra.mxu0 %v2748
    %3845 = vmatmul.bf16.gmra.mxu0 %v629
    %v3846 = vpop.f32.mrf.mxu0
    %v3847 = vadd.f32 %v3834, %v3846
    %v3848 = vpop.f32.mrf.mxu0
    %3849 = vdwg.mxu0
    %3850 = vmatpush.bf16.msra.mxu0 %v2778
    %3851 = vmatpush.bf16.msra.mxu0 %v2776
    %3852 = vmatpush.bf16.msra.mxu0 %v2774
    %3853 = vmatpush.bf16.msra.mxu0 %v2772
    %3854 = vmatpush.bf16.msra.mxu0 %v2770
    %3855 = vmatpush.bf16.msra.mxu0 %v2768
    %3856 = vmatpush.bf16.msra.mxu0 %v2766
    %3857 = vmatpush.bf16.msra.mxu0 %v2764
    %3858 = vmatmul.bf16.gmra.mxu0 %v630
    %v3859 = vpop.f32.mrf.mxu0
    %v3860 = vadd.f32 %v3847, %v3859
    %v3861 = vpop.f32.mrf.mxu0
    %3862 = vdwg.mxu0
    %3863 = vmatpush.bf16.msra.mxu0 %v2794
    %3864 = vmatpush.bf16.msra.mxu0 %v2792
    %3865 = vmatpush.bf16.msra.mxu0 %v2790
    %3866 = vmatpush.bf16.msra.mxu0 %v2788
    %3867 = vmatpush.bf16.msra.mxu0 %v2786
    %3868 = vmatpush.bf16.msra.mxu0 %v2784
    %3869 = vmatpush.bf16.msra.mxu0 %v2782
    %3870 = vmatpush.bf16.msra.mxu0 %v2780
    %3871 = vmatmul.bf16.gmra.mxu0 %v631
    %v3872 = vpop.f32.mrf.mxu0
    %v3873 = vadd.f32 %v3860, %v3872
    %v3874 = vpop.f32.mrf.mxu0
    %3875 = vdwg.mxu0
    %3876 = vmatpush.bf16.msra.mxu0 %v2810
    %3877 = vmatpush.bf16.msra.mxu0 %v2808
    %3878 = vmatpush.bf16.msra.mxu0 %v2806
    %3879 = vmatpush.bf16.msra.mxu0 %v2804
    %3880 = vmatpush.bf16.msra.mxu0 %v2802
    %3881 = vmatpush.bf16.msra.mxu0 %v2800
    %3882 = vmatpush.bf16.msra.mxu0 %v2798
    %3883 = vmatpush.bf16.msra.mxu0 %v2796
    %3884 = vmatmul.bf16.gmra.mxu0 %v634
    %v3885 = vpop.f32.mrf.mxu0
    %v3886 = vadd.f32 %v3873, %v3885
    %v3887 = vpop.f32.mrf.mxu0
    %3888 = vdwg.mxu0
    %3889 = vmatpush.bf16.msra.mxu0 %v2826
    %3890 = vmatpush.bf16.msra.mxu0 %v2824
    %3891 = vmatpush.bf16.msra.mxu0 %v2822
    %3892 = vmatpush.bf16.msra.mxu0 %v2820
    %3893 = vmatpush.bf16.msra.mxu0 %v2818
    %3894 = vmatpush.bf16.msra.mxu0 %v2816
    %3895 = vmatpush.bf16.msra.mxu0 %v2814
    %3896 = vmatpush.bf16.msra.mxu0 %v2812
    %3897 = vmatmul.bf16.gmra.mxu0 %v635
    %v3898 = vpop.f32.mrf.mxu0
    %v3899 = vadd.f32 %v3886, %v3898
    %v3900 = vpop.f32.mrf.mxu0
    %3901 = vdwg.mxu0
    %3902 = vmatpush.bf16.msra.mxu0 %v2842
    %3903 = vmatpush.bf16.msra.mxu0 %v2840
    %3904 = vmatpush.bf16.msra.mxu0 %v2838
    %3905 = vmatpush.bf16.msra.mxu0 %v2836
    %3906 = vmatpush.bf16.msra.mxu0 %v2834
    %3907 = vmatpush.bf16.msra.mxu0 %v2832
    %3908 = vmatpush.bf16.msra.mxu0 %v2830
    %3909 = vmatpush.bf16.msra.mxu0 %v2828
    %3910 = vmatmul.bf16.gmra.mxu0 %v636
    %v3911 = vpop.f32.mrf.mxu0
    %v3912 = vadd.f32 %v3899, %v3911
    %v3913 = vpop.f32.mrf.mxu0
    %3914 = vdwg.mxu0
    %3915 = vmatpush.bf16.msra.mxu0 %v2858
    %3916 = vmatpush.bf16.msra.mxu0 %v2856
    %3917 = vmatpush.bf16.msra.mxu0 %v2854
    %3918 = vmatpush.bf16.msra.mxu0 %v2852
    %3919 = vmatpush.bf16.msra.mxu0 %v2850
    %3920 = vmatpush.bf16.msra.mxu0 %v2848
    %3921 = vmatpush.bf16.msra.mxu0 %v2846
    %3922 = vmatpush.bf16.msra.mxu0 %v2844
    %3923 = vmatmul.bf16.gmra.mxu0 %v637
    %v3924 = vpop.f32.mrf.mxu0
    %v3925 = vadd.f32 %v3912, %v3924
    %v3926 = vpop.f32.mrf.mxu0
    %3927 = vdwg.mxu0
    %3928 = vmatpush.bf16.msra.mxu0 %v2874
    %3929 = vmatpush.bf16.msra.mxu0 %v2872
    %3930 = vmatpush.bf16.msra.mxu0 %v2870
    %3931 = vmatpush.bf16.msra.mxu0 %v2868
    %3932 = vmatpush.bf16.msra.mxu0 %v2866
    %3933 = vmatpush.bf16.msra.mxu0 %v2864
    %3934 = vmatpush.bf16.msra.mxu0 %v2862
    %3935 = vmatpush.bf16.msra.mxu0 %v2860
    %3936 = vmatmul.bf16.gmra.mxu0 %v638
    %v3937 = vpop.f32.mrf.mxu0
    %v3938 = vadd.f32 %v3925, %v3937
    %v3939 = vpop.f32.mrf.mxu0
    %3940 = vdwg.mxu0
    %3941 = vmatpush.bf16.msra.mxu0 %v2890
    %3942 = vmatpush.bf16.msra.mxu0 %v2888
    %3943 = vmatpush.bf16.msra.mxu0 %v2886
    %3944 = vmatpush.bf16.msra.mxu0 %v2884
    %3945 = vmatpush.bf16.msra.mxu0 %v2882
    %3946 = vmatpush.bf16.msra.mxu0 %v2880
    %3947 = vmatpush.bf16.msra.mxu0 %v2878
    %3948 = vmatpush.bf16.msra.mxu0 %v2876
    %3949 = vmatmul.bf16.gmra.mxu0 %v639
    %v3950 = vpop.f32.mrf.mxu0
    %v3951 = vadd.f32 %v3938, %v3950
    %v3952 = vpop.f32.mrf.mxu0
    %3953 = vdwg.mxu0
    %3954 = vmatpush.bf16.msra.mxu0 %v2906
    %3955 = vmatpush.bf16.msra.mxu0 %v2904
    %3956 = vmatpush.bf16.msra.mxu0 %v2902
    %3957 = vmatpush.bf16.msra.mxu0 %v2900
    %3958 = vmatpush.bf16.msra.mxu0 %v2898
    %3959 = vmatpush.bf16.msra.mxu0 %v2896
    %3960 = vmatpush.bf16.msra.mxu0 %v2894
    %3961 = vmatpush.bf16.msra.mxu0 %v2892
    %3962 = vmatmul.bf16.gmra.mxu0 %v640
    %v3963 = vpop.f32.mrf.mxu0
    %v3964 = vadd.f32 %v3951, %v3963
    %v3965 = vpop.f32.mrf.mxu0
    %3966 = vdwg.mxu0
    %3967 = vmatpush.bf16.msra.mxu0 %v2922
    %3968 = vmatpush.bf16.msra.mxu0 %v2920
    %3969 = vmatpush.bf16.msra.mxu0 %v2918
    %3970 = vmatpush.bf16.msra.mxu0 %v2916
    %3971 = vmatpush.bf16.msra.mxu0 %v2914
    %3972 = vmatpush.bf16.msra.mxu0 %v2912
    %3973 = vmatpush.bf16.msra.mxu0 %v2910
    %3974 = vmatpush.bf16.msra.mxu0 %v2908
    %3975 = vmatmul.bf16.gmra.mxu0 %v641
    %v3976 = vpop.f32.mrf.mxu0
    %v3977 = vadd.f32 %v3964, %v3976
    %v3978 = vpop.f32.mrf.mxu0
    %3979 = vdwg.mxu0
    %3980 = vmatpush.bf16.msra.mxu0 %v2938
    %3981 = vmatpush.bf16.msra.mxu0 %v2936
    %3982 = vmatpush.bf16.msra.mxu0 %v2934
    %3983 = vmatpush.bf16.msra.mxu0 %v2932
    %3984 = vmatpush.bf16.msra.mxu0 %v2930
    %3985 = vmatpush.bf16.msra.mxu0 %v2928
    %3986 = vmatpush.bf16.msra.mxu0 %v2926
    %3987 = vmatpush.bf16.msra.mxu0 %v2924
    %3988 = vmatmul.bf16.gmra.mxu0 %v644
    %v3989 = vpop.f32.mrf.mxu0
    %v3990 = vadd.f32 %v3977, %v3989
    %v3991 = vpop.f32.mrf.mxu0
    %3992 = vdwg.mxu0
    %3993 = vmatpush.bf16.msra.mxu0 %v2954
    %3994 = vmatpush.bf16.msra.mxu0 %v2952
    %3995 = vmatpush.bf16.msra.mxu0 %v2950
    %3996 = vmatpush.bf16.msra.mxu0 %v2948
    %3997 = vmatpush.bf16.msra.mxu0 %v2946
    %3998 = vmatpush.bf16.msra.mxu0 %v2944
    %3999 = vmatpush.bf16.msra.mxu0 %v2942
    %4000 = vmatpush.bf16.msra.mxu0 %v2940
    %4001 = vmatmul.bf16.gmra.mxu0 %v645
    %v4002 = vpop.f32.mrf.mxu0
    %v4003 = vadd.f32 %v3990, %v4002
    %v4004 = vpop.f32.mrf.mxu0
    %4005 = vdwg.mxu0
    %4006 = vmatpush.bf16.msra.mxu0 %v2970
    %4007 = vmatpush.bf16.msra.mxu0 %v2968
    %4008 = vmatpush.bf16.msra.mxu0 %v2966
    %4009 = vmatpush.bf16.msra.mxu0 %v2964
    %4010 = vmatpush.bf16.msra.mxu0 %v2962
    %4011 = vmatpush.bf16.msra.mxu0 %v2960
    %4012 = vmatpush.bf16.msra.mxu0 %v2958
    %4013 = vmatpush.bf16.msra.mxu0 %v2956
    %4014 = vmatmul.bf16.gmra.mxu0 %v646
    %v4015 = vpop.f32.mrf.mxu0
    %v4016 = vadd.f32 %v4003, %v4015
    %v4017 = vpop.f32.mrf.mxu0
    %4018 = vdwg.mxu0
    %4019 = vmatpush.bf16.msra.mxu0 %v2986
    %4020 = vmatpush.bf16.msra.mxu0 %v2984
    %4021 = vmatpush.bf16.msra.mxu0 %v2982
    %4022 = vmatpush.bf16.msra.mxu0 %v2980
    %4023 = vmatpush.bf16.msra.mxu0 %v2978
    %4024 = vmatpush.bf16.msra.mxu0 %v2976
    %4025 = vmatpush.bf16.msra.mxu0 %v2974
    %4026 = vmatpush.bf16.msra.mxu0 %v2972
    %4027 = vmatmul.bf16.gmra.mxu0 %v647
    %v4028 = vpop.f32.mrf.mxu0
    %v4029 = vadd.f32 %v4016, %v4028
    %v4030 = vpop.f32.mrf.mxu0
    %4031 = vdwg.mxu0
    %4032 = vmatpush.bf16.msra.mxu0 %v2427
    %4033 = vmatpush.bf16.msra.mxu0 %v2425
    %4034 = vmatpush.bf16.msra.mxu0 %v2423
    %4035 = vmatpush.bf16.msra.mxu0 %v2421
    %4036 = vmatpush.bf16.msra.mxu0 %v2419
    %4037 = vmatpush.bf16.msra.mxu0 %v2417
    %4038 = vmatpush.bf16.msra.mxu0 %v2415
    %4039 = vmatpush.bf16.msra.mxu0 %v2413
    %4040 = vmatmul.bf16.gmra.mxu0 %v604
    %v4041 = vpop.f32.mrf.mxu0
    %v4042 = vadd.f32 %v599, %v4041
    %v4043 = vpop.f32.mrf.mxu0
    %4044 = vdwg.mxu0
    %4045 = vmatpush.bf16.msra.mxu0 %v2443
    %4046 = vmatpush.bf16.msra.mxu0 %v2441
    %4047 = vmatpush.bf16.msra.mxu0 %v2439
    %4048 = vmatpush.bf16.msra.mxu0 %v2437
    %4049 = vmatpush.bf16.msra.mxu0 %v2435
    %4050 = vmatpush.bf16.msra.mxu0 %v2433
    %4051 = vmatpush.bf16.msra.mxu0 %v2431
    %4052 = vmatpush.bf16.msra.mxu0 %v2429
    %4053 = vmatmul.bf16.gmra.mxu0 %v605
    %v4054 = vpop.f32.mrf.mxu0
    %v4055 = vadd.f32 %v4042, %v4054
    %v4056 = vpop.f32.mrf.mxu0
    %4057 = vdwg.mxu0
    %4058 = vmatpush.bf16.msra.mxu0 %v2459
    %4059 = vmatpush.bf16.msra.mxu0 %v2457
    %4060 = vmatpush.bf16.msra.mxu0 %v2455
    %4061 = vmatpush.bf16.msra.mxu0 %v2453
    %4062 = vmatpush.bf16.msra.mxu0 %v2451
    %4063 = vmatpush.bf16.msra.mxu0 %v2449
    %4064 = vmatpush.bf16.msra.mxu0 %v2447
    %4065 = vmatpush.bf16.msra.mxu0 %v2445
    %4066 = vmatmul.bf16.gmra.mxu0 %v606
    %v4067 = vpop.f32.mrf.mxu0
    %v4068 = vadd.f32 %v4055, %v4067
    %v4069 = vpop.f32.mrf.mxu0
    %4070 = vdwg.mxu0
    %4071 = vmatpush.bf16.msra.mxu0 %v2475
    %4072 = vmatpush.bf16.msra.mxu0 %v2473
    %4073 = vmatpush.bf16.msra.mxu0 %v2471
    %4074 = vmatpush.bf16.msra.mxu0 %v2469
    %4075 = vmatpush.bf16.msra.mxu0 %v2467
    %4076 = vmatpush.bf16.msra.mxu0 %v2465
    %4077 = vmatpush.bf16.msra.mxu0 %v2463
    %4078 = vmatpush.bf16.msra.mxu0 %v2461
    %4079 = vmatmul.bf16.gmra.mxu0 %v607
    %v4080 = vpop.f32.mrf.mxu0
    %v4081 = vadd.f32 %v4068, %v4080
    %v4082 = vpop.f32.mrf.mxu0
    %4083 = vdwg.mxu0
    %4084 = vmatpush.bf16.msra.mxu0 %v2491
    %4085 = vmatpush.bf16.msra.mxu0 %v2489
    %4086 = vmatpush.bf16.msra.mxu0 %v2487
    %4087 = vmatpush.bf16.msra.mxu0 %v2485
    %4088 = vmatpush.bf16.msra.mxu0 %v2483
    %4089 = vmatpush.bf16.msra.mxu0 %v2481
    %4090 = vmatpush.bf16.msra.mxu0 %v2479
    %4091 = vmatpush.bf16.msra.mxu0 %v2477
    %4092 = vmatmul.bf16.gmra.mxu0 %v608
    %v4093 = vpop.f32.mrf.mxu0
    %v4094 = vadd.f32 %v4081, %v4093
    %v4095 = vpop.f32.mrf.mxu0
    %4096 = vdwg.mxu0
    %4097 = vmatpush.bf16.msra.mxu0 %v2507
    %4098 = vmatpush.bf16.msra.mxu0 %v2505
    %4099 = vmatpush.bf16.msra.mxu0 %v2503
    %4100 = vmatpush.bf16.msra.mxu0 %v2501
    %4101 = vmatpush.bf16.msra.mxu0 %v2499
    %4102 = vmatpush.bf16.msra.mxu0 %v2497
    %4103 = vmatpush.bf16.msra.mxu0 %v2495
    %4104 = vmatpush.bf16.msra.mxu0 %v2493
    %4105 = vmatmul.bf16.gmra.mxu0 %v609
    %v4106 = vpop.f32.mrf.mxu0
    %v4107 = vadd.f32 %v4094, %v4106
    %v4108 = vpop.f32.mrf.mxu0
    %4109 = vdwg.mxu0
    %4110 = vmatpush.bf16.msra.mxu0 %v2523
    %4111 = vmatpush.bf16.msra.mxu0 %v2521
    %4112 = vmatpush.bf16.msra.mxu0 %v2519
    %4113 = vmatpush.bf16.msra.mxu0 %v2517
    %4114 = vmatpush.bf16.msra.mxu0 %v2515
    %4115 = vmatpush.bf16.msra.mxu0 %v2513
    %4116 = vmatpush.bf16.msra.mxu0 %v2511
    %4117 = vmatpush.bf16.msra.mxu0 %v2509
    %4118 = vmatmul.bf16.gmra.mxu0 %v610
    %v4119 = vpop.f32.mrf.mxu0
    %v4120 = vadd.f32 %v4107, %v4119
    %v4121 = vpop.f32.mrf.mxu0
    %4122 = vdwg.mxu0
    %4123 = vmatpush.bf16.msra.mxu0 %v2539
    %4124 = vmatpush.bf16.msra.mxu0 %v2537
    %4125 = vmatpush.bf16.msra.mxu0 %v2535
    %4126 = vmatpush.bf16.msra.mxu0 %v2533
    %4127 = vmatpush.bf16.msra.mxu0 %v2531
    %4128 = vmatpush.bf16.msra.mxu0 %v2529
    %4129 = vmatpush.bf16.msra.mxu0 %v2527
    %4130 = vmatpush.bf16.msra.mxu0 %v2525
    %4131 = vmatmul.bf16.gmra.mxu0 %v611
    %v4132 = vpop.f32.mrf.mxu0
    %v4133 = vadd.f32 %v4120, %v4132
    %v4134 = vpop.f32.mrf.mxu0
    %4135 = vdwg.mxu0
    %4136 = vmatpush.bf16.msra.mxu0 %v2555
    %4137 = vmatpush.bf16.msra.mxu0 %v2553
    %4138 = vmatpush.bf16.msra.mxu0 %v2551
    %4139 = vmatpush.bf16.msra.mxu0 %v2549
    %4140 = vmatpush.bf16.msra.mxu0 %v2547
    %4141 = vmatpush.bf16.msra.mxu0 %v2545
    %4142 = vmatpush.bf16.msra.mxu0 %v2543
    %4143 = vmatpush.bf16.msra.mxu0 %v2541
    %4144 = vmatmul.bf16.gmra.mxu0 %v614
    %v4145 = vpop.f32.mrf.mxu0
    %v4146 = vadd.f32 %v4133, %v4145
    %v4147 = vpop.f32.mrf.mxu0
    %4148 = vdwg.mxu0
    %4149 = vmatpush.bf16.msra.mxu0 %v2571
    %4150 = vmatpush.bf16.msra.mxu0 %v2569
    %4151 = vmatpush.bf16.msra.mxu0 %v2567
    %4152 = vmatpush.bf16.msra.mxu0 %v2565
    %4153 = vmatpush.bf16.msra.mxu0 %v2563
    %4154 = vmatpush.bf16.msra.mxu0 %v2561
    %4155 = vmatpush.bf16.msra.mxu0 %v2559
    %4156 = vmatpush.bf16.msra.mxu0 %v2557
    %4157 = vmatmul.bf16.gmra.mxu0 %v615
    %v4158 = vpop.f32.mrf.mxu0
    %v4159 = vadd.f32 %v4146, %v4158
    %v4160 = vpop.f32.mrf.mxu0
    %4161 = vdwg.mxu0
    %4162 = vmatpush.bf16.msra.mxu0 %v2587
    %4163 = vmatpush.bf16.msra.mxu0 %v2585
    %4164 = vmatpush.bf16.msra.mxu0 %v2583
    %4165 = vmatpush.bf16.msra.mxu0 %v2581
    %4166 = vmatpush.bf16.msra.mxu0 %v2579
    %4167 = vmatpush.bf16.msra.mxu0 %v2577
    %4168 = vmatpush.bf16.msra.mxu0 %v2575
    %4169 = vmatpush.bf16.msra.mxu0 %v2573
    %4170 = vmatmul.bf16.gmra.mxu0 %v616
    %v4171 = vpop.f32.mrf.mxu0
    %v4172 = vadd.f32 %v4159, %v4171
    %v4173 = vpop.f32.mrf.mxu0
    %4174 = vdwg.mxu0
    %4175 = vmatpush.bf16.msra.mxu0 %v2603
    %4176 = vmatpush.bf16.msra.mxu0 %v2601
    %4177 = vmatpush.bf16.msra.mxu0 %v2599
    %4178 = vmatpush.bf16.msra.mxu0 %v2597
    %4179 = vmatpush.bf16.msra.mxu0 %v2595
    %4180 = vmatpush.bf16.msra.mxu0 %v2593
    %4181 = vmatpush.bf16.msra.mxu0 %v2591
    %4182 = vmatpush.bf16.msra.mxu0 %v2589
    %4183 = vmatmul.bf16.gmra.mxu0 %v617
    %v4184 = vpop.f32.mrf.mxu0
    %v4185 = vadd.f32 %v4172, %v4184
    %v4186 = vpop.f32.mrf.mxu0
    %4187 = vdwg.mxu0
    %4188 = vmatpush.bf16.msra.mxu0 %v2619
    %4189 = vmatpush.bf16.msra.mxu0 %v2617
    %4190 = vmatpush.bf16.msra.mxu0 %v2615
    %4191 = vmatpush.bf16.msra.mxu0 %v2613
    %4192 = vmatpush.bf16.msra.mxu0 %v2611
    %4193 = vmatpush.bf16.msra.mxu0 %v2609
    %4194 = vmatpush.bf16.msra.mxu0 %v2607
    %4195 = vmatpush.bf16.msra.mxu0 %v2605
    %4196 = vmatmul.bf16.gmra.mxu0 %v618
    %v4197 = vpop.f32.mrf.mxu0
    %v4198 = vadd.f32 %v4185, %v4197
    %v4199 = vpop.f32.mrf.mxu0
    %4200 = vdwg.mxu0
    %4201 = vmatpush.bf16.msra.mxu0 %v2635
    %4202 = vmatpush.bf16.msra.mxu0 %v2633
    %4203 = vmatpush.bf16.msra.mxu0 %v2631
    %4204 = vmatpush.bf16.msra.mxu0 %v2629
    %4205 = vmatpush.bf16.msra.mxu0 %v2627
    %4206 = vmatpush.bf16.msra.mxu0 %v2625
    %4207 = vmatpush.bf16.msra.mxu0 %v2623
    %4208 = vmatpush.bf16.msra.mxu0 %v2621
    %4209 = vmatmul.bf16.gmra.mxu0 %v619
    %v4210 = vpop.f32.mrf.mxu0
    %v4211 = vadd.f32 %v4198, %v4210
    %v4212 = vpop.f32.mrf.mxu0
    %4213 = vdwg.mxu0
    %4214 = vmatpush.bf16.msra.mxu0 %v2651
    %4215 = vmatpush.bf16.msra.mxu0 %v2649
    %4216 = vmatpush.bf16.msra.mxu0 %v2647
    %4217 = vmatpush.bf16.msra.mxu0 %v2645
    %4218 = vmatpush.bf16.msra.mxu0 %v2643
    %4219 = vmatpush.bf16.msra.mxu0 %v2641
    %4220 = vmatpush.bf16.msra.mxu0 %v2639
    %4221 = vmatpush.bf16.msra.mxu0 %v2637
    %4222 = vmatmul.bf16.gmra.mxu0 %v620
    %v4223 = vpop.f32.mrf.mxu0
    %v4224 = vadd.f32 %v4211, %v4223
    %v4225 = vpop.f32.mrf.mxu0
    %4226 = vdwg.mxu0
    %4227 = vmatpush.bf16.msra.mxu0 %v2667
    %4228 = vmatpush.bf16.msra.mxu0 %v2665
    %4229 = vmatpush.bf16.msra.mxu0 %v2663
    %4230 = vmatpush.bf16.msra.mxu0 %v2661
    %4231 = vmatpush.bf16.msra.mxu0 %v2659
    %4232 = vmatpush.bf16.msra.mxu0 %v2657
    %4233 = vmatpush.bf16.msra.mxu0 %v2655
    %4234 = vmatpush.bf16.msra.mxu0 %v2653
    %4235 = vmatmul.bf16.gmra.mxu0 %v621
    %v4236 = vpop.f32.mrf.mxu0
    %v4237 = vadd.f32 %v4224, %v4236
    %v4238 = vpop.f32.mrf.mxu0
    %4239 = vdwg.mxu0
    %4240 = vmatpush.bf16.msra.mxu0 %v2683
    %4241 = vmatpush.bf16.msra.mxu0 %v2681
    %4242 = vmatpush.bf16.msra.mxu0 %v2679
    %4243 = vmatpush.bf16.msra.mxu0 %v2677
    %4244 = vmatpush.bf16.msra.mxu0 %v2675
    %4245 = vmatpush.bf16.msra.mxu0 %v2673
    %4246 = vmatpush.bf16.msra.mxu0 %v2671
    %4247 = vmatpush.bf16.msra.mxu0 %v2669
    %4248 = vmatmul.bf16.gmra.mxu0 %v624
    %v4249 = vpop.f32.mrf.mxu0
    %v4250 = vadd.f32 %v4237, %v4249
    %v4251 = vpop.f32.mrf.mxu0
    %4252 = vdwg.mxu0
    %4253 = vmatpush.bf16.msra.mxu0 %v2699
    %4254 = vmatpush.bf16.msra.mxu0 %v2697
    %4255 = vmatpush.bf16.msra.mxu0 %v2695
    %4256 = vmatpush.bf16.msra.mxu0 %v2693
    %4257 = vmatpush.bf16.msra.mxu0 %v2691
    %4258 = vmatpush.bf16.msra.mxu0 %v2689
    %4259 = vmatpush.bf16.msra.mxu0 %v2687
    %4260 = vmatpush.bf16.msra.mxu0 %v2685
    %4261 = vmatmul.bf16.gmra.mxu0 %v625
    %v4262 = vpop.f32.mrf.mxu0
    %v4263 = vadd.f32 %v4250, %v4262
    %v4264 = vpop.f32.mrf.mxu0
    %4265 = vdwg.mxu0
    %4266 = vmatpush.bf16.msra.mxu0 %v2715
    %4267 = vmatpush.bf16.msra.mxu0 %v2713
    %4268 = vmatpush.bf16.msra.mxu0 %v2711
    %4269 = vmatpush.bf16.msra.mxu0 %v2709
    %4270 = vmatpush.bf16.msra.mxu0 %v2707
    %4271 = vmatpush.bf16.msra.mxu0 %v2705
    %4272 = vmatpush.bf16.msra.mxu0 %v2703
    %4273 = vmatpush.bf16.msra.mxu0 %v2701
    %4274 = vmatmul.bf16.gmra.mxu0 %v626
    %v4275 = vpop.f32.mrf.mxu0
    %v4276 = vadd.f32 %v4263, %v4275
    %v4277 = vpop.f32.mrf.mxu0
    %4278 = vdwg.mxu0
    %4279 = vmatpush.bf16.msra.mxu0 %v2731
    %4280 = vmatpush.bf16.msra.mxu0 %v2729
    %4281 = vmatpush.bf16.msra.mxu0 %v2727
    %4282 = vmatpush.bf16.msra.mxu0 %v2725
    %4283 = vmatpush.bf16.msra.mxu0 %v2723
    %4284 = vmatpush.bf16.msra.mxu0 %v2721
    %4285 = vmatpush.bf16.msra.mxu0 %v2719
    %4286 = vmatpush.bf16.msra.mxu0 %v2717
    %4287 = vmatmul.bf16.gmra.mxu0 %v627
    %v4288 = vpop.f32.mrf.mxu0
    %v4289 = vadd.f32 %v4276, %v4288
    %v4290 = vpop.f32.mrf.mxu0
    %4291 = vdwg.mxu0
    %4292 = vmatpush.bf16.msra.mxu0 %v2747
    %4293 = vmatpush.bf16.msra.mxu0 %v2745
    %4294 = vmatpush.bf16.msra.mxu0 %v2743
    %4295 = vmatpush.bf16.msra.mxu0 %v2741
    %4296 = vmatpush.bf16.msra.mxu0 %v2739
    %4297 = vmatpush.bf16.msra.mxu0 %v2737
    %4298 = vmatpush.bf16.msra.mxu0 %v2735
    %4299 = vmatpush.bf16.msra.mxu0 %v2733
    %4300 = vmatmul.bf16.gmra.mxu0 %v628
    %v4301 = vpop.f32.mrf.mxu0
    %v4302 = vadd.f32 %v4289, %v4301
    %v4303 = vpop.f32.mrf.mxu0
    %4304 = vdwg.mxu0
    %4305 = vmatpush.bf16.msra.mxu0 %v2763
    %4306 = vmatpush.bf16.msra.mxu0 %v2761
    %4307 = vmatpush.bf16.msra.mxu0 %v2759
    %4308 = vmatpush.bf16.msra.mxu0 %v2757
    %4309 = vmatpush.bf16.msra.mxu0 %v2755
    %4310 = vmatpush.bf16.msra.mxu0 %v2753
    %4311 = vmatpush.bf16.msra.mxu0 %v2751
    %4312 = vmatpush.bf16.msra.mxu0 %v2749
    %4313 = vmatmul.bf16.gmra.mxu0 %v629
    %v4314 = vpop.f32.mrf.mxu0
    %v4315 = vadd.f32 %v4302, %v4314
    %v4316 = vpop.f32.mrf.mxu0
    %4317 = vdwg.mxu0
    %4318 = vmatpush.bf16.msra.mxu0 %v2779
    %4319 = vmatpush.bf16.msra.mxu0 %v2777
    %4320 = vmatpush.bf16.msra.mxu0 %v2775
    %4321 = vmatpush.bf16.msra.mxu0 %v2773
    %4322 = vmatpush.bf16.msra.mxu0 %v2771
    %4323 = vmatpush.bf16.msra.mxu0 %v2769
    %4324 = vmatpush.bf16.msra.mxu0 %v2767
    %4325 = vmatpush.bf16.msra.mxu0 %v2765
    %4326 = vmatmul.bf16.gmra.mxu0 %v630
    %v4327 = vpop.f32.mrf.mxu0
    %v4328 = vadd.f32 %v4315, %v4327
    %v4329 = vpop.f32.mrf.mxu0
    %4330 = vdwg.mxu0
    %4331 = vmatpush.bf16.msra.mxu0 %v2795
    %4332 = vmatpush.bf16.msra.mxu0 %v2793
    %4333 = vmatpush.bf16.msra.mxu0 %v2791
    %4334 = vmatpush.bf16.msra.mxu0 %v2789
    %4335 = vmatpush.bf16.msra.mxu0 %v2787
    %4336 = vmatpush.bf16.msra.mxu0 %v2785
    %4337 = vmatpush.bf16.msra.mxu0 %v2783
    %4338 = vmatpush.bf16.msra.mxu0 %v2781
    %4339 = vmatmul.bf16.gmra.mxu0 %v631
    %v4340 = vpop.f32.mrf.mxu0
    %v4341 = vadd.f32 %v4328, %v4340
    %v4342 = vpop.f32.mrf.mxu0
    %4343 = vdwg.mxu0
    %4344 = vmatpush.bf16.msra.mxu0 %v2811
    %4345 = vmatpush.bf16.msra.mxu0 %v2809
    %4346 = vmatpush.bf16.msra.mxu0 %v2807
    %4347 = vmatpush.bf16.msra.mxu0 %v2805
    %4348 = vmatpush.bf16.msra.mxu0 %v2803
    %4349 = vmatpush.bf16.msra.mxu0 %v2801
    %4350 = vmatpush.bf16.msra.mxu0 %v2799
    %4351 = vmatpush.bf16.msra.mxu0 %v2797
    %4352 = vmatmul.bf16.gmra.mxu0 %v634
    %v4353 = vpop.f32.mrf.mxu0
    %v4354 = vadd.f32 %v4341, %v4353
    %v4355 = vpop.f32.mrf.mxu0
    %4356 = vdwg.mxu0
    %4357 = vmatpush.bf16.msra.mxu0 %v2827
    %4358 = vmatpush.bf16.msra.mxu0 %v2825
    %4359 = vmatpush.bf16.msra.mxu0 %v2823
    %4360 = vmatpush.bf16.msra.mxu0 %v2821
    %4361 = vmatpush.bf16.msra.mxu0 %v2819
    %4362 = vmatpush.bf16.msra.mxu0 %v2817
    %4363 = vmatpush.bf16.msra.mxu0 %v2815
    %4364 = vmatpush.bf16.msra.mxu0 %v2813
    %4365 = vmatmul.bf16.gmra.mxu0 %v635
    %v4366 = vpop.f32.mrf.mxu0
    %v4367 = vadd.f32 %v4354, %v4366
    %v4368 = vpop.f32.mrf.mxu0
    %4369 = vdwg.mxu0
    %4370 = vmatpush.bf16.msra.mxu0 %v2843
    %4371 = vmatpush.bf16.msra.mxu0 %v2841
    %4372 = vmatpush.bf16.msra.mxu0 %v2839
    %4373 = vmatpush.bf16.msra.mxu0 %v2837
    %4374 = vmatpush.bf16.msra.mxu0 %v2835
    %4375 = vmatpush.bf16.msra.mxu0 %v2833
    %4376 = vmatpush.bf16.msra.mxu0 %v2831
    %4377 = vmatpush.bf16.msra.mxu0 %v2829
    %4378 = vmatmul.bf16.gmra.mxu0 %v636
    %v4379 = vpop.f32.mrf.mxu0
    %v4380 = vadd.f32 %v4367, %v4379
    %v4381 = vpop.f32.mrf.mxu0
    %4382 = vdwg.mxu0
    %4383 = vmatpush.bf16.msra.mxu0 %v2859
    %4384 = vmatpush.bf16.msra.mxu0 %v2857
    %4385 = vmatpush.bf16.msra.mxu0 %v2855
    %4386 = vmatpush.bf16.msra.mxu0 %v2853
    %4387 = vmatpush.bf16.msra.mxu0 %v2851
    %4388 = vmatpush.bf16.msra.mxu0 %v2849
    %4389 = vmatpush.bf16.msra.mxu0 %v2847
    %4390 = vmatpush.bf16.msra.mxu0 %v2845
    %4391 = vmatmul.bf16.gmra.mxu0 %v637
    %v4392 = vpop.f32.mrf.mxu0
    %v4393 = vadd.f32 %v4380, %v4392
    %v4394 = vpop.f32.mrf.mxu0
    %4395 = vdwg.mxu0
    %4396 = vmatpush.bf16.msra.mxu0 %v2875
    %4397 = vmatpush.bf16.msra.mxu0 %v2873
    %4398 = vmatpush.bf16.msra.mxu0 %v2871
    %4399 = vmatpush.bf16.msra.mxu0 %v2869
    %4400 = vmatpush.bf16.msra.mxu0 %v2867
    %4401 = vmatpush.bf16.msra.mxu0 %v2865
    %4402 = vmatpush.bf16.msra.mxu0 %v2863
    %4403 = vmatpush.bf16.msra.mxu0 %v2861
    %4404 = vmatmul.bf16.gmra.mxu0 %v638
    %v4405 = vpop.f32.mrf.mxu0
    %v4406 = vadd.f32 %v4393, %v4405
    %v4407 = vpop.f32.mrf.mxu0
    %4408 = vdwg.mxu0
    %4409 = vmatpush.bf16.msra.mxu0 %v2891
    %4410 = vmatpush.bf16.msra.mxu0 %v2889
    %4411 = vmatpush.bf16.msra.mxu0 %v2887
    %4412 = vmatpush.bf16.msra.mxu0 %v2885
    %4413 = vmatpush.bf16.msra.mxu0 %v2883
    %4414 = vmatpush.bf16.msra.mxu0 %v2881
    %4415 = vmatpush.bf16.msra.mxu0 %v2879
    %4416 = vmatpush.bf16.msra.mxu0 %v2877
    %4417 = vmatmul.bf16.gmra.mxu0 %v639
    %v4418 = vpop.f32.mrf.mxu0
    %v4419 = vadd.f32 %v4406, %v4418
    %v4420 = vpop.f32.mrf.mxu0
    %4421 = vdwg.mxu0
    %4422 = vmatpush.bf16.msra.mxu0 %v2907
    %4423 = vmatpush.bf16.msra.mxu0 %v2905
    %4424 = vmatpush.bf16.msra.mxu0 %v2903
    %4425 = vmatpush.bf16.msra.mxu0 %v2901
    %4426 = vmatpush.bf16.msra.mxu0 %v2899
    %4427 = vmatpush.bf16.msra.mxu0 %v2897
    %4428 = vmatpush.bf16.msra.mxu0 %v2895
    %4429 = vmatpush.bf16.msra.mxu0 %v2893
    %4430 = vmatmul.bf16.gmra.mxu0 %v640
    %v4431 = vpop.f32.mrf.mxu0
    %v4432 = vadd.f32 %v4419, %v4431
    %v4433 = vpop.f32.mrf.mxu0
    %4434 = vdwg.mxu0
    %4435 = vmatpush.bf16.msra.mxu0 %v2923
    %4436 = vmatpush.bf16.msra.mxu0 %v2921
    %4437 = vmatpush.bf16.msra.mxu0 %v2919
    %4438 = vmatpush.bf16.msra.mxu0 %v2917
    %4439 = vmatpush.bf16.msra.mxu0 %v2915
    %4440 = vmatpush.bf16.msra.mxu0 %v2913
    %4441 = vmatpush.bf16.msra.mxu0 %v2911
    %4442 = vmatpush.bf16.msra.mxu0 %v2909
    %4443 = vmatmul.bf16.gmra.mxu0 %v641
    %v4444 = vpop.f32.mrf.mxu0
    %v4445 = vadd.f32 %v4432, %v4444
    %v4446 = vpop.f32.mrf.mxu0
    %4447 = vdwg.mxu0
    %4448 = vmatpush.bf16.msra.mxu0 %v2939
    %4449 = vmatpush.bf16.msra.mxu0 %v2937
    %4450 = vmatpush.bf16.msra.mxu0 %v2935
    %4451 = vmatpush.bf16.msra.mxu0 %v2933
    %4452 = vmatpush.bf16.msra.mxu0 %v2931
    %4453 = vmatpush.bf16.msra.mxu0 %v2929
    %4454 = vmatpush.bf16.msra.mxu0 %v2927
    %4455 = vmatpush.bf16.msra.mxu0 %v2925
    %4456 = vmatmul.bf16.gmra.mxu0 %v644
    %v4457 = vpop.f32.mrf.mxu0
    %v4458 = vadd.f32 %v4445, %v4457
    %v4459 = vpop.f32.mrf.mxu0
    %4460 = vdwg.mxu0
    %4461 = vmatpush.bf16.msra.mxu0 %v2955
    %4462 = vmatpush.bf16.msra.mxu0 %v2953
    %4463 = vmatpush.bf16.msra.mxu0 %v2951
    %4464 = vmatpush.bf16.msra.mxu0 %v2949
    %4465 = vmatpush.bf16.msra.mxu0 %v2947
    %4466 = vmatpush.bf16.msra.mxu0 %v2945
    %4467 = vmatpush.bf16.msra.mxu0 %v2943
    %4468 = vmatpush.bf16.msra.mxu0 %v2941
    %4469 = vmatmul.bf16.gmra.mxu0 %v645
    %v4470 = vpop.f32.mrf.mxu0
    %v4471 = vadd.f32 %v4458, %v4470
    %v4472 = vpop.f32.mrf.mxu0
    %4473 = vdwg.mxu0
    %4474 = vmatpush.bf16.msra.mxu0 %v2971
    %4475 = vmatpush.bf16.msra.mxu0 %v2969
    %4476 = vmatpush.bf16.msra.mxu0 %v2967
    %4477 = vmatpush.bf16.msra.mxu0 %v2965
    %4478 = vmatpush.bf16.msra.mxu0 %v2963
    %4479 = vmatpush.bf16.msra.mxu0 %v2961
    %4480 = vmatpush.bf16.msra.mxu0 %v2959
    %4481 = vmatpush.bf16.msra.mxu0 %v2957
    %4482 = vmatmul.bf16.gmra.mxu0 %v646
    %v4483 = vpop.f32.mrf.mxu0
    %v4484 = vadd.f32 %v4471, %v4483
    %v4485 = vpop.f32.mrf.mxu0
    %4486 = vdwg.mxu0
    %4487 = vmatpush.bf16.msra.mxu0 %v2987
    %4488 = vmatpush.bf16.msra.mxu0 %v2985
    %4489 = vmatpush.bf16.msra.mxu0 %v2983
    %4490 = vmatpush.bf16.msra.mxu0 %v2981
    %4491 = vmatpush.bf16.msra.mxu0 %v2979
    %4492 = vmatpush.bf16.msra.mxu0 %v2977
    %4493 = vmatpush.bf16.msra.mxu0 %v2975
    %4494 = vmatpush.bf16.msra.mxu0 %v2973
    %4495 = vmatmul.bf16.gmra.mxu0 %v647
    %v4496 = vpop.f32.mrf.mxu0
    %v4497 = vadd.f32 %v4484, %v4496
    %v4498 = vpop.f32.mrf.mxu0
    %4499 = vdwg.mxu0
    %v4500 = vmax.f32 %v4029, 0.0
    %v4501 = vmax.f32 %v4497, 0.0
    %v4504 = vrot.slane %v4501, 6
    %vm4505 = vcmask 1041408
    %v4506 = vsel %vm4505, %v4500, %v4504
    %4508 = vst [vmem:[#allocation2] sm:$0xf] %v4506
    // Predicated region
    $region14: #{small_impala_cnn_forward.5} parent=1 // pred_check
      _
    $region15: #{small_impala_cnn_forward.5} parent=1 // pred_check_branch
      %4510 = sbr.rel (0) target = $region17
    $region16: #{small_impala_cnn_forward.5} parent=1 // pred_region
      %4512 = vsyncadd [#allocation3], 0
      %s4514 = sshll.u32 [#allocation2], 4
      %s4515 = int_to_ptr.vmem [resolvable:$true] %s4514
      %s4516 = sshll.u32 %s3, 4
      %s4517 = int_to_ptr.hbm [resolvable:$true] %s4516
      %4519 = dma.vmem_to_hbm [thread:$0]  %s4515, 64, %s4517, [#allocation3]
    $region17: #{small_impala_cnn_forward.5} parent=1 // pred_fallthru
      _
    // Predicated region
    $region18: #{small_impala_cnn_forward.5} parent=1 // pred_check
      _
    $region19: #{small_impala_cnn_forward.5} parent=1 // pred_check_branch
      %4521 = sbr.rel (0) target = $region21
    $region20: #{small_impala_cnn_forward.5} parent=1 // pred_region
      %4523 = dma.done [#allocation3], 64
    $region21: #{small_impala_cnn_forward.5} parent=1 // pred_fallthru
      _
    %4524 = vsyncpa [#allocation3], 1

</llo_original>
